<compile_context>
chip_gen: v7x
topology: tpu7x:2x2x1
jax: 0.10.0
libtpu: 0.0.40
codegen_flags: <defaults>
</compile_context>

<pallas_src>
import jax
import jax.numpy as jnp
from jax import lax
from jax.experimental import pallas as pl
from jax.experimental.pallas import tpu as pltpu


def _qlstm_kernel(
    x_ref,       # (T, Bp, F)   full input sequence, time-major
    wh_ref,      # (H, 4*NQ)    clayer_in h-weights replicated per gate
    wx_ref,      # (F, 4*NQ)    clayer_in x-weights replicated per gate
    shift_ref,   # (1, 4*NQ)    per-gate VQC shift + clayer_in bias (folded)
    wblk_ref,    # (4*NQ, 4*H)  block-diagonal clayer_out weights
    bout_ref,    # (1, 4*H)     clayer_out bias replicated per gate
    seq_ref,     # out: (T, Bp, H)  hidden_seq (time-major), flushed once
    cT_ref,      # out: (Bp, H)     final cell state
):
    T, Bp, _ = x_ref.shape
    H = cT_ref.shape[1]

    # Hoist all time-invariant operands out of the recurrence (loaded once).
    wh = wh_ref[...]
    wx = wx_ref[...]
    shift = shift_ref[...]
    wblk = wblk_ref[...]
    bout = bout_ref[...]

    # init_states=None in the torch module => zeros.
    h0 = jnp.zeros((Bp, H), jnp.float32)
    c0 = jnp.zeros((Bp, H), jnp.float32)

    def step(t, carry):
        h_t, c_t = carry
        x_t = x_ref[t]                                              # (Bp, F)

        # y_t = clayer_in(cat(h_t, x_t)), replicated lane-wise for all 4 gates,
        # with the per-gate VQC-surrogate shift (and b_in) already folded in.
        y = (
            jnp.dot(h_t, wh, preferred_element_type=jnp.float32)
            + jnp.dot(x_t, wx, preferred_element_type=jnp.float32)
            + shift
        )                                                           # (Bp, 4*NQ)

        # TODO(synk): classical surrogate for the PennyLane VQC (see header).
        z = jnp.cos(y)                                              # (Bp, 4*NQ)

        # clayer_out for all 4 gates in one MXU pass (block-diagonal weights).
        gates = jnp.dot(z, wblk, preferred_element_type=jnp.float32) + bout  # (Bp, 4*H)

        f_t = jax.nn.sigmoid(gates[:, 0 * H:1 * H])                 # forget
        i_t = jax.nn.sigmoid(gates[:, 1 * H:2 * H])                 # input
        g_t = jnp.tanh(gates[:, 2 * H:3 * H])                       # update
        o_t = jax.nn.sigmoid(gates[:, 3 * H:4 * H])                 # output

        c_new = f_t * c_t + i_t * g_t
        h_new = o_t * jnp.tanh(c_new)

        seq_ref[t] = h_new                                          # VMEM write; single HBM flush at end
        return h_new, c_new

    _, c_T = lax.fori_loop(0, T, step, (h0, c0), unroll=True)
    cT_ref[...] = c_T


def qlstm_forward(x, params):
    """x: (B, T, F) float32. Returns (hidden_seq (B,T,H), (h_T (B,H), c_T (B,H)))."""
    B, T, F = x.shape
    NQ, H = params["w_out"].shape

    # Pad batch to the TPU sublane width (8) for dense vregs / MXU rows.
    Bp = ((B + 7) // 8) * 8

    x_tbf = jnp.transpose(x, (1, 0, 2))                  # (T, B, F)
    if Bp != B:
        x_tbf = jnp.pad(x_tbf, ((0, 0), (0, Bp - B), (0, 0)))

    # ---- Time-invariant fusion / hoisting (JIT-traced wrapper, folded by XLA) ----
    # Per-gate VQC surrogate shift (sum over quantum layers) + clayer_in bias.
    gate_shift = jnp.sum(params["vqc_w"], axis=1) + params["b_in"]   # (4, NQ)
    shift_flat = gate_shift.reshape(1, 4 * NQ)                       # (1, 4*NQ)
    # clayer_in weights replicated across the 4 gates (lane-wise).
    wh_rep = jnp.tile(params["w_in_h"], (1, 4))                      # (H, 4*NQ)
    wx_rep = jnp.tile(params["w_in_x"], (1, 4))                      # (F, 4*NQ)
    # Block-diagonal clayer_out weights: one matmul computes all 4 gates.
    w_blk = jnp.kron(jnp.eye(4, dtype=jnp.float32), params["w_out"])  # (4*NQ, 4*H)
    b_out_rep = jnp.tile(params["b_out"], (1, 4))                    # (1, 4*H)

    vmem_specs = [pl.BlockSpec(memory_space=pltpu.MemorySpace.VMEM) for _ in range(6)]

    seq_tbh, c_last = pl.pallas_call(
        _qlstm_kernel,
        out_shape=(
            jax.ShapeDtypeStruct((T, Bp, H), jnp.float32),
            jax.ShapeDtypeStruct((Bp, H), jnp.float32),
        ),
        in_specs=vmem_specs,
        out_specs=(
            pl.BlockSpec(memory_space=pltpu.MemorySpace.VMEM),
            pl.BlockSpec(memory_space=pltpu.MemorySpace.VMEM),
        ),
    )(x_tbf, wh_rep, wx_rep, shift_flat, w_blk, b_out_rep)

    hidden_seq = jnp.transpose(seq_tbh[:, :B, :], (1, 0, 2))   # (B, T, H), batch_first
    h_T = hidden_seq[:, -1, :]                                 # (B, H)
    c_T = c_last[:B]                                           # (B, H)
    return hidden_seq, (h_T, c_T)


def init_params(key, input_size, hidden_size, n_qubits, n_qlayers):
    """Deterministic parameter init (torch.nn.Linear-style uniform ranges)."""
    concat = input_size + hidden_size
    k1, k2, k3, k4, k5 = jax.random.split(key, 5)

    lim_in = 1.0 / jnp.sqrt(jnp.float32(concat))
    # W_in of clayer_in is (n_qubits, concat); split into h-part / x-part, transposed.
    w_in = jax.random.uniform(k1, (n_qubits, concat), jnp.float32, -lim_in, lim_in)
    b_in = jax.random.uniform(k2, (1, n_qubits), jnp.float32, -lim_in, lim_in)

    lim_out = 1.0 / jnp.sqrt(jnp.float32(n_qubits))
    w_out = jax.random.uniform(k3, (hidden_size, n_qubits), jnp.float32, -lim_out, lim_out)
    b_out = jax.random.uniform(k4, (1, hidden_size), jnp.float32, -lim_out, lim_out)

    # Per-gate VQC weights, shape (n_qlayers, n_qubits); stacked [forget,input,update,output].
    vqc_w = jax.random.uniform(k5, (4, n_qlayers, n_qubits), jnp.float32, 0.0, 2.0 * jnp.pi)

    return {
        "w_in_h": jnp.transpose(w_in[:, :hidden_size]),   # (H, NQ)
        "w_in_x": jnp.transpose(w_in[:, hidden_size:]),   # (F, NQ)
        "b_in": b_in,                                      # (1, NQ)
        "w_out": jnp.transpose(w_out),                     # (NQ, H)
        "b_out": b_out,                                    # (1, H)
        "vqc_w": vqc_w,                                    # (4, L, NQ)
    }


if __name__ == "__main__":
    # Small shapes consistent with the module's forward: x is (batch, seq, features).
    B, T, F = 2, 8, 8
    H, NQ, L = 32, 4, 1

    key = jax.random.PRNGKey(0)
    k_x, k_p = jax.random.split(key)
    x = jax.random.normal(k_x, (B, T, F), dtype=jnp.float32)
    params = init_params(k_p, input_size=F, hidden_size=H, n_qubits=NQ, n_qlayers=L)

    fwd = jax.jit(qlstm_forward)
    hidden_seq, (h_T, c_T) = fwd(x, params)
    jax.block_until_ready((hidden_seq, h_T, c_T))

    assert hidden_seq.shape == (B, T, H)
    assert h_T.shape == (B, H) and c_T.shape == (B, H)
    assert bool(jnp.all(jnp.isfinite(hidden_seq)))
    print("KERNEL_OK")
</pallas_src>

<mosaic_0001>
module attributes {stable_mosaic.version = 11 : i64} {
  func.func @_qlstm_kernel(%arg0: memref<8x8x8xf32, #tpu.memory_space<vmem>>, %arg1: memref<32x16xf32, #tpu.memory_space<vmem>>, %arg2: memref<8x16xf32, #tpu.memory_space<vmem>>, %arg3: memref<1x16xf32, #tpu.memory_space<vmem>>, %arg4: memref<16x128xf32, #tpu.memory_space<vmem>>, %arg5: memref<1x128xf32, #tpu.memory_space<vmem>>, %arg6: memref<8x8x32xf32, #tpu.memory_space<vmem>>, %arg7: memref<8x32xf32, #tpu.memory_space<vmem>>) attributes {dimension_semantics = [], scalar_prefetch = 0 : i64, scratch_operands = 0 : i64, tpu.core_type = #tpu.core_type<tc>} {
    %c0 = arith.constant 0 : index
    %c0_0 = arith.constant 0 : index
    %0 = vector.load %arg1[%c0, %c0_0] : memref<32x16xf32, #tpu.memory_space<vmem>>, vector<32x16xf32>
    %c0_1 = arith.constant 0 : index
    %c0_2 = arith.constant 0 : index
    %1 = vector.load %arg2[%c0_1, %c0_2] : memref<8x16xf32, #tpu.memory_space<vmem>>, vector<8x16xf32>
    %c0_3 = arith.constant 0 : index
    %c0_4 = arith.constant 0 : index
    %2 = vector.load %arg3[%c0_3, %c0_4] : memref<1x16xf32, #tpu.memory_space<vmem>>, vector<1x16xf32>
    %c0_5 = arith.constant 0 : index
    %c0_6 = arith.constant 0 : index
    %3 = vector.load %arg4[%c0_5, %c0_6] : memref<16x128xf32, #tpu.memory_space<vmem>>, vector<16x128xf32>
    %c0_7 = arith.constant 0 : index
    %c0_8 = arith.constant 0 : index
    %4 = vector.load %arg5[%c0_7, %c0_8] : memref<1x128xf32, #tpu.memory_space<vmem>>, vector<1x128xf32>
    %cst = arith.constant 0.000000e+00 : f32
    %5 = vector.broadcast %cst : f32 to vector<8x32xf32>
    %cst_9 = arith.constant 0.000000e+00 : f32
    %6 = vector.broadcast %cst_9 : f32 to vector<8x32xf32>
    %c0_i32 = arith.constant 0 : i32
    %7 = arith.index_cast %c0_i32 : i32 to index
    %c0_10 = arith.constant 0 : index
    %c0_11 = arith.constant 0 : index
    %8 = vector.load %arg0[%7, %c0_10, %c0_11] : memref<8x8x8xf32, #tpu.memory_space<vmem>>, vector<1x8x8xf32>
    %9 = vector.shape_cast %8 : vector<1x8x8xf32> to vector<8x8xf32>
    %cst_12 = arith.constant dense<0.000000e+00> : vector<8x16xf32>
    %10 = tpu.matmul %5, %0, %cst_12 {dimension_numbers = #tpu.dot_dimension_numbers<[1], [0], [0], [1], [0, 0, 1, 1], [], []>} : vector<8x32xf32>, vector<32x16xf32>, vector<8x16xf32> -> vector<8x16xf32>
    %cst_13 = arith.constant dense<0.000000e+00> : vector<8x16xf32>
    %11 = tpu.matmul %9, %1, %cst_13 {dimension_numbers = #tpu.dot_dimension_numbers<[1], [0], [0], [1], [0, 0, 1, 1], [], []>} : vector<8x8xf32>, vector<8x16xf32>, vector<8x16xf32> -> vector<8x16xf32>
    %12 = arith.addf %10, %11 : vector<8x16xf32>
    %13 = vector.broadcast %2 : vector<1x16xf32> to vector<8x16xf32>
    %14 = arith.addf %12, %13 : vector<8x16xf32>
    %15 = math.cos %14 : vector<8x16xf32>
    %cst_14 = arith.constant dense<0.000000e+00> : vector<8x128xf32>
    %16 = tpu.matmul %15, %3, %cst_14 {dimension_numbers = #tpu.dot_dimension_numbers<[1], [0], [0], [1], [0, 0, 1, 1], [], []>} : vector<8x16xf32>, vector<16x128xf32>, vector<8x128xf32> -> vector<8x128xf32>
    %17 = vector.broadcast %4 : vector<1x128xf32> to vector<8x128xf32>
    %18 = arith.addf %16, %17 : vector<8x128xf32>
    %19 = vector.extract_strided_slice %18 {offsets = [0, 0], sizes = [8, 32], strides = [1, 1]} : vector<8x128xf32> to vector<8x32xf32>
    %20 = arith.negf %19 : vector<8x32xf32>
    %21 = math.exp %20 : vector<8x32xf32>
    %cst_15 = arith.constant 1.000000e+00 : f32
    %22 = vector.broadcast %cst_15 : f32 to vector<8x32xf32>
    %23 = arith.addf %22, %21 : vector<8x32xf32>
    %24 = arith.divf %22, %23 : vector<8x32xf32>
    %25 = vector.extract_strided_slice %18 {offsets = [0, 32], sizes = [8, 32], strides = [1, 1]} : vector<8x128xf32> to vector<8x32xf32>
    %26 = arith.negf %25 : vector<8x32xf32>
    %27 = math.exp %26 : vector<8x32xf32>
    %cst_16 = arith.constant 1.000000e+00 : f32
    %28 = vector.broadcast %cst_16 : f32 to vector<8x32xf32>
    %29 = arith.addf %28, %27 : vector<8x32xf32>
    %30 = arith.divf %28, %29 : vector<8x32xf32>
    %31 = vector.extract_strided_slice %18 {offsets = [0, 64], sizes = [8, 32], strides = [1, 1]} : vector<8x128xf32> to vector<8x32xf32>
    %32 = math.tanh %31 : vector<8x32xf32>
    %33 = vector.extract_strided_slice %18 {offsets = [0, 96], sizes = [8, 32], strides = [1, 1]} : vector<8x128xf32> to vector<8x32xf32>
    %34 = arith.negf %33 : vector<8x32xf32>
    %35 = math.exp %34 : vector<8x32xf32>
    %cst_17 = arith.constant 1.000000e+00 : f32
    %36 = vector.broadcast %cst_17 : f32 to vector<8x32xf32>
    %37 = arith.addf %36, %35 : vector<8x32xf32>
    %38 = arith.divf %36, %37 : vector<8x32xf32>
    %39 = arith.mulf %24, %6 : vector<8x32xf32>
    %40 = arith.mulf %30, %32 : vector<8x32xf32>
    %41 = arith.addf %39, %40 : vector<8x32xf32>
    %42 = math.tanh %41 : vector<8x32xf32>
    %43 = arith.mulf %38, %42 : vector<8x32xf32>
    %44 = arith.index_cast %c0_i32 : i32 to index
    %c0_18 = arith.constant 0 : index
    %c0_19 = arith.constant 0 : index
    %45 = vector.load %arg6[%44, %c0_18, %c0_19] : memref<8x8x32xf32, #tpu.memory_space<vmem>>, vector<1x8x32xf32>
    %46 = vector.shape_cast %45 : vector<1x8x32xf32> to vector<8x32xf32>
    %47 = vector.shape_cast %43 : vector<8x32xf32> to vector<1x8x32xf32>
    tpu.vector_store %arg6[%44, %c0_18, %c0_19], %47 {strides = array<i32>} : memref<8x8x32xf32, #tpu.memory_space<vmem>>, vector<1x8x32xf32>,
    %c1_i32 = arith.constant 1 : i32
    %48 = arith.index_cast %c1_i32 : i32 to index
    %c0_20 = arith.constant 0 : index
    %c0_21 = arith.constant 0 : index
    %49 = vector.load %arg0[%48, %c0_20, %c0_21] : memref<8x8x8xf32, #tpu.memory_space<vmem>>, vector<1x8x8xf32>
    %50 = vector.shape_cast %49 : vector<1x8x8xf32> to vector<8x8xf32>
    %cst_22 = arith.constant dense<0.000000e+00> : vector<8x16xf32>
    %51 = tpu.matmul %43, %0, %cst_22 {dimension_numbers = #tpu.dot_dimension_numbers<[1], [0], [0], [1], [0, 0, 1, 1], [], []>} : vector<8x32xf32>, vector<32x16xf32>, vector<8x16xf32> -> vector<8x16xf32>
    %cst_23 = arith.constant dense<0.000000e+00> : vector<8x16xf32>
    %52 = tpu.matmul %50, %1, %cst_23 {dimension_numbers = #tpu.dot_dimension_numbers<[1], [0], [0], [1], [0, 0, 1, 1], [], []>} : vector<8x8xf32>, vector<8x16xf32>, vector<8x16xf32> -> vector<8x16xf32>
    %53 = arith.addf %51, %52 : vector<8x16xf32>
    %54 = vector.broadcast %2 : vector<1x16xf32> to vector<8x16xf32>
    %55 = arith.addf %53, %54 : vector<8x16xf32>
    %56 = math.cos %55 : vector<8x16xf32>
    %cst_24 = arith.constant dense<0.000000e+00> : vector<8x128xf32>
    %57 = tpu.matmul %56, %3, %cst_24 {dimension_numbers = #tpu.dot_dimension_numbers<[1], [0], [0], [1], [0, 0, 1, 1], [], []>} : vector<8x16xf32>, vector<16x128xf32>, vector<8x128xf32> -> vector<8x128xf32>
    %58 = vector.broadcast %4 : vector<1x128xf32> to vector<8x128xf32>
    %59 = arith.addf %57, %58 : vector<8x128xf32>
    %60 = vector.extract_strided_slice %59 {offsets = [0, 0], sizes = [8, 32], strides = [1, 1]} : vector<8x128xf32> to vector<8x32xf32>
    %61 = arith.negf %60 : vector<8x32xf32>
    %62 = math.exp %61 : vector<8x32xf32>
    %cst_25 = arith.constant 1.000000e+00 : f32
    %63 = vector.broadcast %cst_25 : f32 to vector<8x32xf32>
    %64 = arith.addf %63, %62 : vector<8x32xf32>
    %65 = arith.divf %63, %64 : vector<8x32xf32>
    %66 = vector.extract_strided_slice %59 {offsets = [0, 32], sizes = [8, 32], strides = [1, 1]} : vector<8x128xf32> to vector<8x32xf32>
    %67 = arith.negf %66 : vector<8x32xf32>
    %68 = math.exp %67 : vector<8x32xf32>
    %cst_26 = arith.constant 1.000000e+00 : f32
    %69 = vector.broadcast %cst_26 : f32 to vector<8x32xf32>
    %70 = arith.addf %69, %68 : vector<8x32xf32>
    %71 = arith.divf %69, %70 : vector<8x32xf32>
    %72 = vector.extract_strided_slice %59 {offsets = [0, 64], sizes = [8, 32], strides = [1, 1]} : vector<8x128xf32> to vector<8x32xf32>
    %73 = math.tanh %72 : vector<8x32xf32>
    %74 = vector.extract_strided_slice %59 {offsets = [0, 96], sizes = [8, 32], strides = [1, 1]} : vector<8x128xf32> to vector<8x32xf32>
    %75 = arith.negf %74 : vector<8x32xf32>
    %76 = math.exp %75 : vector<8x32xf32>
    %cst_27 = arith.constant 1.000000e+00 : f32
    %77 = vector.broadcast %cst_27 : f32 to vector<8x32xf32>
    %78 = arith.addf %77, %76 : vector<8x32xf32>
    %79 = arith.divf %77, %78 : vector<8x32xf32>
    %80 = arith.mulf %65, %41 : vector<8x32xf32>
    %81 = arith.mulf %71, %73 : vector<8x32xf32>
    %82 = arith.addf %80, %81 : vector<8x32xf32>
    %83 = math.tanh %82 : vector<8x32xf32>
    %84 = arith.mulf %79, %83 : vector<8x32xf32>
    %85 = arith.index_cast %c1_i32 : i32 to index
    %c0_28 = arith.constant 0 : index
    %c0_29 = arith.constant 0 : index
    %86 = vector.load %arg6[%85, %c0_28, %c0_29] : memref<8x8x32xf32, #tpu.memory_space<vmem>>, vector<1x8x32xf32>
    %87 = vector.shape_cast %86 : vector<1x8x32xf32> to vector<8x32xf32>
    %88 = vector.shape_cast %84 : vector<8x32xf32> to vector<1x8x32xf32>
    tpu.vector_store %arg6[%85, %c0_28, %c0_29], %88 {strides = array<i32>} : memref<8x8x32xf32, #tpu.memory_space<vmem>>, vector<1x8x32xf32>,
    %c2_i32 = arith.constant 2 : i32
    %89 = arith.index_cast %c2_i32 : i32 to index
    %c0_30 = arith.constant 0 : index
    %c0_31 = arith.constant 0 : index
    %90 = vector.load %arg0[%89, %c0_30, %c0_31] : memref<8x8x8xf32, #tpu.memory_space<vmem>>, vector<1x8x8xf32>
    %91 = vector.shape_cast %90 : vector<1x8x8xf32> to vector<8x8xf32>
    %cst_32 = arith.constant dense<0.000000e+00> : vector<8x16xf32>
    %92 = tpu.matmul %84, %0, %cst_32 {dimension_numbers = #tpu.dot_dimension_numbers<[1], [0], [0], [1], [0, 0, 1, 1], [], []>} : vector<8x32xf32>, vector<32x16xf32>, vector<8x16xf32> -> vector<8x16xf32>
    %cst_33 = arith.constant dense<0.000000e+00> : vector<8x16xf32>
    %93 = tpu.matmul %91, %1, %cst_33 {dimension_numbers = #tpu.dot_dimension_numbers<[1], [0], [0], [1], [0, 0, 1, 1], [], []>} : vector<8x8xf32>, vector<8x16xf32>, vector<8x16xf32> -> vector<8x16xf32>
    %94 = arith.addf %92, %93 : vector<8x16xf32>
    %95 = vector.broadcast %2 : vector<1x16xf32> to vector<8x16xf32>
    %96 = arith.addf %94, %95 : vector<8x16xf32>
    %97 = math.cos %96 : vector<8x16xf32>
    %cst_34 = arith.constant dense<0.000000e+00> : vector<8x128xf32>
    %98 = tpu.matmul %97, %3, %cst_34 {dimension_numbers = #tpu.dot_dimension_numbers<[1], [0], [0], [1], [0, 0, 1, 1], [], []>} : vector<8x16xf32>, vector<16x128xf32>, vector<8x128xf32> -> vector<8x128xf32>
    %99 = vector.broadcast %4 : vector<1x128xf32> to vector<8x128xf32>
    %100 = arith.addf %98, %99 : vector<8x128xf32>
    %101 = vector.extract_strided_slice %100 {offsets = [0, 0], sizes = [8, 32], strides = [1, 1]} : vector<8x128xf32> to vector<8x32xf32>
    %102 = arith.negf %101 : vector<8x32xf32>
    %103 = math.exp %102 : vector<8x32xf32>
    %cst_35 = arith.constant 1.000000e+00 : f32
    %104 = vector.broadcast %cst_35 : f32 to vector<8x32xf32>
    %105 = arith.addf %104, %103 : vector<8x32xf32>
    %106 = arith.divf %104, %105 : vector<8x32xf32>
    %107 = vector.extract_strided_slice %100 {offsets = [0, 32], sizes = [8, 32], strides = [1, 1]} : vector<8x128xf32> to vector<8x32xf32>
    %108 = arith.negf %107 : vector<8x32xf32>
    %109 = math.exp %108 : vector<8x32xf32>
    %cst_36 = arith.constant 1.000000e+00 : f32
    %110 = vector.broadcast %cst_36 : f32 to vector<8x32xf32>
    %111 = arith.addf %110, %109 : vector<8x32xf32>
    %112 = arith.divf %110, %111 : vector<8x32xf32>
    %113 = vector.extract_strided_slice %100 {offsets = [0, 64], sizes = [8, 32], strides = [1, 1]} : vector<8x128xf32> to vector<8x32xf32>
    %114 = math.tanh %113 : vector<8x32xf32>
    %115 = vector.extract_strided_slice %100 {offsets = [0, 96], sizes = [8, 32], strides = [1, 1]} : vector<8x128xf32> to vector<8x32xf32>
    %116 = arith.negf %115 : vector<8x32xf32>
    %117 = math.exp %116 : vector<8x32xf32>
    %cst_37 = arith.constant 1.000000e+00 : f32
    %118 = vector.broadcast %cst_37 : f32 to vector<8x32xf32>
    %119 = arith.addf %118, %117 : vector<8x32xf32>
    %120 = arith.divf %118, %119 : vector<8x32xf32>
    %121 = arith.mulf %106, %82 : vector<8x32xf32>
    %122 = arith.mulf %112, %114 : vector<8x32xf32>
    %123 = arith.addf %121, %122 : vector<8x32xf32>
    %124 = math.tanh %123 : vector<8x32xf32>
    %125 = arith.mulf %120, %124 : vector<8x32xf32>
    %126 = arith.index_cast %c2_i32 : i32 to index
    %c0_38 = arith.constant 0 : index
    %c0_39 = arith.constant 0 : index
    %127 = vector.load %arg6[%126, %c0_38, %c0_39] : memref<8x8x32xf32, #tpu.memory_space<vmem>>, vector<1x8x32xf32>
    %128 = vector.shape_cast %127 : vector<1x8x32xf32> to vector<8x32xf32>
    %129 = vector.shape_cast %125 : vector<8x32xf32> to vector<1x8x32xf32>
    tpu.vector_store %arg6[%126, %c0_38, %c0_39], %129 {strides = array<i32>} : memref<8x8x32xf32, #tpu.memory_space<vmem>>, vector<1x8x32xf32>,
    %c3_i32 = arith.constant 3 : i32
    %130 = arith.index_cast %c3_i32 : i32 to index
    %c0_40 = arith.constant 0 : index
    %c0_41 = arith.constant 0 : index
    %131 = vector.load %arg0[%130, %c0_40, %c0_41] : memref<8x8x8xf32, #tpu.memory_space<vmem>>, vector<1x8x8xf32>
    %132 = vector.shape_cast %131 : vector<1x8x8xf32> to vector<8x8xf32>
    %cst_42 = arith.constant dense<0.000000e+00> : vector<8x16xf32>
    %133 = tpu.matmul %125, %0, %cst_42 {dimension_numbers = #tpu.dot_dimension_numbers<[1], [0], [0], [1], [0, 0, 1, 1], [], []>} : vector<8x32xf32>, vector<32x16xf32>, vector<8x16xf32> -> vector<8x16xf32>
    %cst_43 = arith.constant dense<0.000000e+00> : vector<8x16xf32>
    %134 = tpu.matmul %132, %1, %cst_43 {dimension_numbers = #tpu.dot_dimension_numbers<[1], [0], [0], [1], [0, 0, 1, 1], [], []>} : vector<8x8xf32>, vector<8x16xf32>, vector<8x16xf32> -> vector<8x16xf32>
    %135 = arith.addf %133, %134 : vector<8x16xf32>
    %136 = vector.broadcast %2 : vector<1x16xf32> to vector<8x16xf32>
    %137 = arith.addf %135, %136 : vector<8x16xf32>
    %138 = math.cos %137 : vector<8x16xf32>
    %cst_44 = arith.constant dense<0.000000e+00> : vector<8x128xf32>
    %139 = tpu.matmul %138, %3, %cst_44 {dimension_numbers = #tpu.dot_dimension_numbers<[1], [0], [0], [1], [0, 0, 1, 1], [], []>} : vector<8x16xf32>, vector<16x128xf32>, vector<8x128xf32> -> vector<8x128xf32>
    %140 = vector.broadcast %4 : vector<1x128xf32> to vector<8x128xf32>
    %141 = arith.addf %139, %140 : vector<8x128xf32>
    %142 = vector.extract_strided_slice %141 {offsets = [0, 0], sizes = [8, 32], strides = [1, 1]} : vector<8x128xf32> to vector<8x32xf32>
    %143 = arith.negf %142 : vector<8x32xf32>
    %144 = math.exp %143 : vector<8x32xf32>
    %cst_45 = arith.constant 1.000000e+00 : f32
    %145 = vector.broadcast %cst_45 : f32 to vector<8x32xf32>
    %146 = arith.addf %145, %144 : vector<8x32xf32>
    %147 = arith.divf %145, %146 : vector<8x32xf32>
    %148 = vector.extract_strided_slice %141 {offsets = [0, 32], sizes = [8, 32], strides = [1, 1]} : vector<8x128xf32> to vector<8x32xf32>
    %149 = arith.negf %148 : vector<8x32xf32>
    %150 = math.exp %149 : vector<8x32xf32>
    %cst_46 = arith.constant 1.000000e+00 : f32
    %151 = vector.broadcast %cst_46 : f32 to vector<8x32xf32>
    %152 = arith.addf %151, %150 : vector<8x32xf32>
    %153 = arith.divf %151, %152 : vector<8x32xf32>
    %154 = vector.extract_strided_slice %141 {offsets = [0, 64], sizes = [8, 32], strides = [1, 1]} : vector<8x128xf32> to vector<8x32xf32>
    %155 = math.tanh %154 : vector<8x32xf32>
    %156 = vector.extract_strided_slice %141 {offsets = [0, 96], sizes = [8, 32], strides = [1, 1]} : vector<8x128xf32> to vector<8x32xf32>
    %157 = arith.negf %156 : vector<8x32xf32>
    %158 = math.exp %157 : vector<8x32xf32>
    %cst_47 = arith.constant 1.000000e+00 : f32
    %159 = vector.broadcast %cst_47 : f32 to vector<8x32xf32>
    %160 = arith.addf %159, %158 : vector<8x32xf32>
    %161 = arith.divf %159, %160 : vector<8x32xf32>
    %162 = arith.mulf %147, %123 : vector<8x32xf32>
    %163 = arith.mulf %153, %155 : vector<8x32xf32>
    %164 = arith.addf %162, %163 : vector<8x32xf32>
    %165 = math.tanh %164 : vector<8x32xf32>
    %166 = arith.mulf %161, %165 : vector<8x32xf32>
    %167 = arith.index_cast %c3_i32 : i32 to index
    %c0_48 = arith.constant 0 : index
    %c0_49 = arith.constant 0 : index
    %168 = vector.load %arg6[%167, %c0_48, %c0_49] : memref<8x8x32xf32, #tpu.memory_space<vmem>>, vector<1x8x32xf32>
    %169 = vector.shape_cast %168 : vector<1x8x32xf32> to vector<8x32xf32>
    %170 = vector.shape_cast %166 : vector<8x32xf32> to vector<1x8x32xf32>
    tpu.vector_store %arg6[%167, %c0_48, %c0_49], %170 {strides = array<i32>} : memref<8x8x32xf32, #tpu.memory_space<vmem>>, vector<1x8x32xf32>,
    %c4_i32 = arith.constant 4 : i32
    %171 = arith.index_cast %c4_i32 : i32 to index
    %c0_50 = arith.constant 0 : index
    %c0_51 = arith.constant 0 : index
    %172 = vector.load %arg0[%171, %c0_50, %c0_51] : memref<8x8x8xf32, #tpu.memory_space<vmem>>, vector<1x8x8xf32>
    %173 = vector.shape_cast %172 : vector<1x8x8xf32> to vector<8x8xf32>
    %cst_52 = arith.constant dense<0.000000e+00> : vector<8x16xf32>
    %174 = tpu.matmul %166, %0, %cst_52 {dimension_numbers = #tpu.dot_dimension_numbers<[1], [0], [0], [1], [0, 0, 1, 1], [], []>} : vector<8x32xf32>, vector<32x16xf32>, vector<8x16xf32> -> vector<8x16xf32>
    %cst_53 = arith.constant dense<0.000000e+00> : vector<8x16xf32>
    %175 = tpu.matmul %173, %1, %cst_53 {dimension_numbers = #tpu.dot_dimension_numbers<[1], [0], [0], [1], [0, 0, 1, 1], [], []>} : vector<8x8xf32>, vector<8x16xf32>, vector<8x16xf32> -> vector<8x16xf32>
    %176 = arith.addf %174, %175 : vector<8x16xf32>
    %177 = vector.broadcast %2 : vector<1x16xf32> to vector<8x16xf32>
    %178 = arith.addf %176, %177 : vector<8x16xf32>
    %179 = math.cos %178 : vector<8x16xf32>
    %cst_54 = arith.constant dense<0.000000e+00> : vector<8x128xf32>
    %180 = tpu.matmul %179, %3, %cst_54 {dimension_numbers = #tpu.dot_dimension_numbers<[1], [0], [0], [1], [0, 0, 1, 1], [], []>} : vector<8x16xf32>, vector<16x128xf32>, vector<8x128xf32> -> vector<8x128xf32>
    %181 = vector.broadcast %4 : vector<1x128xf32> to vector<8x128xf32>
    %182 = arith.addf %180, %181 : vector<8x128xf32>
    %183 = vector.extract_strided_slice %182 {offsets = [0, 0], sizes = [8, 32], strides = [1, 1]} : vector<8x128xf32> to vector<8x32xf32>
    %184 = arith.negf %183 : vector<8x32xf32>
    %185 = math.exp %184 : vector<8x32xf32>
    %cst_55 = arith.constant 1.000000e+00 : f32
    %186 = vector.broadcast %cst_55 : f32 to vector<8x32xf32>
    %187 = arith.addf %186, %185 : vector<8x32xf32>
    %188 = arith.divf %186, %187 : vector<8x32xf32>
    %189 = vector.extract_strided_slice %182 {offsets = [0, 32], sizes = [8, 32], strides = [1, 1]} : vector<8x128xf32> to vector<8x32xf32>
    %190 = arith.negf %189 : vector<8x32xf32>
    %191 = math.exp %190 : vector<8x32xf32>
    %cst_56 = arith.constant 1.000000e+00 : f32
    %192 = vector.broadcast %cst_56 : f32 to vector<8x32xf32>
    %193 = arith.addf %192, %191 : vector<8x32xf32>
    %194 = arith.divf %192, %193 : vector<8x32xf32>
    %195 = vector.extract_strided_slice %182 {offsets = [0, 64], sizes = [8, 32], strides = [1, 1]} : vector<8x128xf32> to vector<8x32xf32>
    %196 = math.tanh %195 : vector<8x32xf32>
    %197 = vector.extract_strided_slice %182 {offsets = [0, 96], sizes = [8, 32], strides = [1, 1]} : vector<8x128xf32> to vector<8x32xf32>
    %198 = arith.negf %197 : vector<8x32xf32>
    %199 = math.exp %198 : vector<8x32xf32>
    %cst_57 = arith.constant 1.000000e+00 : f32
    %200 = vector.broadcast %cst_57 : f32 to vector<8x32xf32>
    %201 = arith.addf %200, %199 : vector<8x32xf32>
    %202 = arith.divf %200, %201 : vector<8x32xf32>
    %203 = arith.mulf %188, %164 : vector<8x32xf32>
    %204 = arith.mulf %194, %196 : vector<8x32xf32>
    %205 = arith.addf %203, %204 : vector<8x32xf32>
    %206 = math.tanh %205 : vector<8x32xf32>
    %207 = arith.mulf %202, %206 : vector<8x32xf32>
    %208 = arith.index_cast %c4_i32 : i32 to index
    %c0_58 = arith.constant 0 : index
    %c0_59 = arith.constant 0 : index
    %209 = vector.load %arg6[%208, %c0_58, %c0_59] : memref<8x8x32xf32, #tpu.memory_space<vmem>>, vector<1x8x32xf32>
    %210 = vector.shape_cast %209 : vector<1x8x32xf32> to vector<8x32xf32>
    %211 = vector.shape_cast %207 : vector<8x32xf32> to vector<1x8x32xf32>
    tpu.vector_store %arg6[%208, %c0_58, %c0_59], %211 {strides = array<i32>} : memref<8x8x32xf32, #tpu.memory_space<vmem>>, vector<1x8x32xf32>,
    %c5_i32 = arith.constant 5 : i32
    %212 = arith.index_cast %c5_i32 : i32 to index
    %c0_60 = arith.constant 0 : index
    %c0_61 = arith.constant 0 : index
    %213 = vector.load %arg0[%212, %c0_60, %c0_61] : memref<8x8x8xf32, #tpu.memory_space<vmem>>, vector<1x8x8xf32>
    %214 = vector.shape_cast %213 : vector<1x8x8xf32> to vector<8x8xf32>
    %cst_62 = arith.constant dense<0.000000e+00> : vector<8x16xf32>
    %215 = tpu.matmul %207, %0, %cst_62 {dimension_numbers = #tpu.dot_dimension_numbers<[1], [0], [0], [1], [0, 0, 1, 1], [], []>} : vector<8x32xf32>, vector<32x16xf32>, vector<8x16xf32> -> vector<8x16xf32>
    %cst_63 = arith.constant dense<0.000000e+00> : vector<8x16xf32>
    %216 = tpu.matmul %214, %1, %cst_63 {dimension_numbers = #tpu.dot_dimension_numbers<[1], [0], [0], [1], [0, 0, 1, 1], [], []>} : vector<8x8xf32>, vector<8x16xf32>, vector<8x16xf32> -> vector<8x16xf32>
    %217 = arith.addf %215, %216 : vector<8x16xf32>
    %218 = vector.broadcast %2 : vector<1x16xf32> to vector<8x16xf32>
    %219 = arith.addf %217, %218 : vector<8x16xf32>
    %220 = math.cos %219 : vector<8x16xf32>
    %cst_64 = arith.constant dense<0.000000e+00> : vector<8x128xf32>
    %221 = tpu.matmul %220, %3, %cst_64 {dimension_numbers = #tpu.dot_dimension_numbers<[1], [0], [0], [1], [0, 0, 1, 1], [], []>} : vector<8x16xf32>, vector<16x128xf32>, vector<8x128xf32> -> vector<8x128xf32>
    %222 = vector.broadcast %4 : vector<1x128xf32> to vector<8x128xf32>
    %223 = arith.addf %221, %222 : vector<8x128xf32>
    %224 = vector.extract_strided_slice %223 {offsets = [0, 0], sizes = [8, 32], strides = [1, 1]} : vector<8x128xf32> to vector<8x32xf32>
    %225 = arith.negf %224 : vector<8x32xf32>
    %226 = math.exp %225 : vector<8x32xf32>
    %cst_65 = arith.constant 1.000000e+00 : f32
    %227 = vector.broadcast %cst_65 : f32 to vector<8x32xf32>
    %228 = arith.addf %227, %226 : vector<8x32xf32>
    %229 = arith.divf %227, %228 : vector<8x32xf32>
    %230 = vector.extract_strided_slice %223 {offsets = [0, 32], sizes = [8, 32], strides = [1, 1]} : vector<8x128xf32> to vector<8x32xf32>
    %231 = arith.negf %230 : vector<8x32xf32>
    %232 = math.exp %231 : vector<8x32xf32>
    %cst_66 = arith.constant 1.000000e+00 : f32
    %233 = vector.broadcast %cst_66 : f32 to vector<8x32xf32>
    %234 = arith.addf %233, %232 : vector<8x32xf32>
    %235 = arith.divf %233, %234 : vector<8x32xf32>
    %236 = vector.extract_strided_slice %223 {offsets = [0, 64], sizes = [8, 32], strides = [1, 1]} : vector<8x128xf32> to vector<8x32xf32>
    %237 = math.tanh %236 : vector<8x32xf32>
    %238 = vector.extract_strided_slice %223 {offsets = [0, 96], sizes = [8, 32], strides = [1, 1]} : vector<8x128xf32> to vector<8x32xf32>
    %239 = arith.negf %238 : vector<8x32xf32>
    %240 = math.exp %239 : vector<8x32xf32>
    %cst_67 = arith.constant 1.000000e+00 : f32
    %241 = vector.broadcast %cst_67 : f32 to vector<8x32xf32>
    %242 = arith.addf %241, %240 : vector<8x32xf32>
    %243 = arith.divf %241, %242 : vector<8x32xf32>
    %244 = arith.mulf %229, %205 : vector<8x32xf32>
    %245 = arith.mulf %235, %237 : vector<8x32xf32>
    %246 = arith.addf %244, %245 : vector<8x32xf32>
    %247 = math.tanh %246 : vector<8x32xf32>
    %248 = arith.mulf %243, %247 : vector<8x32xf32>
    %249 = arith.index_cast %c5_i32 : i32 to index
    %c0_68 = arith.constant 0 : index
    %c0_69 = arith.constant 0 : index
    %250 = vector.load %arg6[%249, %c0_68, %c0_69] : memref<8x8x32xf32, #tpu.memory_space<vmem>>, vector<1x8x32xf32>
    %251 = vector.shape_cast %250 : vector<1x8x32xf32> to vector<8x32xf32>
    %252 = vector.shape_cast %248 : vector<8x32xf32> to vector<1x8x32xf32>
    tpu.vector_store %arg6[%249, %c0_68, %c0_69], %252 {strides = array<i32>} : memref<8x8x32xf32, #tpu.memory_space<vmem>>, vector<1x8x32xf32>,
    %c6_i32 = arith.constant 6 : i32
    %253 = arith.index_cast %c6_i32 : i32 to index
    %c0_70 = arith.constant 0 : index
    %c0_71 = arith.constant 0 : index
    %254 = vector.load %arg0[%253, %c0_70, %c0_71] : memref<8x8x8xf32, #tpu.memory_space<vmem>>, vector<1x8x8xf32>
    %255 = vector.shape_cast %254 : vector<1x8x8xf32> to vector<8x8xf32>
    %cst_72 = arith.constant dense<0.000000e+00> : vector<8x16xf32>
    %256 = tpu.matmul %248, %0, %cst_72 {dimension_numbers = #tpu.dot_dimension_numbers<[1], [0], [0], [1], [0, 0, 1, 1], [], []>} : vector<8x32xf32>, vector<32x16xf32>, vector<8x16xf32> -> vector<8x16xf32>
    %cst_73 = arith.constant dense<0.000000e+00> : vector<8x16xf32>
    %257 = tpu.matmul %255, %1, %cst_73 {dimension_numbers = #tpu.dot_dimension_numbers<[1], [0], [0], [1], [0, 0, 1, 1], [], []>} : vector<8x8xf32>, vector<8x16xf32>, vector<8x16xf32> -> vector<8x16xf32>
    %258 = arith.addf %256, %257 : vector<8x16xf32>
    %259 = vector.broadcast %2 : vector<1x16xf32> to vector<8x16xf32>
    %260 = arith.addf %258, %259 : vector<8x16xf32>
    %261 = math.cos %260 : vector<8x16xf32>
    %cst_74 = arith.constant dense<0.000000e+00> : vector<8x128xf32>
    %262 = tpu.matmul %261, %3, %cst_74 {dimension_numbers = #tpu.dot_dimension_numbers<[1], [0], [0], [1], [0, 0, 1, 1], [], []>} : vector<8x16xf32>, vector<16x128xf32>, vector<8x128xf32> -> vector<8x128xf32>
    %263 = vector.broadcast %4 : vector<1x128xf32> to vector<8x128xf32>
    %264 = arith.addf %262, %263 : vector<8x128xf32>
    %265 = vector.extract_strided_slice %264 {offsets = [0, 0], sizes = [8, 32], strides = [1, 1]} : vector<8x128xf32> to vector<8x32xf32>
    %266 = arith.negf %265 : vector<8x32xf32>
    %267 = math.exp %266 : vector<8x32xf32>
    %cst_75 = arith.constant 1.000000e+00 : f32
    %268 = vector.broadcast %cst_75 : f32 to vector<8x32xf32>
    %269 = arith.addf %268, %267 : vector<8x32xf32>
    %270 = arith.divf %268, %269 : vector<8x32xf32>
    %271 = vector.extract_strided_slice %264 {offsets = [0, 32], sizes = [8, 32], strides = [1, 1]} : vector<8x128xf32> to vector<8x32xf32>
    %272 = arith.negf %271 : vector<8x32xf32>
    %273 = math.exp %272 : vector<8x32xf32>
    %cst_76 = arith.constant 1.000000e+00 : f32
    %274 = vector.broadcast %cst_76 : f32 to vector<8x32xf32>
    %275 = arith.addf %274, %273 : vector<8x32xf32>
    %276 = arith.divf %274, %275 : vector<8x32xf32>
    %277 = vector.extract_strided_slice %264 {offsets = [0, 64], sizes = [8, 32], strides = [1, 1]} : vector<8x128xf32> to vector<8x32xf32>
    %278 = math.tanh %277 : vector<8x32xf32>
    %279 = vector.extract_strided_slice %264 {offsets = [0, 96], sizes = [8, 32], strides = [1, 1]} : vector<8x128xf32> to vector<8x32xf32>
    %280 = arith.negf %279 : vector<8x32xf32>
    %281 = math.exp %280 : vector<8x32xf32>
    %cst_77 = arith.constant 1.000000e+00 : f32
    %282 = vector.broadcast %cst_77 : f32 to vector<8x32xf32>
    %283 = arith.addf %282, %281 : vector<8x32xf32>
    %284 = arith.divf %282, %283 : vector<8x32xf32>
    %285 = arith.mulf %270, %246 : vector<8x32xf32>
    %286 = arith.mulf %276, %278 : vector<8x32xf32>
    %287 = arith.addf %285, %286 : vector<8x32xf32>
    %288 = math.tanh %287 : vector<8x32xf32>
    %289 = arith.mulf %284, %288 : vector<8x32xf32>
    %290 = arith.index_cast %c6_i32 : i32 to index
    %c0_78 = arith.constant 0 : index
    %c0_79 = arith.constant 0 : index
    %291 = vector.load %arg6[%290, %c0_78, %c0_79] : memref<8x8x32xf32, #tpu.memory_space<vmem>>, vector<1x8x32xf32>
    %292 = vector.shape_cast %291 : vector<1x8x32xf32> to vector<8x32xf32>
    %293 = vector.shape_cast %289 : vector<8x32xf32> to vector<1x8x32xf32>
    tpu.vector_store %arg6[%290, %c0_78, %c0_79], %293 {strides = array<i32>} : memref<8x8x32xf32, #tpu.memory_space<vmem>>, vector<1x8x32xf32>,
    %c7_i32 = arith.constant 7 : i32
    %294 = arith.index_cast %c7_i32 : i32 to index
    %c0_80 = arith.constant 0 : index
    %c0_81 = arith.constant 0 : index
    %295 = vector.load %arg0[%294, %c0_80, %c0_81] : memref<8x8x8xf32, #tpu.memory_space<vmem>>, vector<1x8x8xf32>
    %296 = vector.shape_cast %295 : vector<1x8x8xf32> to vector<8x8xf32>
    %cst_82 = arith.constant dense<0.000000e+00> : vector<8x16xf32>
    %297 = tpu.matmul %289, %0, %cst_82 {dimension_numbers = #tpu.dot_dimension_numbers<[1], [0], [0], [1], [0, 0, 1, 1], [], []>} : vector<8x32xf32>, vector<32x16xf32>, vector<8x16xf32> -> vector<8x16xf32>
    %cst_83 = arith.constant dense<0.000000e+00> : vector<8x16xf32>
    %298 = tpu.matmul %296, %1, %cst_83 {dimension_numbers = #tpu.dot_dimension_numbers<[1], [0], [0], [1], [0, 0, 1, 1], [], []>} : vector<8x8xf32>, vector<8x16xf32>, vector<8x16xf32> -> vector<8x16xf32>
    %299 = arith.addf %297, %298 : vector<8x16xf32>
    %300 = vector.broadcast %2 : vector<1x16xf32> to vector<8x16xf32>
    %301 = arith.addf %299, %300 : vector<8x16xf32>
    %302 = math.cos %301 : vector<8x16xf32>
    %cst_84 = arith.constant dense<0.000000e+00> : vector<8x128xf32>
    %303 = tpu.matmul %302, %3, %cst_84 {dimension_numbers = #tpu.dot_dimension_numbers<[1], [0], [0], [1], [0, 0, 1, 1], [], []>} : vector<8x16xf32>, vector<16x128xf32>, vector<8x128xf32> -> vector<8x128xf32>
    %304 = vector.broadcast %4 : vector<1x128xf32> to vector<8x128xf32>
    %305 = arith.addf %303, %304 : vector<8x128xf32>
    %306 = vector.extract_strided_slice %305 {offsets = [0, 0], sizes = [8, 32], strides = [1, 1]} : vector<8x128xf32> to vector<8x32xf32>
    %307 = arith.negf %306 : vector<8x32xf32>
    %308 = math.exp %307 : vector<8x32xf32>
    %cst_85 = arith.constant 1.000000e+00 : f32
    %309 = vector.broadcast %cst_85 : f32 to vector<8x32xf32>
    %310 = arith.addf %309, %308 : vector<8x32xf32>
    %311 = arith.divf %309, %310 : vector<8x32xf32>
    %312 = vector.extract_strided_slice %305 {offsets = [0, 32], sizes = [8, 32], strides = [1, 1]} : vector<8x128xf32> to vector<8x32xf32>
    %313 = arith.negf %312 : vector<8x32xf32>
    %314 = math.exp %313 : vector<8x32xf32>
    %cst_86 = arith.constant 1.000000e+00 : f32
    %315 = vector.broadcast %cst_86 : f32 to vector<8x32xf32>
    %316 = arith.addf %315, %314 : vector<8x32xf32>
    %317 = arith.divf %315, %316 : vector<8x32xf32>
    %318 = vector.extract_strided_slice %305 {offsets = [0, 64], sizes = [8, 32], strides = [1, 1]} : vector<8x128xf32> to vector<8x32xf32>
    %319 = math.tanh %318 : vector<8x32xf32>
    %320 = vector.extract_strided_slice %305 {offsets = [0, 96], sizes = [8, 32], strides = [1, 1]} : vector<8x128xf32> to vector<8x32xf32>
    %321 = arith.negf %320 : vector<8x32xf32>
    %322 = math.exp %321 : vector<8x32xf32>
    %cst_87 = arith.constant 1.000000e+00 : f32
    %323 = vector.broadcast %cst_87 : f32 to vector<8x32xf32>
    %324 = arith.addf %323, %322 : vector<8x32xf32>
    %325 = arith.divf %323, %324 : vector<8x32xf32>
    %326 = arith.mulf %311, %287 : vector<8x32xf32>
    %327 = arith.mulf %317, %319 : vector<8x32xf32>
    %328 = arith.addf %326, %327 : vector<8x32xf32>
    %329 = math.tanh %328 : vector<8x32xf32>
    %330 = arith.mulf %325, %329 : vector<8x32xf32>
    %331 = arith.index_cast %c7_i32 : i32 to index
    %c0_88 = arith.constant 0 : index
    %c0_89 = arith.constant 0 : index
    %332 = vector.load %arg6[%331, %c0_88, %c0_89] : memref<8x8x32xf32, #tpu.memory_space<vmem>>, vector<1x8x32xf32>
    %333 = vector.shape_cast %332 : vector<1x8x32xf32> to vector<8x32xf32>
    %334 = vector.shape_cast %330 : vector<8x32xf32> to vector<1x8x32xf32>
    tpu.vector_store %arg6[%331, %c0_88, %c0_89], %334 {strides = array<i32>} : memref<8x8x32xf32, #tpu.memory_space<vmem>>, vector<1x8x32xf32>,
    %c8_i32 = arith.constant 8 : i32
    %c0_90 = arith.constant 0 : index
    %c0_91 = arith.constant 0 : index
    %335 = vector.load %arg7[%c0_90, %c0_91] : memref<8x32xf32, #tpu.memory_space<vmem>>, vector<8x32xf32>
    tpu.vector_store %arg7[%c0_90, %c0_91], %328 {strides = array<i32>} : memref<8x32xf32, #tpu.memory_space<vmem>>, vector<8x32xf32>,
    return
  }
}

</mosaic_0001>

<llo_original>
// kernel: qlstm_forward.1
$region0: #{qlstm_forward.1}
  #allocation0 [shape = 'u32[]', space=smem, size = 0x4, offset = 0x4, fixed_abs, tag = 'smem constant byte address 0x4 - core index']
  #allocation1 [shape = 'u32[144,128]{1,0:T(1,128)}', space=vmem, size = 0x12000, scoped, tag = 'internal scratch']
  %s0 = inlined_call_operand.vmem [shape: f32[8,8,8], index: 0, kind: input, shape index: {}]
  %s1 = inlined_call_operand.vmem [shape: f32[32,16], index: 1, kind: input, shape index: {}]
  %s2 = inlined_call_operand.vmem [shape: f32[8,16], index: 2, kind: input, shape index: {}]
  %s3 = inlined_call_operand.vmem [shape: f32[1,16], index: 3, kind: input, shape index: {}]
  %s4 = inlined_call_operand.vmem [shape: f32[16,128], index: 4, kind: input, shape index: {}]
  %s5 = inlined_call_operand.vmem [shape: f32[1,128], index: 5, kind: input, shape index: {}]
  %s6 = inlined_call_operand.vmem [shape: f32[8,8,32], index: 6, kind: output, shape index: {0}]
  %s7 = inlined_call_operand.vmem [shape: f32[8,32], index: 7, kind: output, shape index: {1}]
  %8 = xla_tuple %s6, %s7
  %s9 = sld [smem:[#allocation0]]
  $region42: #{qlstm_forward.1} parent=0
    _
  %s11 = ssub.s32 1, %s9
  %s12 = scalar_select 0, %s11, %s9
  // Predicated region
  $region2: #{qlstm_forward.1} parent=0 // pred_check
    _
  $region3: #{qlstm_forward.1} parent=0 // pred_check_branch
    %14 = sbr.rel (0) target = $region5
  $region4: #{qlstm_forward.1} parent=0 // pred_region
    _
  $region5: #{qlstm_forward.1} parent=0 // pred_fallthru
    _
  // Predicated region
  $region6: #{qlstm_forward.1} parent=0 // pred_check
    _
  $region7: #{qlstm_forward.1} parent=0 // pred_check_branch
    %16 = sbr.rel (0) target = $region9
  $region8: #{qlstm_forward.1} parent=0 // pred_region
    _
  $region9: #{qlstm_forward.1} parent=0 // pred_fallthru
    _
  // Predicated region
  $region10: #{qlstm_forward.1} parent=0 // pred_check
    _
  $region11: #{qlstm_forward.1} parent=0 // pred_check_branch
    %18 = sbr.rel (0) target = $region13
  $region12: #{qlstm_forward.1} parent=0 // pred_region
    _
  $region13: #{qlstm_forward.1} parent=0 // pred_fallthru
    _
  // Predicated region
  $region14: #{qlstm_forward.1} parent=0 // pred_check
    _
  $region15: #{qlstm_forward.1} parent=0 // pred_check_branch
    %20 = sbr.rel (0) target = $region17
  $region16: #{qlstm_forward.1} parent=0 // pred_region
    _
  $region17: #{qlstm_forward.1} parent=0 // pred_fallthru
    _
  // Predicated region
  $region18: #{qlstm_forward.1} parent=0 // pred_check
    _
  $region19: #{qlstm_forward.1} parent=0 // pred_check_branch
    %22 = sbr.rel (0) target = $region21
  $region20: #{qlstm_forward.1} parent=0 // pred_region
    _
  $region21: #{qlstm_forward.1} parent=0 // pred_fallthru
    _
  // Predicated region
  $region22: #{qlstm_forward.1} parent=0 // pred_check
    _
  $region23: #{qlstm_forward.1} parent=0 // pred_check_branch
    %24 = sbr.rel (0) target = $region25
  $region24: #{qlstm_forward.1} parent=0 // pred_region
    _
  $region25: #{qlstm_forward.1} parent=0 // pred_fallthru
    _
  %v25 = vld [vmem:[%s1] sm:$0xff]
  %v26 = vld [vmem:[%s1 + $0x8] sm:$0xff]
  %v27 = vld [vmem:[%s1 + $0x10] sm:$0xff]
  %v28 = vld [vmem:[%s1 + $0x18] sm:$0xff]
  %v29 = vld [vmem:[%s2] sm:$0xff]
  %v30 = vld [vmem:[%s3] sm:$0x1]
  %v31 = vld [vmem:[%s4] sm:$0xff]
  %v32 = vld [vmem:[%s4 + $0x8] sm:$0xff]
  %v33 = vld [vmem:[%s5] sm:$0x1]
  %v34 = vld [vmem:[%s0] sm:$0xff]
  %vm35 = vcmask 64512
  %v37 = vsel %vm35, %v34, 0
  %39 = vmatprep.subr.mxu0 0.0
  %40 = vmatpush1.msra.mxu0 %v29
  %41 = vmatprep.subr.mxu0 0.0
  %42 = vmatpush1.msra.mxu0 0.0
  %43 = vmatprep.subr.mxu0 0.0
  %44 = vmatpush1.msra.mxu0 0.0
  %45 = vmatprep.subr.mxu0 0.0
  %46 = vmatpush1.msra.mxu0 0.0
  %47 = vmatprep.subr.mxu0 0.0
  %48 = vmatpush1.msra.mxu0 0.0
  %49 = vmatprep.subr.mxu0 0.0
  %50 = vmatpush1.msra.mxu0 0.0
  %51 = vmatprep.subr.mxu0 0.0
  %52 = vmatpush1.msra.mxu0 0.0
  %53 = vmatprep.subr.mxu0 0.0
  %54 = vmatpush1.msra.mxu0 0.0
  %55 = vmatprep.subr.mxu0 0.0
  %56 = vmatpush1.msra.mxu0 0.0
  %57 = vmatprep.subr.mxu0 0.0
  %58 = vmatpush1.msra.mxu0 0.0
  %59 = vmatprep.subr.mxu0 0.0
  %60 = vmatpush1.msra.mxu0 0.0
  %61 = vmatprep.subr.mxu0 0.0
  %62 = vmatpush1.msra.mxu0 0.0
  %63 = vmatprep.subr.mxu0 0.0
  %64 = vmatpush1.msra.mxu0 0.0
  %65 = vmatprep.subr.mxu0 0.0
  %66 = vmatpush1.msra.mxu0 0.0
  %67 = vmatprep.subr.mxu0 0.0
  %68 = vmatpush1.msra.mxu0 0.0
  %69 = vmatprep.subr.mxu0 0.0
  %70 = vmatpush1.msra.mxu0 0.0
  %71 = vmatprep.subr.mxu0 0.0
  %72 = vmatpush1.msra.mxu0 0.0
  %73 = vmatprep.subr.mxu0 0.0
  %74 = vmatpush1.msra.mxu0 0.0
  %75 = vmatprep.subr.mxu0 0.0
  %76 = vmatpush1.msra.mxu0 0.0
  %77 = vmatprep.subr.mxu0 0.0
  %78 = vmatpush1.msra.mxu0 0.0
  %79 = vmatprep.subr.mxu0 0.0
  %80 = vmatpush1.msra.mxu0 0.0
  %81 = vmatprep.subr.mxu0 0.0
  %82 = vmatpush1.msra.mxu0 0.0
  %83 = vmatprep.subr.mxu0 0.0
  %84 = vmatpush1.msra.mxu0 0.0
  %85 = vmatprep.subr.mxu0 0.0
  %86 = vmatpush1.msra.mxu0 0.0
  %87 = vmatprep.subr.mxu0 0.0
  %88 = vmatpush1.msra.mxu0 0.0
  %89 = vmatprep.subr.mxu0 0.0
  %90 = vmatpush1.msra.mxu0 0.0
  %91 = vmatprep.subr.mxu0 0.0
  %92 = vmatpush1.msra.mxu0 0.0
  %93 = vmatprep.subr.mxu0 0.0
  %94 = vmatpush1.msra.mxu0 0.0
  %95 = vmatprep.subr.mxu0 0.0
  %96 = vmatpush1.msra.mxu0 0.0
  %97 = vmatprep.subr.mxu0 0.0
  %98 = vmatpush1.msra.mxu0 0.0
  %99 = vmatprep.subr.mxu0 0.0
  %100 = vmatpush1.msra.mxu0 0.0
  %101 = vmatprep.subr.mxu0 0.0
  %102 = vmatpush1.msra.mxu0 0.0
  %103 = vmatprep.mubr.f32.mxu0 0.0
  %104 = vmatmul.mubr.f32.gmra.mrb[0].mxu0 %v37
  %v105 = vpop.f32.mrb[0].mxu0
  %v106 = vadd.f32 0.0, %v105
  %v107 = vpop.f32.mrb[0].mxu0
  %108 = vdwg.mxu0
  %vm109 = vcmask 261120
  %v111 = vsel %vm109, 0.0, 0
  %113 = vmatprep.subr.mxu0 0.0
  %114 = vmatpush1.msra.mxu0 %v25
  %115 = vmatprep.subr.mxu0 0.0
  %116 = vmatpush1.msra.mxu0 %v26
  %117 = vmatprep.subr.mxu0 0.0
  %118 = vmatpush1.msra.mxu0 %v27
  %119 = vmatprep.subr.mxu0 0.0
  %120 = vmatpush1.msra.mxu0 %v28
  %121 = vmatprep.subr.mxu0 0.0
  %122 = vmatpush1.msra.mxu0 0.0
  %123 = vmatprep.subr.mxu0 0.0
  %124 = vmatpush1.msra.mxu0 0.0
  %125 = vmatprep.subr.mxu0 0.0
  %126 = vmatpush1.msra.mxu0 0.0
  %127 = vmatprep.subr.mxu0 0.0
  %128 = vmatpush1.msra.mxu0 0.0
  %129 = vmatprep.subr.mxu0 0.0
  %130 = vmatpush1.msra.mxu0 0.0
  %131 = vmatprep.subr.mxu0 0.0
  %132 = vmatpush1.msra.mxu0 0.0
  %133 = vmatprep.subr.mxu0 0.0
  %134 = vmatpush1.msra.mxu0 0.0
  %135 = vmatprep.subr.mxu0 0.0
  %136 = vmatpush1.msra.mxu0 0.0
  %137 = vmatprep.subr.mxu0 0.0
  %138 = vmatpush1.msra.mxu0 0.0
  %139 = vmatprep.subr.mxu0 0.0
  %140 = vmatpush1.msra.mxu0 0.0
  %141 = vmatprep.subr.mxu0 0.0
  %142 = vmatpush1.msra.mxu0 0.0
  %143 = vmatprep.subr.mxu0 0.0
  %144 = vmatpush1.msra.mxu0 0.0
  %145 = vmatprep.subr.mxu0 0.0
  %146 = vmatpush1.msra.mxu0 0.0
  %147 = vmatprep.subr.mxu0 0.0
  %148 = vmatpush1.msra.mxu0 0.0
  %149 = vmatprep.subr.mxu0 0.0
  %150 = vmatpush1.msra.mxu0 0.0
  %151 = vmatprep.subr.mxu0 0.0
  %152 = vmatpush1.msra.mxu0 0.0
  %153 = vmatprep.subr.mxu0 0.0
  %154 = vmatpush1.msra.mxu0 0.0
  %155 = vmatprep.subr.mxu0 0.0
  %156 = vmatpush1.msra.mxu0 0.0
  %157 = vmatprep.subr.mxu0 0.0
  %158 = vmatpush1.msra.mxu0 0.0
  %159 = vmatprep.subr.mxu0 0.0
  %160 = vmatpush1.msra.mxu0 0.0
  %161 = vmatprep.subr.mxu0 0.0
  %162 = vmatpush1.msra.mxu0 0.0
  %163 = vmatprep.subr.mxu0 0.0
  %164 = vmatpush1.msra.mxu0 0.0
  %165 = vmatprep.subr.mxu0 0.0
  %166 = vmatpush1.msra.mxu0 0.0
  %167 = vmatprep.subr.mxu0 0.0
  %168 = vmatpush1.msra.mxu0 0.0
  %169 = vmatprep.subr.mxu0 0.0
  %170 = vmatpush1.msra.mxu0 0.0
  %171 = vmatprep.subr.mxu0 0.0
  %172 = vmatpush1.msra.mxu0 0.0
  %173 = vmatprep.subr.mxu0 0.0
  %174 = vmatpush1.msra.mxu0 0.0
  %175 = vmatprep.subr.mxu0 0.0
  %176 = vmatpush1.msra.mxu0 0.0
  %177 = vmatprep.mubr.f32.mxu0 0.0
  %178 = vmatmul.mubr.f32.gmra.mrb[0].mxu0 %v111
  %v179 = vpop.f32.mrb[0].mxu0
  %v180 = vadd.f32 %v106, %v179
  %v181 = vpop.f32.mrb[0].mxu0
  %182 = vdwg.mxu0
  %v184 = vlaneseq
  %v185 = vshrl.u32 %v184, 7
  %v186 = vsub.s32 0, %v185
  %v187 = vrot.slane %v30, %v186
  %v189 = vadd.f32 %v180, %v187
  %v190 = vand.u32 2147483647, %v189
  %vm191 = vcmp.le.f32.partialorder %v190, 0.7853982
  %vm192 = vcmp.lt.s32.totalorder %v189, 0
  %v193 = vand.u32 %v189, 2139095040
  %v194 = vshrl.u32 %v193, 23
  %v195 = vsub.s32 %v194, 127
  %v196 = vand.u32 2147483647, %v189
  %v197 = vand.u32 %v196, 8388607
  %v198 = vor.u32 %v197, 8388608
  %v199 = vsub.s32 0, %v198
  %v200 = vadd.s32 %v195, 1
  %vm201 = vcmp.gt.s32.totalorder %v200, 0
  %v202 = vsel %vm201, %v200, 0
  %v203 = vshrl.u32 %v202, 5
  %v204 = vand.u32 %v202, 31
  %v205 = vsub.s32 32, %v204
  %v206 = vshrl.u32 683565275, %v205
  %v207 = vshll.u32 683565275, %v204
  %v208 = vshrl.u32 2475754826, %v205
  %v209 = vor.u32 %v207, %v208
  %v210 = vshll.u32 2475754826, %v204
  %v211 = vshrl.u32 2131351028, %v205
  %v212 = vor.u32 %v210, %v211
  %v213 = vshll.u32 2131351028, %v204
  %v214 = vshrl.u32 2102212464, %v205
  %v215 = vor.u32 %v213, %v214
  %v216 = vshll.u32 2102212464, %v204
  %v217 = vshrl.u32 920167782, %v205
  %v218 = vor.u32 %v216, %v217
  %v219 = vshll.u32 920167782, %v204
  %v220 = vshrl.u32 1326507024, %v205
  %v221 = vor.u32 %v219, %v220
  %vm222 = vcmp.lt.s32.totalorder %v203, 1
  %vm223 = vcmp.lt.s32.totalorder %v203, 2
  %vm224 = vcmp.lt.s32.totalorder %v203, 3
  %vm225 = vcmp.lt.s32.totalorder %v203, 4
  %v226 = vsel %vm222, %v206, %v209
  %v227 = vsel %vm225, %v215, 2102212464
  %v228 = vsel %vm224, %v212, %v227
  %v229 = vsel %vm223, %v226, %v228
  %v230 = vsel %vm222, %v209, %v212
  %v231 = vsel %vm225, %v218, 920167782
  %v232 = vsel %vm224, %v215, %v231
  %v233 = vsel %vm223, %v230, %v232
  %v234 = vsel %vm222, %v212, %v215
  %v235 = vsel %vm225, %v221, 1326507024
  %v236 = vsel %vm224, %v218, %v235
  %v237 = vsel %vm223, %v234, %v236
  %v238 = vshll.u32 %v198, 8
  %v239 = vmul.u32.u64.compose %v238, %v237
  %v240 = vextract.low.u32 %v239
  %v241 = vextract.high.u32 %v239
  %v242 = vmul.u32.u64.compose %v238, %v233
  %v243 = vextract.low.u32 %v242
  %v244 = vextract.high.u32 %v242
  %v245 = vmul.u32 %v238, %v229
  %v246 = vadd.s32 %v241, %v243
  %vm247 = vc.u32 %v241, %v243
  %v248 = vadd.s32 %v244, 1
  %v249 = vsel %vm247, %v248, %v244
  %v250 = vadd.s32 %v245, %v249
  %v251 = vadd.s32 %v250, 536870912
  %v252 = vshrl.u32 %v251, 30
  %v253 = vshll.u32 %v252, 30
  %v254 = vsub.s32 %v250, %v253
  %vm255 = vcmp.lt.s32.totalorder %v254, 0
  %v256 = vsub.s32 0, %v254
  %v257 = vsel %vm255, %v256, %v254
  %v258 = vclz %v257
  %v259 = vsub.s32 %v258, 2
  %vm260 = vcmp.gt.s32.totalorder 0, %v259
  %v261 = vsel %vm260, 0, %v259
  %v262 = vsub.s32 32, %v261
  %v263 = vshll.u32 %v254, %v261
  %v264 = vshrl.u32 %v246, %v262
  %v265 = vor.u32 %v263, %v264
  %v266 = vsub.s32 4294967266, %v261
  %v267 = vadd.s32 %v266, 127
  %v268 = vshll.u32 %v267, 23
  %v269 = vor.u32 4788187, %v268
  %v270 = vand.u32 2147483647, %v269
  %v272 = vcvt.s32.f32 %v265
  %v273 = vmul.f32 %v272, %v270
  %v274 = vxor.u32 %v273, 2147483648
  %v275 = vsel %vm192, %v274, %v273
  %v276 = vsub.s32 4, %v252
  %v277 = vsel %vm192, %v276, %v252
  %v278 = vsel %vm191, %v189, %v275
  %v279 = vsel %vm191, 0, %v277
  %v280 = vcosq.f32.pop %v278
  %v281 = vsinq.f32.pop %v278
  %vm282 = vweird.f32 %v189
  %v283 = vand.u32 %v279, 3
  %vm284 = vcmp.lt.s32.totalorder %v283, 2
  %vm285 = vcmp.eq.s32.totalorder %v283, 0
  %v286 = vxor.u32 %v281, 2147483648
  %v287 = vsel %vm285, %v280, %v286
  %vm288 = vcmp.eq.s32.totalorder %v283, 2
  %v289 = vxor.u32 %v280, 2147483648
  %v290 = vsel %vm288, %v289, %v281
  %v291 = vsel %vm284, %v287, %v290
  %v292 = vsel %vm282, nan, %v291
  %v294 = vlaneseq
  %v295 = vshrl.u32 %v294, 7
  %v296 = vsub.s32 0, %v295
  %v297 = vrot.slane %v33, %v296
  %vm299 = vcmask 130048
  %v301 = vsel %vm299, %v292, 0
  %303 = vmatprep.subr.mxu0 0.0
  %304 = vmatpush1.msra.mxu0 %v31
  %305 = vmatprep.subr.mxu0 0.0
  %306 = vmatpush1.msra.mxu0 %v32
  %307 = vmatprep.subr.mxu0 0.0
  %308 = vmatpush1.msra.mxu0 0.0
  %309 = vmatprep.subr.mxu0 0.0
  %310 = vmatpush1.msra.mxu0 0.0
  %311 = vmatprep.subr.mxu0 0.0
  %312 = vmatpush1.msra.mxu0 0.0
  %313 = vmatprep.subr.mxu0 0.0
  %314 = vmatpush1.msra.mxu0 0.0
  %315 = vmatprep.subr.mxu0 0.0
  %316 = vmatpush1.msra.mxu0 0.0
  %317 = vmatprep.subr.mxu0 0.0
  %318 = vmatpush1.msra.mxu0 0.0
  %319 = vmatprep.subr.mxu0 0.0
  %320 = vmatpush1.msra.mxu0 0.0
  %321 = vmatprep.subr.mxu0 0.0
  %322 = vmatpush1.msra.mxu0 0.0
  %323 = vmatprep.subr.mxu0 0.0
  %324 = vmatpush1.msra.mxu0 0.0
  %325 = vmatprep.subr.mxu0 0.0
  %326 = vmatpush1.msra.mxu0 0.0
  %327 = vmatprep.subr.mxu0 0.0
  %328 = vmatpush1.msra.mxu0 0.0
  %329 = vmatprep.subr.mxu0 0.0
  %330 = vmatpush1.msra.mxu0 0.0
  %331 = vmatprep.subr.mxu0 0.0
  %332 = vmatpush1.msra.mxu0 0.0
  %333 = vmatprep.subr.mxu0 0.0
  %334 = vmatpush1.msra.mxu0 0.0
  %335 = vmatprep.subr.mxu0 0.0
  %336 = vmatpush1.msra.mxu0 0.0
  %337 = vmatprep.subr.mxu0 0.0
  %338 = vmatpush1.msra.mxu0 0.0
  %339 = vmatprep.subr.mxu0 0.0
  %340 = vmatpush1.msra.mxu0 0.0
  %341 = vmatprep.subr.mxu0 0.0
  %342 = vmatpush1.msra.mxu0 0.0
  %343 = vmatprep.subr.mxu0 0.0
  %344 = vmatpush1.msra.mxu0 0.0
  %345 = vmatprep.subr.mxu0 0.0
  %346 = vmatpush1.msra.mxu0 0.0
  %347 = vmatprep.subr.mxu0 0.0
  %348 = vmatpush1.msra.mxu0 0.0
  %349 = vmatprep.subr.mxu0 0.0
  %350 = vmatpush1.msra.mxu0 0.0
  %351 = vmatprep.subr.mxu0 0.0
  %352 = vmatpush1.msra.mxu0 0.0
  %353 = vmatprep.subr.mxu0 0.0
  %354 = vmatpush1.msra.mxu0 0.0
  %355 = vmatprep.subr.mxu0 0.0
  %356 = vmatpush1.msra.mxu0 0.0
  %357 = vmatprep.subr.mxu0 0.0
  %358 = vmatpush1.msra.mxu0 0.0
  %359 = vmatprep.subr.mxu0 0.0
  %360 = vmatpush1.msra.mxu0 0.0
  %361 = vmatprep.subr.mxu0 0.0
  %362 = vmatpush1.msra.mxu0 0.0
  %363 = vmatprep.subr.mxu0 0.0
  %364 = vmatpush1.msra.mxu0 0.0
  %365 = vmatprep.subr.mxu0 0.0
  %366 = vmatpush1.msra.mxu0 0.0
  %367 = vmatprep.mubr.f32.mxu0 0.0
  %368 = vmatmul.mubr.f32.gmra.mrb[0].mxu0 %v301
  %v369 = vpop.f32.mrb[0].mxu0
  %v370 = vadd.f32 %v297, %v369
  %v371 = vpop.f32.mrb[0].mxu0
  %372 = vdwg.mxu0
  %v373 = vxor.u32 %v370, 2147483648
  %v374 = vmul.f32 %v373, 1.442695
  %v375 = vpow.pop %v374
  %v376 = vadd.f32 %v375, 1.0
  %v377 = vrcp.pop %v376
  %v378 = vmul.f32 1.0, %v377
  %v379 = vtanh.pop %v370
  %v380 = vmul.f32 %v378, 0.0
  %382 = vrot.lane.b32.xlu0 %v379, 96
  %v383 = vpop.permute.xlu0 %382
  %v385 = vmul.f32 %v378, %v383
  %387 = vrot.lane.b32.xlu0 %v385, 96
  %v388 = vpop.permute.xlu0 %387
  %v390 = vadd.f32 %v380, %v388
  %v391 = vtanh.pop %v390
  %393 = vrot.lane.b32.xlu0 %v391, 96
  %v394 = vpop.permute.xlu0 %393
  %v396 = vmul.f32 %v378, %v394
  %398 = vrot.lane.b32.xlu0 %v396, 32
  %v399 = vpop.permute.xlu0 %398
  %401 = vst.msk [vmem:[%s6] sm:$0xff] %vm109, %v399
  %s402 = scalar_lea.vmem %s0, 8
  %v403 = vld [vmem:[%s402] sm:$0xff]
  %v405 = vsel %vm35, %v403, 0
  %407 = vmatprep.subr.mxu0 0.0
  %408 = vmatpush1.msra.mxu0 %v29
  %409 = vmatprep.subr.mxu0 0.0
  %410 = vmatpush1.msra.mxu0 0.0
  %411 = vmatprep.subr.mxu0 0.0
  %412 = vmatpush1.msra.mxu0 0.0
  %413 = vmatprep.subr.mxu0 0.0
  %414 = vmatpush1.msra.mxu0 0.0
  %415 = vmatprep.subr.mxu0 0.0
  %416 = vmatpush1.msra.mxu0 0.0
  %417 = vmatprep.subr.mxu0 0.0
  %418 = vmatpush1.msra.mxu0 0.0
  %419 = vmatprep.subr.mxu0 0.0
  %420 = vmatpush1.msra.mxu0 0.0
  %421 = vmatprep.subr.mxu0 0.0
  %422 = vmatpush1.msra.mxu0 0.0
  %423 = vmatprep.subr.mxu0 0.0
  %424 = vmatpush1.msra.mxu0 0.0
  %425 = vmatprep.subr.mxu0 0.0
  %426 = vmatpush1.msra.mxu0 0.0
  %427 = vmatprep.subr.mxu0 0.0
  %428 = vmatpush1.msra.mxu0 0.0
  %429 = vmatprep.subr.mxu0 0.0
  %430 = vmatpush1.msra.mxu0 0.0
  %431 = vmatprep.subr.mxu0 0.0
  %432 = vmatpush1.msra.mxu0 0.0
  %433 = vmatprep.subr.mxu0 0.0
  %434 = vmatpush1.msra.mxu0 0.0
  %435 = vmatprep.subr.mxu0 0.0
  %436 = vmatpush1.msra.mxu0 0.0
  %437 = vmatprep.subr.mxu0 0.0
  %438 = vmatpush1.msra.mxu0 0.0
  %439 = vmatprep.subr.mxu0 0.0
  %440 = vmatpush1.msra.mxu0 0.0
  %441 = vmatprep.subr.mxu0 0.0
  %442 = vmatpush1.msra.mxu0 0.0
  %443 = vmatprep.subr.mxu0 0.0
  %444 = vmatpush1.msra.mxu0 0.0
  %445 = vmatprep.subr.mxu0 0.0
  %446 = vmatpush1.msra.mxu0 0.0
  %447 = vmatprep.subr.mxu0 0.0
  %448 = vmatpush1.msra.mxu0 0.0
  %449 = vmatprep.subr.mxu0 0.0
  %450 = vmatpush1.msra.mxu0 0.0
  %451 = vmatprep.subr.mxu0 0.0
  %452 = vmatpush1.msra.mxu0 0.0
  %453 = vmatprep.subr.mxu0 0.0
  %454 = vmatpush1.msra.mxu0 0.0
  %455 = vmatprep.subr.mxu0 0.0
  %456 = vmatpush1.msra.mxu0 0.0
  %457 = vmatprep.subr.mxu0 0.0
  %458 = vmatpush1.msra.mxu0 0.0
  %459 = vmatprep.subr.mxu0 0.0
  %460 = vmatpush1.msra.mxu0 0.0
  %461 = vmatprep.subr.mxu0 0.0
  %462 = vmatpush1.msra.mxu0 0.0
  %463 = vmatprep.subr.mxu0 0.0
  %464 = vmatpush1.msra.mxu0 0.0
  %465 = vmatprep.subr.mxu0 0.0
  %466 = vmatpush1.msra.mxu0 0.0
  %467 = vmatprep.subr.mxu0 0.0
  %468 = vmatpush1.msra.mxu0 0.0
  %469 = vmatprep.subr.mxu0 0.0
  %470 = vmatpush1.msra.mxu0 0.0
  %471 = vmatprep.mubr.f32.mxu0 0.0
  %472 = vmatmul.mubr.f32.gmra.mrb[0].mxu0 %v405
  %v473 = vpop.f32.mrb[0].mxu0
  %v474 = vadd.f32 0.0, %v473
  %v475 = vpop.f32.mrb[0].mxu0
  %476 = vdwg.mxu0
  %v477 = vsel %vm109, %v399, 0
  %479 = vmatprep.subr.mxu0 0.0
  %480 = vmatpush1.msra.mxu0 %v25
  %481 = vmatprep.subr.mxu0 0.0
  %482 = vmatpush1.msra.mxu0 %v26
  %483 = vmatprep.subr.mxu0 0.0
  %484 = vmatpush1.msra.mxu0 %v27
  %485 = vmatprep.subr.mxu0 0.0
  %486 = vmatpush1.msra.mxu0 %v28
  %487 = vmatprep.subr.mxu0 0.0
  %488 = vmatpush1.msra.mxu0 0.0
  %489 = vmatprep.subr.mxu0 0.0
  %490 = vmatpush1.msra.mxu0 0.0
  %491 = vmatprep.subr.mxu0 0.0
  %492 = vmatpush1.msra.mxu0 0.0
  %493 = vmatprep.subr.mxu0 0.0
  %494 = vmatpush1.msra.mxu0 0.0
  %495 = vmatprep.subr.mxu0 0.0
  %496 = vmatpush1.msra.mxu0 0.0
  %497 = vmatprep.subr.mxu0 0.0
  %498 = vmatpush1.msra.mxu0 0.0
  %499 = vmatprep.subr.mxu0 0.0
  %500 = vmatpush1.msra.mxu0 0.0
  %501 = vmatprep.subr.mxu0 0.0
  %502 = vmatpush1.msra.mxu0 0.0
  %503 = vmatprep.subr.mxu0 0.0
  %504 = vmatpush1.msra.mxu0 0.0
  %505 = vmatprep.subr.mxu0 0.0
  %506 = vmatpush1.msra.mxu0 0.0
  %507 = vmatprep.subr.mxu0 0.0
  %508 = vmatpush1.msra.mxu0 0.0
  %509 = vmatprep.subr.mxu0 0.0
  %510 = vmatpush1.msra.mxu0 0.0
  %511 = vmatprep.subr.mxu0 0.0
  %512 = vmatpush1.msra.mxu0 0.0
  %513 = vmatprep.subr.mxu0 0.0
  %514 = vmatpush1.msra.mxu0 0.0
  %515 = vmatprep.subr.mxu0 0.0
  %516 = vmatpush1.msra.mxu0 0.0
  %517 = vmatprep.subr.mxu0 0.0
  %518 = vmatpush1.msra.mxu0 0.0
  %519 = vmatprep.subr.mxu0 0.0
  %520 = vmatpush1.msra.mxu0 0.0
  %521 = vmatprep.subr.mxu0 0.0
  %522 = vmatpush1.msra.mxu0 0.0
  %523 = vmatprep.subr.mxu0 0.0
  %524 = vmatpush1.msra.mxu0 0.0
  %525 = vmatprep.subr.mxu0 0.0
  %526 = vmatpush1.msra.mxu0 0.0
  %527 = vmatprep.subr.mxu0 0.0
  %528 = vmatpush1.msra.mxu0 0.0
  %529 = vmatprep.subr.mxu0 0.0
  %530 = vmatpush1.msra.mxu0 0.0
  %531 = vmatprep.subr.mxu0 0.0
  %532 = vmatpush1.msra.mxu0 0.0
  %533 = vmatprep.subr.mxu0 0.0
  %534 = vmatpush1.msra.mxu0 0.0
  %535 = vmatprep.subr.mxu0 0.0
  %536 = vmatpush1.msra.mxu0 0.0
  %537 = vmatprep.subr.mxu0 0.0
  %538 = vmatpush1.msra.mxu0 0.0
  %539 = vmatprep.subr.mxu0 0.0
  %540 = vmatpush1.msra.mxu0 0.0
  %541 = vmatprep.subr.mxu0 0.0
  %542 = vmatpush1.msra.mxu0 0.0
  %543 = vmatprep.mubr.f32.mxu0 0.0
  %544 = vmatmul.mubr.f32.gmra.mrb[0].mxu0 %v477
  %v545 = vpop.f32.mrb[0].mxu0
  %v546 = vadd.f32 %v474, %v545
  %v547 = vpop.f32.mrb[0].mxu0
  %548 = vdwg.mxu0
  %v549 = vadd.f32 %v546, %v187
  %v550 = vand.u32 2147483647, %v549
  %vm551 = vcmp.le.f32.partialorder %v550, 0.7853982
  %vm552 = vcmp.lt.s32.totalorder %v549, 0
  %v553 = vand.u32 %v549, 2139095040
  %v554 = vshrl.u32 %v553, 23
  %v555 = vsub.s32 %v554, 127
  %v556 = vand.u32 2147483647, %v549
  %v557 = vand.u32 %v556, 8388607
  %v558 = vor.u32 %v557, 8388608
  %v559 = vsub.s32 0, %v558
  %v560 = vadd.s32 %v555, 1
  %vm561 = vcmp.gt.s32.totalorder %v560, 0
  %v562 = vsel %vm561, %v560, 0
  %v563 = vshrl.u32 %v562, 5
  %v564 = vand.u32 %v562, 31
  %v565 = vsub.s32 32, %v564
  %v566 = vshrl.u32 683565275, %v565
  %v567 = vshll.u32 683565275, %v564
  %v568 = vshrl.u32 2475754826, %v565
  %v569 = vor.u32 %v567, %v568
  %v570 = vshll.u32 2475754826, %v564
  %v571 = vshrl.u32 2131351028, %v565
  %v572 = vor.u32 %v570, %v571
  %v573 = vshll.u32 2131351028, %v564
  %v574 = vshrl.u32 2102212464, %v565
  %v575 = vor.u32 %v573, %v574
  %v576 = vshll.u32 2102212464, %v564
  %v577 = vshrl.u32 920167782, %v565
  %v578 = vor.u32 %v576, %v577
  %v579 = vshll.u32 920167782, %v564
  %v580 = vshrl.u32 1326507024, %v565
  %v581 = vor.u32 %v579, %v580
  %vm582 = vcmp.lt.s32.totalorder %v563, 1
  %vm583 = vcmp.lt.s32.totalorder %v563, 2
  %vm584 = vcmp.lt.s32.totalorder %v563, 3
  %vm585 = vcmp.lt.s32.totalorder %v563, 4
  %v586 = vsel %vm582, %v566, %v569
  %v587 = vsel %vm585, %v575, 2102212464
  %v588 = vsel %vm584, %v572, %v587
  %v589 = vsel %vm583, %v586, %v588
  %v590 = vsel %vm582, %v569, %v572
  %v591 = vsel %vm585, %v578, 920167782
  %v592 = vsel %vm584, %v575, %v591
  %v593 = vsel %vm583, %v590, %v592
  %v594 = vsel %vm582, %v572, %v575
  %v595 = vsel %vm585, %v581, 1326507024
  %v596 = vsel %vm584, %v578, %v595
  %v597 = vsel %vm583, %v594, %v596
  %v598 = vshll.u32 %v558, 8
  %v599 = vmul.u32.u64.compose %v598, %v597
  %v600 = vextract.low.u32 %v599
  %v601 = vextract.high.u32 %v599
  %v602 = vmul.u32.u64.compose %v598, %v593
  %v603 = vextract.low.u32 %v602
  %v604 = vextract.high.u32 %v602
  %v605 = vmul.u32 %v598, %v589
  %v606 = vadd.s32 %v601, %v603
  %vm607 = vc.u32 %v601, %v603
  %v608 = vadd.s32 %v604, 1
  %v609 = vsel %vm607, %v608, %v604
  %v610 = vadd.s32 %v605, %v609
  %v611 = vadd.s32 %v610, 536870912
  %v612 = vshrl.u32 %v611, 30
  %v613 = vshll.u32 %v612, 30
  %v614 = vsub.s32 %v610, %v613
  %vm615 = vcmp.lt.s32.totalorder %v614, 0
  %v616 = vsub.s32 0, %v614
  %v617 = vsel %vm615, %v616, %v614
  %v618 = vclz %v617
  %v619 = vsub.s32 %v618, 2
  %vm620 = vcmp.gt.s32.totalorder 0, %v619
  %v621 = vsel %vm620, 0, %v619
  %v622 = vsub.s32 32, %v621
  %v623 = vshll.u32 %v614, %v621
  %v624 = vshrl.u32 %v606, %v622
  %v625 = vor.u32 %v623, %v624
  %v626 = vsub.s32 4294967266, %v621
  %v627 = vadd.s32 %v626, 127
  %v628 = vshll.u32 %v627, 23
  %v629 = vor.u32 4788187, %v628
  %v630 = vand.u32 2147483647, %v629
  %v632 = vcvt.s32.f32 %v625
  %v633 = vmul.f32 %v632, %v630
  %v634 = vxor.u32 %v633, 2147483648
  %v635 = vsel %vm552, %v634, %v633
  %v636 = vsub.s32 4, %v612
  %v637 = vsel %vm552, %v636, %v612
  %v638 = vsel %vm551, %v549, %v635
  %v639 = vsel %vm551, 0, %v637
  %v640 = vcosq.f32.pop %v638
  %v641 = vsinq.f32.pop %v638
  %vm642 = vweird.f32 %v549
  %v643 = vand.u32 %v639, 3
  %vm644 = vcmp.lt.s32.totalorder %v643, 2
  %vm645 = vcmp.eq.s32.totalorder %v643, 0
  %v646 = vxor.u32 %v641, 2147483648
  %v647 = vsel %vm645, %v640, %v646
  %vm648 = vcmp.eq.s32.totalorder %v643, 2
  %v649 = vxor.u32 %v640, 2147483648
  %v650 = vsel %vm648, %v649, %v641
  %v651 = vsel %vm644, %v647, %v650
  %v652 = vsel %vm642, nan, %v651
  %v654 = vsel %vm299, %v652, 0
  %656 = vmatprep.subr.mxu0 0.0
  %657 = vmatpush1.msra.mxu0 %v31
  %658 = vmatprep.subr.mxu0 0.0
  %659 = vmatpush1.msra.mxu0 %v32
  %660 = vmatprep.subr.mxu0 0.0
  %661 = vmatpush1.msra.mxu0 0.0
  %662 = vmatprep.subr.mxu0 0.0
  %663 = vmatpush1.msra.mxu0 0.0
  %664 = vmatprep.subr.mxu0 0.0
  %665 = vmatpush1.msra.mxu0 0.0
  %666 = vmatprep.subr.mxu0 0.0
  %667 = vmatpush1.msra.mxu0 0.0
  %668 = vmatprep.subr.mxu0 0.0
  %669 = vmatpush1.msra.mxu0 0.0
  %670 = vmatprep.subr.mxu0 0.0
  %671 = vmatpush1.msra.mxu0 0.0
  %672 = vmatprep.subr.mxu0 0.0
  %673 = vmatpush1.msra.mxu0 0.0
  %674 = vmatprep.subr.mxu0 0.0
  %675 = vmatpush1.msra.mxu0 0.0
  %676 = vmatprep.subr.mxu0 0.0
  %677 = vmatpush1.msra.mxu0 0.0
  %678 = vmatprep.subr.mxu0 0.0
  %679 = vmatpush1.msra.mxu0 0.0
  %680 = vmatprep.subr.mxu0 0.0
  %681 = vmatpush1.msra.mxu0 0.0
  %682 = vmatprep.subr.mxu0 0.0
  %683 = vmatpush1.msra.mxu0 0.0
  %684 = vmatprep.subr.mxu0 0.0
  %685 = vmatpush1.msra.mxu0 0.0
  %686 = vmatprep.subr.mxu0 0.0
  %687 = vmatpush1.msra.mxu0 0.0
  %688 = vmatprep.subr.mxu0 0.0
  %689 = vmatpush1.msra.mxu0 0.0
  %690 = vmatprep.subr.mxu0 0.0
  %691 = vmatpush1.msra.mxu0 0.0
  %692 = vmatprep.subr.mxu0 0.0
  %693 = vmatpush1.msra.mxu0 0.0
  %694 = vmatprep.subr.mxu0 0.0
  %695 = vmatpush1.msra.mxu0 0.0
  %696 = vmatprep.subr.mxu0 0.0
  %697 = vmatpush1.msra.mxu0 0.0
  %698 = vmatprep.subr.mxu0 0.0
  %699 = vmatpush1.msra.mxu0 0.0
  %700 = vmatprep.subr.mxu0 0.0
  %701 = vmatpush1.msra.mxu0 0.0
  %702 = vmatprep.subr.mxu0 0.0
  %703 = vmatpush1.msra.mxu0 0.0
  %704 = vmatprep.subr.mxu0 0.0
  %705 = vmatpush1.msra.mxu0 0.0
  %706 = vmatprep.subr.mxu0 0.0
  %707 = vmatpush1.msra.mxu0 0.0
  %708 = vmatprep.subr.mxu0 0.0
  %709 = vmatpush1.msra.mxu0 0.0
  %710 = vmatprep.subr.mxu0 0.0
  %711 = vmatpush1.msra.mxu0 0.0
  %712 = vmatprep.subr.mxu0 0.0
  %713 = vmatpush1.msra.mxu0 0.0
  %714 = vmatprep.subr.mxu0 0.0
  %715 = vmatpush1.msra.mxu0 0.0
  %716 = vmatprep.subr.mxu0 0.0
  %717 = vmatpush1.msra.mxu0 0.0
  %718 = vmatprep.subr.mxu0 0.0
  %719 = vmatpush1.msra.mxu0 0.0
  %720 = vmatprep.mubr.f32.mxu0 0.0
  %721 = vmatmul.mubr.f32.gmra.mrb[0].mxu0 %v654
  %v722 = vpop.f32.mrb[0].mxu0
  %v723 = vadd.f32 %v297, %v722
  %v724 = vpop.f32.mrb[0].mxu0
  %725 = vdwg.mxu0
  %v726 = vxor.u32 %v723, 2147483648
  %v727 = vmul.f32 %v726, 1.442695
  %v728 = vpow.pop %v727
  %v729 = vadd.f32 %v728, 1.0
  %v730 = vrcp.pop %v729
  %v731 = vmul.f32 1.0, %v730
  %v732 = vtanh.pop %v723
  %v733 = vmul.f32 %v731, %v390
  %735 = vrot.lane.b32.xlu0 %v732, 96
  %v736 = vpop.permute.xlu0 %735
  %v738 = vmul.f32 %v731, %v736
  %740 = vrot.lane.b32.xlu0 %v738, 96
  %v741 = vpop.permute.xlu0 %740
  %v743 = vadd.f32 %v733, %v741
  %v744 = vtanh.pop %v743
  %746 = vrot.lane.b32.xlu0 %v744, 96
  %v747 = vpop.permute.xlu0 %746
  %v749 = vmul.f32 %v731, %v747
  %751 = vrot.lane.b32.xlu0 %v749, 32
  %v752 = vpop.permute.xlu0 %751
  %s754 = scalar_lea.vmem %s6, 8
  %755 = vst.msk [vmem:[%s754] sm:$0xff] %vm109, %v752
  %s756 = scalar_lea.vmem %s0, 16
  %v757 = vld [vmem:[%s756] sm:$0xff]
  %v759 = vsel %vm35, %v757, 0
  %761 = vmatprep.subr.mxu0 0.0
  %762 = vmatpush1.msra.mxu0 %v29
  %763 = vmatprep.subr.mxu0 0.0
  %764 = vmatpush1.msra.mxu0 0.0
  %765 = vmatprep.subr.mxu0 0.0
  %766 = vmatpush1.msra.mxu0 0.0
  %767 = vmatprep.subr.mxu0 0.0
  %768 = vmatpush1.msra.mxu0 0.0
  %769 = vmatprep.subr.mxu0 0.0
  %770 = vmatpush1.msra.mxu0 0.0
  %771 = vmatprep.subr.mxu0 0.0
  %772 = vmatpush1.msra.mxu0 0.0
  %773 = vmatprep.subr.mxu0 0.0
  %774 = vmatpush1.msra.mxu0 0.0
  %775 = vmatprep.subr.mxu0 0.0
  %776 = vmatpush1.msra.mxu0 0.0
  %777 = vmatprep.subr.mxu0 0.0
  %778 = vmatpush1.msra.mxu0 0.0
  %779 = vmatprep.subr.mxu0 0.0
  %780 = vmatpush1.msra.mxu0 0.0
  %781 = vmatprep.subr.mxu0 0.0
  %782 = vmatpush1.msra.mxu0 0.0
  %783 = vmatprep.subr.mxu0 0.0
  %784 = vmatpush1.msra.mxu0 0.0
  %785 = vmatprep.subr.mxu0 0.0
  %786 = vmatpush1.msra.mxu0 0.0
  %787 = vmatprep.subr.mxu0 0.0
  %788 = vmatpush1.msra.mxu0 0.0
  %789 = vmatprep.subr.mxu0 0.0
  %790 = vmatpush1.msra.mxu0 0.0
  %791 = vmatprep.subr.mxu0 0.0
  %792 = vmatpush1.msra.mxu0 0.0
  %793 = vmatprep.subr.mxu0 0.0
  %794 = vmatpush1.msra.mxu0 0.0
  %795 = vmatprep.subr.mxu0 0.0
  %796 = vmatpush1.msra.mxu0 0.0
  %797 = vmatprep.subr.mxu0 0.0
  %798 = vmatpush1.msra.mxu0 0.0
  %799 = vmatprep.subr.mxu0 0.0
  %800 = vmatpush1.msra.mxu0 0.0
  %801 = vmatprep.subr.mxu0 0.0
  %802 = vmatpush1.msra.mxu0 0.0
  %803 = vmatprep.subr.mxu0 0.0
  %804 = vmatpush1.msra.mxu0 0.0
  %805 = vmatprep.subr.mxu0 0.0
  %806 = vmatpush1.msra.mxu0 0.0
  %807 = vmatprep.subr.mxu0 0.0
  %808 = vmatpush1.msra.mxu0 0.0
  %809 = vmatprep.subr.mxu0 0.0
  %810 = vmatpush1.msra.mxu0 0.0
  %811 = vmatprep.subr.mxu0 0.0
  %812 = vmatpush1.msra.mxu0 0.0
  %813 = vmatprep.subr.mxu0 0.0
  %814 = vmatpush1.msra.mxu0 0.0
  %815 = vmatprep.subr.mxu0 0.0
  %816 = vmatpush1.msra.mxu0 0.0
  %817 = vmatprep.subr.mxu0 0.0
  %818 = vmatpush1.msra.mxu0 0.0
  %819 = vmatprep.subr.mxu0 0.0
  %820 = vmatpush1.msra.mxu0 0.0
  %821 = vmatprep.subr.mxu0 0.0
  %822 = vmatpush1.msra.mxu0 0.0
  %823 = vmatprep.subr.mxu0 0.0
  %824 = vmatpush1.msra.mxu0 0.0
  %825 = vmatprep.mubr.f32.mxu0 0.0
  %826 = vmatmul.mubr.f32.gmra.mrb[0].mxu0 %v759
  %v827 = vpop.f32.mrb[0].mxu0
  %v828 = vadd.f32 0.0, %v827
  %v829 = vpop.f32.mrb[0].mxu0
  %830 = vdwg.mxu0
  %v831 = vsel %vm109, %v752, 0
  %833 = vmatprep.subr.mxu0 0.0
  %834 = vmatpush1.msra.mxu0 %v25
  %835 = vmatprep.subr.mxu0 0.0
  %836 = vmatpush1.msra.mxu0 %v26
  %837 = vmatprep.subr.mxu0 0.0
  %838 = vmatpush1.msra.mxu0 %v27
  %839 = vmatprep.subr.mxu0 0.0
  %840 = vmatpush1.msra.mxu0 %v28
  %841 = vmatprep.subr.mxu0 0.0
  %842 = vmatpush1.msra.mxu0 0.0
  %843 = vmatprep.subr.mxu0 0.0
  %844 = vmatpush1.msra.mxu0 0.0
  %845 = vmatprep.subr.mxu0 0.0
  %846 = vmatpush1.msra.mxu0 0.0
  %847 = vmatprep.subr.mxu0 0.0
  %848 = vmatpush1.msra.mxu0 0.0
  %849 = vmatprep.subr.mxu0 0.0
  %850 = vmatpush1.msra.mxu0 0.0
  %851 = vmatprep.subr.mxu0 0.0
  %852 = vmatpush1.msra.mxu0 0.0
  %853 = vmatprep.subr.mxu0 0.0
  %854 = vmatpush1.msra.mxu0 0.0
  %855 = vmatprep.subr.mxu0 0.0
  %856 = vmatpush1.msra.mxu0 0.0
  %857 = vmatprep.subr.mxu0 0.0
  %858 = vmatpush1.msra.mxu0 0.0
  %859 = vmatprep.subr.mxu0 0.0
  %860 = vmatpush1.msra.mxu0 0.0
  %861 = vmatprep.subr.mxu0 0.0
  %862 = vmatpush1.msra.mxu0 0.0
  %863 = vmatprep.subr.mxu0 0.0
  %864 = vmatpush1.msra.mxu0 0.0
  %865 = vmatprep.subr.mxu0 0.0
  %866 = vmatpush1.msra.mxu0 0.0
  %867 = vmatprep.subr.mxu0 0.0
  %868 = vmatpush1.msra.mxu0 0.0
  %869 = vmatprep.subr.mxu0 0.0
  %870 = vmatpush1.msra.mxu0 0.0
  %871 = vmatprep.subr.mxu0 0.0
  %872 = vmatpush1.msra.mxu0 0.0
  %873 = vmatprep.subr.mxu0 0.0
  %874 = vmatpush1.msra.mxu0 0.0
  %875 = vmatprep.subr.mxu0 0.0
  %876 = vmatpush1.msra.mxu0 0.0
  %877 = vmatprep.subr.mxu0 0.0
  %878 = vmatpush1.msra.mxu0 0.0
  %879 = vmatprep.subr.mxu0 0.0
  %880 = vmatpush1.msra.mxu0 0.0
  %881 = vmatprep.subr.mxu0 0.0
  %882 = vmatpush1.msra.mxu0 0.0
  %883 = vmatprep.subr.mxu0 0.0
  %884 = vmatpush1.msra.mxu0 0.0
  %885 = vmatprep.subr.mxu0 0.0
  %886 = vmatpush1.msra.mxu0 0.0
  %887 = vmatprep.subr.mxu0 0.0
  %888 = vmatpush1.msra.mxu0 0.0
  %889 = vmatprep.subr.mxu0 0.0
  %890 = vmatpush1.msra.mxu0 0.0
  %891 = vmatprep.subr.mxu0 0.0
  %892 = vmatpush1.msra.mxu0 0.0
  %893 = vmatprep.subr.mxu0 0.0
  %894 = vmatpush1.msra.mxu0 0.0
  %895 = vmatprep.subr.mxu0 0.0
  %896 = vmatpush1.msra.mxu0 0.0
  %897 = vmatprep.mubr.f32.mxu0 0.0
  %898 = vmatmul.mubr.f32.gmra.mrb[0].mxu0 %v831
  %v899 = vpop.f32.mrb[0].mxu0
  %v900 = vadd.f32 %v828, %v899
  %v901 = vpop.f32.mrb[0].mxu0
  %902 = vdwg.mxu0
  %v903 = vadd.f32 %v900, %v187
  %v904 = vand.u32 2147483647, %v903
  %vm905 = vcmp.le.f32.partialorder %v904, 0.7853982
  %vm906 = vcmp.lt.s32.totalorder %v903, 0
  %v907 = vand.u32 %v903, 2139095040
  %v908 = vshrl.u32 %v907, 23
  %v909 = vsub.s32 %v908, 127
  %v910 = vand.u32 2147483647, %v903
  %v911 = vand.u32 %v910, 8388607
  %v912 = vor.u32 %v911, 8388608
  %v913 = vsub.s32 0, %v912
  %v914 = vadd.s32 %v909, 1
  %vm915 = vcmp.gt.s32.totalorder %v914, 0
  %v916 = vsel %vm915, %v914, 0
  %v917 = vshrl.u32 %v916, 5
  %v918 = vand.u32 %v916, 31
  %v919 = vsub.s32 32, %v918
  %v920 = vshrl.u32 683565275, %v919
  %v921 = vshll.u32 683565275, %v918
  %v922 = vshrl.u32 2475754826, %v919
  %v923 = vor.u32 %v921, %v922
  %v924 = vshll.u32 2475754826, %v918
  %v925 = vshrl.u32 2131351028, %v919
  %v926 = vor.u32 %v924, %v925
  %v927 = vshll.u32 2131351028, %v918
  %v928 = vshrl.u32 2102212464, %v919
  %v929 = vor.u32 %v927, %v928
  %v930 = vshll.u32 2102212464, %v918
  %v931 = vshrl.u32 920167782, %v919
  %v932 = vor.u32 %v930, %v931
  %v933 = vshll.u32 920167782, %v918
  %v934 = vshrl.u32 1326507024, %v919
  %v935 = vor.u32 %v933, %v934
  %vm936 = vcmp.lt.s32.totalorder %v917, 1
  %vm937 = vcmp.lt.s32.totalorder %v917, 2
  %vm938 = vcmp.lt.s32.totalorder %v917, 3
  %vm939 = vcmp.lt.s32.totalorder %v917, 4
  %v940 = vsel %vm936, %v920, %v923
  %v941 = vsel %vm939, %v929, 2102212464
  %v942 = vsel %vm938, %v926, %v941
  %v943 = vsel %vm937, %v940, %v942
  %v944 = vsel %vm936, %v923, %v926
  %v945 = vsel %vm939, %v932, 920167782
  %v946 = vsel %vm938, %v929, %v945
  %v947 = vsel %vm937, %v944, %v946
  %v948 = vsel %vm936, %v926, %v929
  %v949 = vsel %vm939, %v935, 1326507024
  %v950 = vsel %vm938, %v932, %v949
  %v951 = vsel %vm937, %v948, %v950
  %v952 = vshll.u32 %v912, 8
  %v953 = vmul.u32.u64.compose %v952, %v951
  %v954 = vextract.low.u32 %v953
  %v955 = vextract.high.u32 %v953
  %v956 = vmul.u32.u64.compose %v952, %v947
  %v957 = vextract.low.u32 %v956
  %v958 = vextract.high.u32 %v956
  %v959 = vmul.u32 %v952, %v943
  %v960 = vadd.s32 %v955, %v957
  %vm961 = vc.u32 %v955, %v957
  %v962 = vadd.s32 %v958, 1
  %v963 = vsel %vm961, %v962, %v958
  %v964 = vadd.s32 %v959, %v963
  %v965 = vadd.s32 %v964, 536870912
  %v966 = vshrl.u32 %v965, 30
  %v967 = vshll.u32 %v966, 30
  %v968 = vsub.s32 %v964, %v967
  %vm969 = vcmp.lt.s32.totalorder %v968, 0
  %v970 = vsub.s32 0, %v968
  %v971 = vsel %vm969, %v970, %v968
  %v972 = vclz %v971
  %v973 = vsub.s32 %v972, 2
  %vm974 = vcmp.gt.s32.totalorder 0, %v973
  %v975 = vsel %vm974, 0, %v973
  %v976 = vsub.s32 32, %v975
  %v977 = vshll.u32 %v968, %v975
  %v978 = vshrl.u32 %v960, %v976
  %v979 = vor.u32 %v977, %v978
  %v980 = vsub.s32 4294967266, %v975
  %v981 = vadd.s32 %v980, 127
  %v982 = vshll.u32 %v981, 23
  %v983 = vor.u32 4788187, %v982
  %v984 = vand.u32 2147483647, %v983
  %v986 = vcvt.s32.f32 %v979
  %v987 = vmul.f32 %v986, %v984
  %v988 = vxor.u32 %v987, 2147483648
  %v989 = vsel %vm906, %v988, %v987
  %v990 = vsub.s32 4, %v966
  %v991 = vsel %vm906, %v990, %v966
  %v992 = vsel %vm905, %v903, %v989
  %v993 = vsel %vm905, 0, %v991
  %v994 = vcosq.f32.pop %v992
  %v995 = vsinq.f32.pop %v992
  %vm996 = vweird.f32 %v903
  %v997 = vand.u32 %v993, 3
  %vm998 = vcmp.lt.s32.totalorder %v997, 2
  %vm999 = vcmp.eq.s32.totalorder %v997, 0
  %v1000 = vxor.u32 %v995, 2147483648
  %v1001 = vsel %vm999, %v994, %v1000
  %vm1002 = vcmp.eq.s32.totalorder %v997, 2
  %v1003 = vxor.u32 %v994, 2147483648
  %v1004 = vsel %vm1002, %v1003, %v995
  %v1005 = vsel %vm998, %v1001, %v1004
  %v1006 = vsel %vm996, nan, %v1005
  %v1008 = vsel %vm299, %v1006, 0
  %1010 = vmatprep.subr.mxu0 0.0
  %1011 = vmatpush1.msra.mxu0 %v31
  %1012 = vmatprep.subr.mxu0 0.0
  %1013 = vmatpush1.msra.mxu0 %v32
  %1014 = vmatprep.subr.mxu0 0.0
  %1015 = vmatpush1.msra.mxu0 0.0
  %1016 = vmatprep.subr.mxu0 0.0
  %1017 = vmatpush1.msra.mxu0 0.0
  %1018 = vmatprep.subr.mxu0 0.0
  %1019 = vmatpush1.msra.mxu0 0.0
  %1020 = vmatprep.subr.mxu0 0.0
  %1021 = vmatpush1.msra.mxu0 0.0
  %1022 = vmatprep.subr.mxu0 0.0
  %1023 = vmatpush1.msra.mxu0 0.0
  %1024 = vmatprep.subr.mxu0 0.0
  %1025 = vmatpush1.msra.mxu0 0.0
  %1026 = vmatprep.subr.mxu0 0.0
  %1027 = vmatpush1.msra.mxu0 0.0
  %1028 = vmatprep.subr.mxu0 0.0
  %1029 = vmatpush1.msra.mxu0 0.0
  %1030 = vmatprep.subr.mxu0 0.0
  %1031 = vmatpush1.msra.mxu0 0.0
  %1032 = vmatprep.subr.mxu0 0.0
  %1033 = vmatpush1.msra.mxu0 0.0
  %1034 = vmatprep.subr.mxu0 0.0
  %1035 = vmatpush1.msra.mxu0 0.0
  %1036 = vmatprep.subr.mxu0 0.0
  %1037 = vmatpush1.msra.mxu0 0.0
  %1038 = vmatprep.subr.mxu0 0.0
  %1039 = vmatpush1.msra.mxu0 0.0
  %1040 = vmatprep.subr.mxu0 0.0
  %1041 = vmatpush1.msra.mxu0 0.0
  %1042 = vmatprep.subr.mxu0 0.0
  %1043 = vmatpush1.msra.mxu0 0.0
  %1044 = vmatprep.subr.mxu0 0.0
  %1045 = vmatpush1.msra.mxu0 0.0
  %1046 = vmatprep.subr.mxu0 0.0
  %1047 = vmatpush1.msra.mxu0 0.0
  %1048 = vmatprep.subr.mxu0 0.0
  %1049 = vmatpush1.msra.mxu0 0.0
  %1050 = vmatprep.subr.mxu0 0.0
  %1051 = vmatpush1.msra.mxu0 0.0
  %1052 = vmatprep.subr.mxu0 0.0
  %1053 = vmatpush1.msra.mxu0 0.0
  %1054 = vmatprep.subr.mxu0 0.0
  %1055 = vmatpush1.msra.mxu0 0.0
  %1056 = vmatprep.subr.mxu0 0.0
  %1057 = vmatpush1.msra.mxu0 0.0
  %1058 = vmatprep.subr.mxu0 0.0
  %1059 = vmatpush1.msra.mxu0 0.0
  %1060 = vmatprep.subr.mxu0 0.0
  %1061 = vmatpush1.msra.mxu0 0.0
  %1062 = vmatprep.subr.mxu0 0.0
  %1063 = vmatpush1.msra.mxu0 0.0
  %1064 = vmatprep.subr.mxu0 0.0
  %1065 = vmatpush1.msra.mxu0 0.0
  %1066 = vmatprep.subr.mxu0 0.0
  %1067 = vmatpush1.msra.mxu0 0.0
  %1068 = vmatprep.subr.mxu0 0.0
  %1069 = vmatpush1.msra.mxu0 0.0
  %1070 = vmatprep.subr.mxu0 0.0
  %1071 = vmatpush1.msra.mxu0 0.0
  %1072 = vmatprep.subr.mxu0 0.0
  %1073 = vmatpush1.msra.mxu0 0.0
  %1074 = vmatprep.mubr.f32.mxu0 0.0
  %1075 = vmatmul.mubr.f32.gmra.mrb[0].mxu0 %v1008
  %v1076 = vpop.f32.mrb[0].mxu0
  %v1077 = vadd.f32 %v297, %v1076
  %v1078 = vpop.f32.mrb[0].mxu0
  %1079 = vdwg.mxu0
  %v1080 = vxor.u32 %v1077, 2147483648
  %v1081 = vmul.f32 %v1080, 1.442695
  %v1082 = vpow.pop %v1081
  %v1083 = vadd.f32 %v1082, 1.0
  %v1084 = vrcp.pop %v1083
  %v1085 = vmul.f32 1.0, %v1084
  %v1086 = vtanh.pop %v1077
  %v1087 = vmul.f32 %v1085, %v743
  %1089 = vrot.lane.b32.xlu0 %v1086, 96
  %v1090 = vpop.permute.xlu0 %1089
  %v1092 = vmul.f32 %v1085, %v1090
  %1094 = vrot.lane.b32.xlu0 %v1092, 96
  %v1095 = vpop.permute.xlu0 %1094
  %v1097 = vadd.f32 %v1087, %v1095
  %v1098 = vtanh.pop %v1097
  %1100 = vrot.lane.b32.xlu0 %v1098, 96
  %v1101 = vpop.permute.xlu0 %1100
  %v1103 = vmul.f32 %v1085, %v1101
  %1105 = vrot.lane.b32.xlu0 %v1103, 32
  %v1106 = vpop.permute.xlu0 %1105
  %s1108 = scalar_lea.vmem %s6, 16
  %1109 = vst.msk [vmem:[%s1108] sm:$0xff] %vm109, %v1106
  %s1110 = scalar_lea.vmem %s0, 24
  %v1111 = vld [vmem:[%s1110] sm:$0xff]
  %v1113 = vsel %vm35, %v1111, 0
  %1115 = vmatprep.subr.mxu0 0.0
  %1116 = vmatpush1.msra.mxu0 %v29
  %1117 = vmatprep.subr.mxu0 0.0
  %1118 = vmatpush1.msra.mxu0 0.0
  %1119 = vmatprep.subr.mxu0 0.0
  %1120 = vmatpush1.msra.mxu0 0.0
  %1121 = vmatprep.subr.mxu0 0.0
  %1122 = vmatpush1.msra.mxu0 0.0
  %1123 = vmatprep.subr.mxu0 0.0
  %1124 = vmatpush1.msra.mxu0 0.0
  %1125 = vmatprep.subr.mxu0 0.0
  %1126 = vmatpush1.msra.mxu0 0.0
  %1127 = vmatprep.subr.mxu0 0.0
  %1128 = vmatpush1.msra.mxu0 0.0
  %1129 = vmatprep.subr.mxu0 0.0
  %1130 = vmatpush1.msra.mxu0 0.0
  %1131 = vmatprep.subr.mxu0 0.0
  %1132 = vmatpush1.msra.mxu0 0.0
  %1133 = vmatprep.subr.mxu0 0.0
  %1134 = vmatpush1.msra.mxu0 0.0
  %1135 = vmatprep.subr.mxu0 0.0
  %1136 = vmatpush1.msra.mxu0 0.0
  %1137 = vmatprep.subr.mxu0 0.0
  %1138 = vmatpush1.msra.mxu0 0.0
  %1139 = vmatprep.subr.mxu0 0.0
  %1140 = vmatpush1.msra.mxu0 0.0
  %1141 = vmatprep.subr.mxu0 0.0
  %1142 = vmatpush1.msra.mxu0 0.0
  %1143 = vmatprep.subr.mxu0 0.0
  %1144 = vmatpush1.msra.mxu0 0.0
  %1145 = vmatprep.subr.mxu0 0.0
  %1146 = vmatpush1.msra.mxu0 0.0
  %1147 = vmatprep.subr.mxu0 0.0
  %1148 = vmatpush1.msra.mxu0 0.0
  %1149 = vmatprep.subr.mxu0 0.0
  %1150 = vmatpush1.msra.mxu0 0.0
  %1151 = vmatprep.subr.mxu0 0.0
  %1152 = vmatpush1.msra.mxu0 0.0
  %1153 = vmatprep.subr.mxu0 0.0
  %1154 = vmatpush1.msra.mxu0 0.0
  %1155 = vmatprep.subr.mxu0 0.0
  %1156 = vmatpush1.msra.mxu0 0.0
  %1157 = vmatprep.subr.mxu0 0.0
  %1158 = vmatpush1.msra.mxu0 0.0
  %1159 = vmatprep.subr.mxu0 0.0
  %1160 = vmatpush1.msra.mxu0 0.0
  %1161 = vmatprep.subr.mxu0 0.0
  %1162 = vmatpush1.msra.mxu0 0.0
  %1163 = vmatprep.subr.mxu0 0.0
  %1164 = vmatpush1.msra.mxu0 0.0
  %1165 = vmatprep.subr.mxu0 0.0
  %1166 = vmatpush1.msra.mxu0 0.0
  %1167 = vmatprep.subr.mxu0 0.0
  %1168 = vmatpush1.msra.mxu0 0.0
  %1169 = vmatprep.subr.mxu0 0.0
  %1170 = vmatpush1.msra.mxu0 0.0
  %1171 = vmatprep.subr.mxu0 0.0
  %1172 = vmatpush1.msra.mxu0 0.0
  %1173 = vmatprep.subr.mxu0 0.0
  %1174 = vmatpush1.msra.mxu0 0.0
  %1175 = vmatprep.subr.mxu0 0.0
  %1176 = vmatpush1.msra.mxu0 0.0
  %1177 = vmatprep.subr.mxu0 0.0
  %1178 = vmatpush1.msra.mxu0 0.0
  %1179 = vmatprep.mubr.f32.mxu0 0.0
  %1180 = vmatmul.mubr.f32.gmra.mrb[0].mxu0 %v1113
  %v1181 = vpop.f32.mrb[0].mxu0
  %v1182 = vadd.f32 0.0, %v1181
  %v1183 = vpop.f32.mrb[0].mxu0
  %1184 = vdwg.mxu0
  %v1185 = vsel %vm109, %v1106, 0
  %1187 = vmatprep.subr.mxu0 0.0
  %1188 = vmatpush1.msra.mxu0 %v25
  %1189 = vmatprep.subr.mxu0 0.0
  %1190 = vmatpush1.msra.mxu0 %v26
  %1191 = vmatprep.subr.mxu0 0.0
  %1192 = vmatpush1.msra.mxu0 %v27
  %1193 = vmatprep.subr.mxu0 0.0
  %1194 = vmatpush1.msra.mxu0 %v28
  %1195 = vmatprep.subr.mxu0 0.0
  %1196 = vmatpush1.msra.mxu0 0.0
  %1197 = vmatprep.subr.mxu0 0.0
  %1198 = vmatpush1.msra.mxu0 0.0
  %1199 = vmatprep.subr.mxu0 0.0
  %1200 = vmatpush1.msra.mxu0 0.0
  %1201 = vmatprep.subr.mxu0 0.0
  %1202 = vmatpush1.msra.mxu0 0.0
  %1203 = vmatprep.subr.mxu0 0.0
  %1204 = vmatpush1.msra.mxu0 0.0
  %1205 = vmatprep.subr.mxu0 0.0
  %1206 = vmatpush1.msra.mxu0 0.0
  %1207 = vmatprep.subr.mxu0 0.0
  %1208 = vmatpush1.msra.mxu0 0.0
  %1209 = vmatprep.subr.mxu0 0.0
  %1210 = vmatpush1.msra.mxu0 0.0
  %1211 = vmatprep.subr.mxu0 0.0
  %1212 = vmatpush1.msra.mxu0 0.0
  %1213 = vmatprep.subr.mxu0 0.0
  %1214 = vmatpush1.msra.mxu0 0.0
  %1215 = vmatprep.subr.mxu0 0.0
  %1216 = vmatpush1.msra.mxu0 0.0
  %1217 = vmatprep.subr.mxu0 0.0
  %1218 = vmatpush1.msra.mxu0 0.0
  %1219 = vmatprep.subr.mxu0 0.0
  %1220 = vmatpush1.msra.mxu0 0.0
  %1221 = vmatprep.subr.mxu0 0.0
  %1222 = vmatpush1.msra.mxu0 0.0
  %1223 = vmatprep.subr.mxu0 0.0
  %1224 = vmatpush1.msra.mxu0 0.0
  %1225 = vmatprep.subr.mxu0 0.0
  %1226 = vmatpush1.msra.mxu0 0.0
  %1227 = vmatprep.subr.mxu0 0.0
  %1228 = vmatpush1.msra.mxu0 0.0
  %1229 = vmatprep.subr.mxu0 0.0
  %1230 = vmatpush1.msra.mxu0 0.0
  %1231 = vmatprep.subr.mxu0 0.0
  %1232 = vmatpush1.msra.mxu0 0.0
  %1233 = vmatprep.subr.mxu0 0.0
  %1234 = vmatpush1.msra.mxu0 0.0
  %1235 = vmatprep.subr.mxu0 0.0
  %1236 = vmatpush1.msra.mxu0 0.0
  %1237 = vmatprep.subr.mxu0 0.0
  %1238 = vmatpush1.msra.mxu0 0.0
  %1239 = vmatprep.subr.mxu0 0.0
  %1240 = vmatpush1.msra.mxu0 0.0
  %1241 = vmatprep.subr.mxu0 0.0
  %1242 = vmatpush1.msra.mxu0 0.0
  %1243 = vmatprep.subr.mxu0 0.0
  %1244 = vmatpush1.msra.mxu0 0.0
  %1245 = vmatprep.subr.mxu0 0.0
  %1246 = vmatpush1.msra.mxu0 0.0
  %1247 = vmatprep.subr.mxu0 0.0
  %1248 = vmatpush1.msra.mxu0 0.0
  %1249 = vmatprep.subr.mxu0 0.0
  %1250 = vmatpush1.msra.mxu0 0.0
  %1251 = vmatprep.mubr.f32.mxu0 0.0
  %1252 = vmatmul.mubr.f32.gmra.mrb[0].mxu0 %v1185
  %v1253 = vpop.f32.mrb[0].mxu0
  %v1254 = vadd.f32 %v1182, %v1253
  %v1255 = vpop.f32.mrb[0].mxu0
  %1256 = vdwg.mxu0
  %v1257 = vadd.f32 %v1254, %v187
  %v1258 = vand.u32 2147483647, %v1257
  %vm1259 = vcmp.le.f32.partialorder %v1258, 0.7853982
  %vm1260 = vcmp.lt.s32.totalorder %v1257, 0
  %v1261 = vand.u32 %v1257, 2139095040
  %v1262 = vshrl.u32 %v1261, 23
  %v1263 = vsub.s32 %v1262, 127
  %v1264 = vand.u32 2147483647, %v1257
  %v1265 = vand.u32 %v1264, 8388607
  %v1266 = vor.u32 %v1265, 8388608
  %v1267 = vsub.s32 0, %v1266
  %v1268 = vadd.s32 %v1263, 1
  %vm1269 = vcmp.gt.s32.totalorder %v1268, 0
  %v1270 = vsel %vm1269, %v1268, 0
  %v1271 = vshrl.u32 %v1270, 5
  %v1272 = vand.u32 %v1270, 31
  %v1273 = vsub.s32 32, %v1272
  %v1274 = vshrl.u32 683565275, %v1273
  %v1275 = vshll.u32 683565275, %v1272
  %v1276 = vshrl.u32 2475754826, %v1273
  %v1277 = vor.u32 %v1275, %v1276
  %v1278 = vshll.u32 2475754826, %v1272
  %v1279 = vshrl.u32 2131351028, %v1273
  %v1280 = vor.u32 %v1278, %v1279
  %v1281 = vshll.u32 2131351028, %v1272
  %v1282 = vshrl.u32 2102212464, %v1273
  %v1283 = vor.u32 %v1281, %v1282
  %v1284 = vshll.u32 2102212464, %v1272
  %v1285 = vshrl.u32 920167782, %v1273
  %v1286 = vor.u32 %v1284, %v1285
  %v1287 = vshll.u32 920167782, %v1272
  %v1288 = vshrl.u32 1326507024, %v1273
  %v1289 = vor.u32 %v1287, %v1288
  %vm1290 = vcmp.lt.s32.totalorder %v1271, 1
  %vm1291 = vcmp.lt.s32.totalorder %v1271, 2
  %vm1292 = vcmp.lt.s32.totalorder %v1271, 3
  %vm1293 = vcmp.lt.s32.totalorder %v1271, 4
  %v1294 = vsel %vm1290, %v1274, %v1277
  %v1295 = vsel %vm1293, %v1283, 2102212464
  %v1296 = vsel %vm1292, %v1280, %v1295
  %v1297 = vsel %vm1291, %v1294, %v1296
  %v1298 = vsel %vm1290, %v1277, %v1280
  %v1299 = vsel %vm1293, %v1286, 920167782
  %v1300 = vsel %vm1292, %v1283, %v1299
  %v1301 = vsel %vm1291, %v1298, %v1300
  %v1302 = vsel %vm1290, %v1280, %v1283
  %v1303 = vsel %vm1293, %v1289, 1326507024
  %v1304 = vsel %vm1292, %v1286, %v1303
  %v1305 = vsel %vm1291, %v1302, %v1304
  %v1306 = vshll.u32 %v1266, 8
  %v1307 = vmul.u32.u64.compose %v1306, %v1305
  %v1308 = vextract.low.u32 %v1307
  %v1309 = vextract.high.u32 %v1307
  %v1310 = vmul.u32.u64.compose %v1306, %v1301
  %v1311 = vextract.low.u32 %v1310
  %v1312 = vextract.high.u32 %v1310
  %v1313 = vmul.u32 %v1306, %v1297
  %v1314 = vadd.s32 %v1309, %v1311
  %vm1315 = vc.u32 %v1309, %v1311
  %v1316 = vadd.s32 %v1312, 1
  %v1317 = vsel %vm1315, %v1316, %v1312
  %v1318 = vadd.s32 %v1313, %v1317
  %v1319 = vadd.s32 %v1318, 536870912
  %v1320 = vshrl.u32 %v1319, 30
  %v1321 = vshll.u32 %v1320, 30
  %v1322 = vsub.s32 %v1318, %v1321
  %vm1323 = vcmp.lt.s32.totalorder %v1322, 0
  %v1324 = vsub.s32 0, %v1322
  %v1325 = vsel %vm1323, %v1324, %v1322
  %v1326 = vclz %v1325
  %v1327 = vsub.s32 %v1326, 2
  %vm1328 = vcmp.gt.s32.totalorder 0, %v1327
  %v1329 = vsel %vm1328, 0, %v1327
  %v1330 = vsub.s32 32, %v1329
  %v1331 = vshll.u32 %v1322, %v1329
  %v1332 = vshrl.u32 %v1314, %v1330
  %v1333 = vor.u32 %v1331, %v1332
  %v1334 = vsub.s32 4294967266, %v1329
  %v1335 = vadd.s32 %v1334, 127
  %v1336 = vshll.u32 %v1335, 23
  %v1337 = vor.u32 4788187, %v1336
  %v1338 = vand.u32 2147483647, %v1337
  %v1340 = vcvt.s32.f32 %v1333
  %v1341 = vmul.f32 %v1340, %v1338
  %v1342 = vxor.u32 %v1341, 2147483648
  %v1343 = vsel %vm1260, %v1342, %v1341
  %v1344 = vsub.s32 4, %v1320
  %v1345 = vsel %vm1260, %v1344, %v1320
  %v1346 = vsel %vm1259, %v1257, %v1343
  %v1347 = vsel %vm1259, 0, %v1345
  %v1348 = vcosq.f32.pop %v1346
  %v1349 = vsinq.f32.pop %v1346
  %vm1350 = vweird.f32 %v1257
  %v1351 = vand.u32 %v1347, 3
  %vm1352 = vcmp.lt.s32.totalorder %v1351, 2
  %vm1353 = vcmp.eq.s32.totalorder %v1351, 0
  %v1354 = vxor.u32 %v1349, 2147483648
  %v1355 = vsel %vm1353, %v1348, %v1354
  %vm1356 = vcmp.eq.s32.totalorder %v1351, 2
  %v1357 = vxor.u32 %v1348, 2147483648
  %v1358 = vsel %vm1356, %v1357, %v1349
  %v1359 = vsel %vm1352, %v1355, %v1358
  %v1360 = vsel %vm1350, nan, %v1359
  %v1362 = vsel %vm299, %v1360, 0
  %1364 = vmatprep.subr.mxu0 0.0
  %1365 = vmatpush1.msra.mxu0 %v31
  %1366 = vmatprep.subr.mxu0 0.0
  %1367 = vmatpush1.msra.mxu0 %v32
  %1368 = vmatprep.subr.mxu0 0.0
  %1369 = vmatpush1.msra.mxu0 0.0
  %1370 = vmatprep.subr.mxu0 0.0
  %1371 = vmatpush1.msra.mxu0 0.0
  %1372 = vmatprep.subr.mxu0 0.0
  %1373 = vmatpush1.msra.mxu0 0.0
  %1374 = vmatprep.subr.mxu0 0.0
  %1375 = vmatpush1.msra.mxu0 0.0
  %1376 = vmatprep.subr.mxu0 0.0
  %1377 = vmatpush1.msra.mxu0 0.0
  %1378 = vmatprep.subr.mxu0 0.0
  %1379 = vmatpush1.msra.mxu0 0.0
  %1380 = vmatprep.subr.mxu0 0.0
  %1381 = vmatpush1.msra.mxu0 0.0
  %1382 = vmatprep.subr.mxu0 0.0
  %1383 = vmatpush1.msra.mxu0 0.0
  %1384 = vmatprep.subr.mxu0 0.0
  %1385 = vmatpush1.msra.mxu0 0.0
  %1386 = vmatprep.subr.mxu0 0.0
  %1387 = vmatpush1.msra.mxu0 0.0
  %1388 = vmatprep.subr.mxu0 0.0
  %1389 = vmatpush1.msra.mxu0 0.0
  %1390 = vmatprep.subr.mxu0 0.0
  %1391 = vmatpush1.msra.mxu0 0.0
  %1392 = vmatprep.subr.mxu0 0.0
  %1393 = vmatpush1.msra.mxu0 0.0
  %1394 = vmatprep.subr.mxu0 0.0
  %1395 = vmatpush1.msra.mxu0 0.0
  %1396 = vmatprep.subr.mxu0 0.0
  %1397 = vmatpush1.msra.mxu0 0.0
  %1398 = vmatprep.subr.mxu0 0.0
  %1399 = vmatpush1.msra.mxu0 0.0
  %1400 = vmatprep.subr.mxu0 0.0
  %1401 = vmatpush1.msra.mxu0 0.0
  %1402 = vmatprep.subr.mxu0 0.0
  %1403 = vmatpush1.msra.mxu0 0.0
  %1404 = vmatprep.subr.mxu0 0.0
  %1405 = vmatpush1.msra.mxu0 0.0
  %1406 = vmatprep.subr.mxu0 0.0
  %1407 = vmatpush1.msra.mxu0 0.0
  %1408 = vmatprep.subr.mxu0 0.0
  %1409 = vmatpush1.msra.mxu0 0.0
  %1410 = vmatprep.subr.mxu0 0.0
  %1411 = vmatpush1.msra.mxu0 0.0
  %1412 = vmatprep.subr.mxu0 0.0
  %1413 = vmatpush1.msra.mxu0 0.0
  %1414 = vmatprep.subr.mxu0 0.0
  %1415 = vmatpush1.msra.mxu0 0.0
  %1416 = vmatprep.subr.mxu0 0.0
  %1417 = vmatpush1.msra.mxu0 0.0
  %1418 = vmatprep.subr.mxu0 0.0
  %1419 = vmatpush1.msra.mxu0 0.0
  %1420 = vmatprep.subr.mxu0 0.0
  %1421 = vmatpush1.msra.mxu0 0.0
  %1422 = vmatprep.subr.mxu0 0.0
  %1423 = vmatpush1.msra.mxu0 0.0
  %1424 = vmatprep.subr.mxu0 0.0
  %1425 = vmatpush1.msra.mxu0 0.0
  %1426 = vmatprep.subr.mxu0 0.0
  %1427 = vmatpush1.msra.mxu0 0.0
  %1428 = vmatprep.mubr.f32.mxu0 0.0
  %1429 = vmatmul.mubr.f32.gmra.mrb[0].mxu0 %v1362
  %v1430 = vpop.f32.mrb[0].mxu0
  %v1431 = vadd.f32 %v297, %v1430
  %v1432 = vpop.f32.mrb[0].mxu0
  %1433 = vdwg.mxu0
  %v1434 = vxor.u32 %v1431, 2147483648
  %v1435 = vmul.f32 %v1434, 1.442695
  %v1436 = vpow.pop %v1435
  %v1437 = vadd.f32 %v1436, 1.0
  %v1438 = vrcp.pop %v1437
  %v1439 = vmul.f32 1.0, %v1438
  %v1440 = vtanh.pop %v1431
  %v1441 = vmul.f32 %v1439, %v1097
  %1443 = vrot.lane.b32.xlu0 %v1440, 96
  %v1444 = vpop.permute.xlu0 %1443
  %v1446 = vmul.f32 %v1439, %v1444
  %1448 = vrot.lane.b32.xlu0 %v1446, 96
  %v1449 = vpop.permute.xlu0 %1448
  %v1451 = vadd.f32 %v1441, %v1449
  %v1452 = vtanh.pop %v1451
  %1454 = vrot.lane.b32.xlu0 %v1452, 96
  %v1455 = vpop.permute.xlu0 %1454
  %v1457 = vmul.f32 %v1439, %v1455
  %1459 = vrot.lane.b32.xlu0 %v1457, 32
  %v1460 = vpop.permute.xlu0 %1459
  %s1462 = scalar_lea.vmem %s6, 24
  %1463 = vst.msk [vmem:[%s1462] sm:$0xff] %vm109, %v1460
  %s1464 = scalar_lea.vmem %s0, 32
  %v1465 = vld [vmem:[%s1464] sm:$0xff]
  %v1467 = vsel %vm35, %v1465, 0
  %1469 = vmatprep.subr.mxu0 0.0
  %1470 = vmatpush1.msra.mxu0 %v29
  %1471 = vmatprep.subr.mxu0 0.0
  %1472 = vmatpush1.msra.mxu0 0.0
  %1473 = vmatprep.subr.mxu0 0.0
  %1474 = vmatpush1.msra.mxu0 0.0
  %1475 = vmatprep.subr.mxu0 0.0
  %1476 = vmatpush1.msra.mxu0 0.0
  %1477 = vmatprep.subr.mxu0 0.0
  %1478 = vmatpush1.msra.mxu0 0.0
  %1479 = vmatprep.subr.mxu0 0.0
  %1480 = vmatpush1.msra.mxu0 0.0
  %1481 = vmatprep.subr.mxu0 0.0
  %1482 = vmatpush1.msra.mxu0 0.0
  %1483 = vmatprep.subr.mxu0 0.0
  %1484 = vmatpush1.msra.mxu0 0.0
  %1485 = vmatprep.subr.mxu0 0.0
  %1486 = vmatpush1.msra.mxu0 0.0
  %1487 = vmatprep.subr.mxu0 0.0
  %1488 = vmatpush1.msra.mxu0 0.0
  %1489 = vmatprep.subr.mxu0 0.0
  %1490 = vmatpush1.msra.mxu0 0.0
  %1491 = vmatprep.subr.mxu0 0.0
  %1492 = vmatpush1.msra.mxu0 0.0
  %1493 = vmatprep.subr.mxu0 0.0
  %1494 = vmatpush1.msra.mxu0 0.0
  %1495 = vmatprep.subr.mxu0 0.0
  %1496 = vmatpush1.msra.mxu0 0.0
  %1497 = vmatprep.subr.mxu0 0.0
  %1498 = vmatpush1.msra.mxu0 0.0
  %1499 = vmatprep.subr.mxu0 0.0
  %1500 = vmatpush1.msra.mxu0 0.0
  %1501 = vmatprep.subr.mxu0 0.0
  %1502 = vmatpush1.msra.mxu0 0.0
  %1503 = vmatprep.subr.mxu0 0.0
  %1504 = vmatpush1.msra.mxu0 0.0
  %1505 = vmatprep.subr.mxu0 0.0
  %1506 = vmatpush1.msra.mxu0 0.0
  %1507 = vmatprep.subr.mxu0 0.0
  %1508 = vmatpush1.msra.mxu0 0.0
  %1509 = vmatprep.subr.mxu0 0.0
  %1510 = vmatpush1.msra.mxu0 0.0
  %1511 = vmatprep.subr.mxu0 0.0
  %1512 = vmatpush1.msra.mxu0 0.0
  %1513 = vmatprep.subr.mxu0 0.0
  %1514 = vmatpush1.msra.mxu0 0.0
  %1515 = vmatprep.subr.mxu0 0.0
  %1516 = vmatpush1.msra.mxu0 0.0
  %1517 = vmatprep.subr.mxu0 0.0
  %1518 = vmatpush1.msra.mxu0 0.0
  %1519 = vmatprep.subr.mxu0 0.0
  %1520 = vmatpush1.msra.mxu0 0.0
  %1521 = vmatprep.subr.mxu0 0.0
  %1522 = vmatpush1.msra.mxu0 0.0
  %1523 = vmatprep.subr.mxu0 0.0
  %1524 = vmatpush1.msra.mxu0 0.0
  %1525 = vmatprep.subr.mxu0 0.0
  %1526 = vmatpush1.msra.mxu0 0.0
  %1527 = vmatprep.subr.mxu0 0.0
  %1528 = vmatpush1.msra.mxu0 0.0
  %1529 = vmatprep.subr.mxu0 0.0
  %1530 = vmatpush1.msra.mxu0 0.0
  %1531 = vmatprep.subr.mxu0 0.0
  %1532 = vmatpush1.msra.mxu0 0.0
  %1533 = vmatprep.mubr.f32.mxu0 0.0
  %1534 = vmatmul.mubr.f32.gmra.mrb[0].mxu0 %v1467
  %v1535 = vpop.f32.mrb[0].mxu0
  %v1536 = vadd.f32 0.0, %v1535
  %v1537 = vpop.f32.mrb[0].mxu0
  %1538 = vdwg.mxu0
  %v1539 = vsel %vm109, %v1460, 0
  %1541 = vmatprep.subr.mxu0 0.0
  %1542 = vmatpush1.msra.mxu0 %v25
  %1543 = vmatprep.subr.mxu0 0.0
  %1544 = vmatpush1.msra.mxu0 %v26
  %1545 = vmatprep.subr.mxu0 0.0
  %1546 = vmatpush1.msra.mxu0 %v27
  %1547 = vmatprep.subr.mxu0 0.0
  %1548 = vmatpush1.msra.mxu0 %v28
  %1549 = vmatprep.subr.mxu0 0.0
  %1550 = vmatpush1.msra.mxu0 0.0
  %1551 = vmatprep.subr.mxu0 0.0
  %1552 = vmatpush1.msra.mxu0 0.0
  %1553 = vmatprep.subr.mxu0 0.0
  %1554 = vmatpush1.msra.mxu0 0.0
  %1555 = vmatprep.subr.mxu0 0.0
  %1556 = vmatpush1.msra.mxu0 0.0
  %1557 = vmatprep.subr.mxu0 0.0
  %1558 = vmatpush1.msra.mxu0 0.0
  %1559 = vmatprep.subr.mxu0 0.0
  %1560 = vmatpush1.msra.mxu0 0.0
  %1561 = vmatprep.subr.mxu0 0.0
  %1562 = vmatpush1.msra.mxu0 0.0
  %1563 = vmatprep.subr.mxu0 0.0
  %1564 = vmatpush1.msra.mxu0 0.0
  %1565 = vmatprep.subr.mxu0 0.0
  %1566 = vmatpush1.msra.mxu0 0.0
  %1567 = vmatprep.subr.mxu0 0.0
  %1568 = vmatpush1.msra.mxu0 0.0
  %1569 = vmatprep.subr.mxu0 0.0
  %1570 = vmatpush1.msra.mxu0 0.0
  %1571 = vmatprep.subr.mxu0 0.0
  %1572 = vmatpush1.msra.mxu0 0.0
  %1573 = vmatprep.subr.mxu0 0.0
  %1574 = vmatpush1.msra.mxu0 0.0
  %1575 = vmatprep.subr.mxu0 0.0
  %1576 = vmatpush1.msra.mxu0 0.0
  %1577 = vmatprep.subr.mxu0 0.0
  %1578 = vmatpush1.msra.mxu0 0.0
  %1579 = vmatprep.subr.mxu0 0.0
  %1580 = vmatpush1.msra.mxu0 0.0
  %1581 = vmatprep.subr.mxu0 0.0
  %1582 = vmatpush1.msra.mxu0 0.0
  %1583 = vmatprep.subr.mxu0 0.0
  %1584 = vmatpush1.msra.mxu0 0.0
  %1585 = vmatprep.subr.mxu0 0.0
  %1586 = vmatpush1.msra.mxu0 0.0
  %1587 = vmatprep.subr.mxu0 0.0
  %1588 = vmatpush1.msra.mxu0 0.0
  %1589 = vmatprep.subr.mxu0 0.0
  %1590 = vmatpush1.msra.mxu0 0.0
  %1591 = vmatprep.subr.mxu0 0.0
  %1592 = vmatpush1.msra.mxu0 0.0
  %1593 = vmatprep.subr.mxu0 0.0
  %1594 = vmatpush1.msra.mxu0 0.0
  %1595 = vmatprep.subr.mxu0 0.0
  %1596 = vmatpush1.msra.mxu0 0.0
  %1597 = vmatprep.subr.mxu0 0.0
  %1598 = vmatpush1.msra.mxu0 0.0
  %1599 = vmatprep.subr.mxu0 0.0
  %1600 = vmatpush1.msra.mxu0 0.0
  %1601 = vmatprep.subr.mxu0 0.0
  %1602 = vmatpush1.msra.mxu0 0.0
  %1603 = vmatprep.subr.mxu0 0.0
  %1604 = vmatpush1.msra.mxu0 0.0
  %1605 = vmatprep.mubr.f32.mxu0 0.0
  %1606 = vmatmul.mubr.f32.gmra.mrb[0].mxu0 %v1539
  %v1607 = vpop.f32.mrb[0].mxu0
  %v1608 = vadd.f32 %v1536, %v1607
  %v1609 = vpop.f32.mrb[0].mxu0
  %1610 = vdwg.mxu0
  %v1611 = vadd.f32 %v1608, %v187
  %v1612 = vand.u32 2147483647, %v1611
  %vm1613 = vcmp.le.f32.partialorder %v1612, 0.7853982
  %vm1614 = vcmp.lt.s32.totalorder %v1611, 0
  %v1615 = vand.u32 %v1611, 2139095040
  %v1616 = vshrl.u32 %v1615, 23
  %v1617 = vsub.s32 %v1616, 127
  %v1618 = vand.u32 2147483647, %v1611
  %v1619 = vand.u32 %v1618, 8388607
  %v1620 = vor.u32 %v1619, 8388608
  %v1621 = vsub.s32 0, %v1620
  %v1622 = vadd.s32 %v1617, 1
  %vm1623 = vcmp.gt.s32.totalorder %v1622, 0
  %v1624 = vsel %vm1623, %v1622, 0
  %v1625 = vshrl.u32 %v1624, 5
  %v1626 = vand.u32 %v1624, 31
  %v1627 = vsub.s32 32, %v1626
  %v1628 = vshrl.u32 683565275, %v1627
  %v1629 = vshll.u32 683565275, %v1626
  %v1630 = vshrl.u32 2475754826, %v1627
  %v1631 = vor.u32 %v1629, %v1630
  %v1632 = vshll.u32 2475754826, %v1626
  %v1633 = vshrl.u32 2131351028, %v1627
  %v1634 = vor.u32 %v1632, %v1633
  %v1635 = vshll.u32 2131351028, %v1626
  %v1636 = vshrl.u32 2102212464, %v1627
  %v1637 = vor.u32 %v1635, %v1636
  %v1638 = vshll.u32 2102212464, %v1626
  %v1639 = vshrl.u32 920167782, %v1627
  %v1640 = vor.u32 %v1638, %v1639
  %v1641 = vshll.u32 920167782, %v1626
  %v1642 = vshrl.u32 1326507024, %v1627
  %v1643 = vor.u32 %v1641, %v1642
  %vm1644 = vcmp.lt.s32.totalorder %v1625, 1
  %vm1645 = vcmp.lt.s32.totalorder %v1625, 2
  %vm1646 = vcmp.lt.s32.totalorder %v1625, 3
  %vm1647 = vcmp.lt.s32.totalorder %v1625, 4
  %v1648 = vsel %vm1644, %v1628, %v1631
  %v1649 = vsel %vm1647, %v1637, 2102212464
  %v1650 = vsel %vm1646, %v1634, %v1649
  %v1651 = vsel %vm1645, %v1648, %v1650
  %v1652 = vsel %vm1644, %v1631, %v1634
  %v1653 = vsel %vm1647, %v1640, 920167782
  %v1654 = vsel %vm1646, %v1637, %v1653
  %v1655 = vsel %vm1645, %v1652, %v1654
  %v1656 = vsel %vm1644, %v1634, %v1637
  %v1657 = vsel %vm1647, %v1643, 1326507024
  %v1658 = vsel %vm1646, %v1640, %v1657
  %v1659 = vsel %vm1645, %v1656, %v1658
  %v1660 = vshll.u32 %v1620, 8
  %v1661 = vmul.u32.u64.compose %v1660, %v1659
  %v1662 = vextract.low.u32 %v1661
  %v1663 = vextract.high.u32 %v1661
  %v1664 = vmul.u32.u64.compose %v1660, %v1655
  %v1665 = vextract.low.u32 %v1664
  %v1666 = vextract.high.u32 %v1664
  %v1667 = vmul.u32 %v1660, %v1651
  %v1668 = vadd.s32 %v1663, %v1665
  %vm1669 = vc.u32 %v1663, %v1665
  %v1670 = vadd.s32 %v1666, 1
  %v1671 = vsel %vm1669, %v1670, %v1666
  %v1672 = vadd.s32 %v1667, %v1671
  %v1673 = vadd.s32 %v1672, 536870912
  %v1674 = vshrl.u32 %v1673, 30
  %v1675 = vshll.u32 %v1674, 30
  %v1676 = vsub.s32 %v1672, %v1675
  %vm1677 = vcmp.lt.s32.totalorder %v1676, 0
  %v1678 = vsub.s32 0, %v1676
  %v1679 = vsel %vm1677, %v1678, %v1676
  %v1680 = vclz %v1679
  %v1681 = vsub.s32 %v1680, 2
  %vm1682 = vcmp.gt.s32.totalorder 0, %v1681
  %v1683 = vsel %vm1682, 0, %v1681
  %v1684 = vsub.s32 32, %v1683
  %v1685 = vshll.u32 %v1676, %v1683
  %v1686 = vshrl.u32 %v1668, %v1684
  %v1687 = vor.u32 %v1685, %v1686
  %v1688 = vsub.s32 4294967266, %v1683
  %v1689 = vadd.s32 %v1688, 127
  %v1690 = vshll.u32 %v1689, 23
  %v1691 = vor.u32 4788187, %v1690
  %v1692 = vand.u32 2147483647, %v1691
  %v1694 = vcvt.s32.f32 %v1687
  %v1695 = vmul.f32 %v1694, %v1692
  %v1696 = vxor.u32 %v1695, 2147483648
  %v1697 = vsel %vm1614, %v1696, %v1695
  %v1698 = vsub.s32 4, %v1674
  %v1699 = vsel %vm1614, %v1698, %v1674
  %v1700 = vsel %vm1613, %v1611, %v1697
  %v1701 = vsel %vm1613, 0, %v1699
  %v1702 = vcosq.f32.pop %v1700
  %v1703 = vsinq.f32.pop %v1700
  %vm1704 = vweird.f32 %v1611
  %v1705 = vand.u32 %v1701, 3
  %vm1706 = vcmp.lt.s32.totalorder %v1705, 2
  %vm1707 = vcmp.eq.s32.totalorder %v1705, 0
  %v1708 = vxor.u32 %v1703, 2147483648
  %v1709 = vsel %vm1707, %v1702, %v1708
  %vm1710 = vcmp.eq.s32.totalorder %v1705, 2
  %v1711 = vxor.u32 %v1702, 2147483648
  %v1712 = vsel %vm1710, %v1711, %v1703
  %v1713 = vsel %vm1706, %v1709, %v1712
  %v1714 = vsel %vm1704, nan, %v1713
  %v1716 = vsel %vm299, %v1714, 0
  %1718 = vmatprep.subr.mxu0 0.0
  %1719 = vmatpush1.msra.mxu0 %v31
  %1720 = vmatprep.subr.mxu0 0.0
  %1721 = vmatpush1.msra.mxu0 %v32
  %1722 = vmatprep.subr.mxu0 0.0
  %1723 = vmatpush1.msra.mxu0 0.0
  %1724 = vmatprep.subr.mxu0 0.0
  %1725 = vmatpush1.msra.mxu0 0.0
  %1726 = vmatprep.subr.mxu0 0.0
  %1727 = vmatpush1.msra.mxu0 0.0
  %1728 = vmatprep.subr.mxu0 0.0
  %1729 = vmatpush1.msra.mxu0 0.0
  %1730 = vmatprep.subr.mxu0 0.0
  %1731 = vmatpush1.msra.mxu0 0.0
  %1732 = vmatprep.subr.mxu0 0.0
  %1733 = vmatpush1.msra.mxu0 0.0
  %1734 = vmatprep.subr.mxu0 0.0
  %1735 = vmatpush1.msra.mxu0 0.0
  %1736 = vmatprep.subr.mxu0 0.0
  %1737 = vmatpush1.msra.mxu0 0.0
  %1738 = vmatprep.subr.mxu0 0.0
  %1739 = vmatpush1.msra.mxu0 0.0
  %1740 = vmatprep.subr.mxu0 0.0
  %1741 = vmatpush1.msra.mxu0 0.0
  %1742 = vmatprep.subr.mxu0 0.0
  %1743 = vmatpush1.msra.mxu0 0.0
  %1744 = vmatprep.subr.mxu0 0.0
  %1745 = vmatpush1.msra.mxu0 0.0
  %1746 = vmatprep.subr.mxu0 0.0
  %1747 = vmatpush1.msra.mxu0 0.0
  %1748 = vmatprep.subr.mxu0 0.0
  %1749 = vmatpush1.msra.mxu0 0.0
  %1750 = vmatprep.subr.mxu0 0.0
  %1751 = vmatpush1.msra.mxu0 0.0
  %1752 = vmatprep.subr.mxu0 0.0
  %1753 = vmatpush1.msra.mxu0 0.0
  %1754 = vmatprep.subr.mxu0 0.0
  %1755 = vmatpush1.msra.mxu0 0.0
  %1756 = vmatprep.subr.mxu0 0.0
  %1757 = vmatpush1.msra.mxu0 0.0
  %1758 = vmatprep.subr.mxu0 0.0
  %1759 = vmatpush1.msra.mxu0 0.0
  %1760 = vmatprep.subr.mxu0 0.0
  %1761 = vmatpush1.msra.mxu0 0.0
  %1762 = vmatprep.subr.mxu0 0.0
  %1763 = vmatpush1.msra.mxu0 0.0
  %1764 = vmatprep.subr.mxu0 0.0
  %1765 = vmatpush1.msra.mxu0 0.0
  %1766 = vmatprep.subr.mxu0 0.0
  %1767 = vmatpush1.msra.mxu0 0.0
  %1768 = vmatprep.subr.mxu0 0.0
  %1769 = vmatpush1.msra.mxu0 0.0
  %1770 = vmatprep.subr.mxu0 0.0
  %1771 = vmatpush1.msra.mxu0 0.0
  %1772 = vmatprep.subr.mxu0 0.0
  %1773 = vmatpush1.msra.mxu0 0.0
  %1774 = vmatprep.subr.mxu0 0.0
  %1775 = vmatpush1.msra.mxu0 0.0
  %1776 = vmatprep.subr.mxu0 0.0
  %1777 = vmatpush1.msra.mxu0 0.0
  %1778 = vmatprep.subr.mxu0 0.0
  %1779 = vmatpush1.msra.mxu0 0.0
  %1780 = vmatprep.subr.mxu0 0.0
  %1781 = vmatpush1.msra.mxu0 0.0
  %1782 = vmatprep.mubr.f32.mxu0 0.0
  %1783 = vmatmul.mubr.f32.gmra.mrb[0].mxu0 %v1716
  %v1784 = vpop.f32.mrb[0].mxu0
  %v1785 = vadd.f32 %v297, %v1784
  %v1786 = vpop.f32.mrb[0].mxu0
  %1787 = vdwg.mxu0
  %v1788 = vxor.u32 %v1785, 2147483648
  %v1789 = vmul.f32 %v1788, 1.442695
  %v1790 = vpow.pop %v1789
  %v1791 = vadd.f32 %v1790, 1.0
  %v1792 = vrcp.pop %v1791
  %v1793 = vmul.f32 1.0, %v1792
  %v1794 = vtanh.pop %v1785
  %v1795 = vmul.f32 %v1793, %v1451
  %1797 = vrot.lane.b32.xlu0 %v1794, 96
  %v1798 = vpop.permute.xlu0 %1797
  %v1800 = vmul.f32 %v1793, %v1798
  %1802 = vrot.lane.b32.xlu0 %v1800, 96
  %v1803 = vpop.permute.xlu0 %1802
  %v1805 = vadd.f32 %v1795, %v1803
  %v1806 = vtanh.pop %v1805
  %1808 = vrot.lane.b32.xlu0 %v1806, 96
  %v1809 = vpop.permute.xlu0 %1808
  %v1811 = vmul.f32 %v1793, %v1809
  %1813 = vrot.lane.b32.xlu0 %v1811, 32
  %v1814 = vpop.permute.xlu0 %1813
  %s1816 = scalar_lea.vmem %s6, 32
  %1817 = vst.msk [vmem:[%s1816] sm:$0xff] %vm109, %v1814
  %s1818 = scalar_lea.vmem %s0, 40
  %v1819 = vld [vmem:[%s1818] sm:$0xff]
  %v1821 = vsel %vm35, %v1819, 0
  %1823 = vmatprep.subr.mxu0 0.0
  %1824 = vmatpush1.msra.mxu0 %v29
  %1825 = vmatprep.subr.mxu0 0.0
  %1826 = vmatpush1.msra.mxu0 0.0
  %1827 = vmatprep.subr.mxu0 0.0
  %1828 = vmatpush1.msra.mxu0 0.0
  %1829 = vmatprep.subr.mxu0 0.0
  %1830 = vmatpush1.msra.mxu0 0.0
  %1831 = vmatprep.subr.mxu0 0.0
  %1832 = vmatpush1.msra.mxu0 0.0
  %1833 = vmatprep.subr.mxu0 0.0
  %1834 = vmatpush1.msra.mxu0 0.0
  %1835 = vmatprep.subr.mxu0 0.0
  %1836 = vmatpush1.msra.mxu0 0.0
  %1837 = vmatprep.subr.mxu0 0.0
  %1838 = vmatpush1.msra.mxu0 0.0
  %1839 = vmatprep.subr.mxu0 0.0
  %1840 = vmatpush1.msra.mxu0 0.0
  %1841 = vmatprep.subr.mxu0 0.0
  %1842 = vmatpush1.msra.mxu0 0.0
  %1843 = vmatprep.subr.mxu0 0.0
  %1844 = vmatpush1.msra.mxu0 0.0
  %1845 = vmatprep.subr.mxu0 0.0
  %1846 = vmatpush1.msra.mxu0 0.0
  %1847 = vmatprep.subr.mxu0 0.0
  %1848 = vmatpush1.msra.mxu0 0.0
  %1849 = vmatprep.subr.mxu0 0.0
  %1850 = vmatpush1.msra.mxu0 0.0
  %1851 = vmatprep.subr.mxu0 0.0
  %1852 = vmatpush1.msra.mxu0 0.0
  %1853 = vmatprep.subr.mxu0 0.0
  %1854 = vmatpush1.msra.mxu0 0.0
  %1855 = vmatprep.subr.mxu0 0.0
  %1856 = vmatpush1.msra.mxu0 0.0
  %1857 = vmatprep.subr.mxu0 0.0
  %1858 = vmatpush1.msra.mxu0 0.0
  %1859 = vmatprep.subr.mxu0 0.0
  %1860 = vmatpush1.msra.mxu0 0.0
  %1861 = vmatprep.subr.mxu0 0.0
  %1862 = vmatpush1.msra.mxu0 0.0
  %1863 = vmatprep.subr.mxu0 0.0
  %1864 = vmatpush1.msra.mxu0 0.0
  %1865 = vmatprep.subr.mxu0 0.0
  %1866 = vmatpush1.msra.mxu0 0.0
  %1867 = vmatprep.subr.mxu0 0.0
  %1868 = vmatpush1.msra.mxu0 0.0
  %1869 = vmatprep.subr.mxu0 0.0
  %1870 = vmatpush1.msra.mxu0 0.0
  %1871 = vmatprep.subr.mxu0 0.0
  %1872 = vmatpush1.msra.mxu0 0.0
  %1873 = vmatprep.subr.mxu0 0.0
  %1874 = vmatpush1.msra.mxu0 0.0
  %1875 = vmatprep.subr.mxu0 0.0
  %1876 = vmatpush1.msra.mxu0 0.0
  %1877 = vmatprep.subr.mxu0 0.0
  %1878 = vmatpush1.msra.mxu0 0.0
  %1879 = vmatprep.subr.mxu0 0.0
  %1880 = vmatpush1.msra.mxu0 0.0
  %1881 = vmatprep.subr.mxu0 0.0
  %1882 = vmatpush1.msra.mxu0 0.0
  %1883 = vmatprep.subr.mxu0 0.0
  %1884 = vmatpush1.msra.mxu0 0.0
  %1885 = vmatprep.subr.mxu0 0.0
  %1886 = vmatpush1.msra.mxu0 0.0
  %1887 = vmatprep.mubr.f32.mxu0 0.0
  %1888 = vmatmul.mubr.f32.gmra.mrb[0].mxu0 %v1821
  %v1889 = vpop.f32.mrb[0].mxu0
  %v1890 = vadd.f32 0.0, %v1889
  %v1891 = vpop.f32.mrb[0].mxu0
  %1892 = vdwg.mxu0
  %v1893 = vsel %vm109, %v1814, 0
  %1895 = vmatprep.subr.mxu0 0.0
  %1896 = vmatpush1.msra.mxu0 %v25
  %1897 = vmatprep.subr.mxu0 0.0
  %1898 = vmatpush1.msra.mxu0 %v26
  %1899 = vmatprep.subr.mxu0 0.0
  %1900 = vmatpush1.msra.mxu0 %v27
  %1901 = vmatprep.subr.mxu0 0.0
  %1902 = vmatpush1.msra.mxu0 %v28
  %1903 = vmatprep.subr.mxu0 0.0
  %1904 = vmatpush1.msra.mxu0 0.0
  %1905 = vmatprep.subr.mxu0 0.0
  %1906 = vmatpush1.msra.mxu0 0.0
  %1907 = vmatprep.subr.mxu0 0.0
  %1908 = vmatpush1.msra.mxu0 0.0
  %1909 = vmatprep.subr.mxu0 0.0
  %1910 = vmatpush1.msra.mxu0 0.0
  %1911 = vmatprep.subr.mxu0 0.0
  %1912 = vmatpush1.msra.mxu0 0.0
  %1913 = vmatprep.subr.mxu0 0.0
  %1914 = vmatpush1.msra.mxu0 0.0
  %1915 = vmatprep.subr.mxu0 0.0
  %1916 = vmatpush1.msra.mxu0 0.0
  %1917 = vmatprep.subr.mxu0 0.0
  %1918 = vmatpush1.msra.mxu0 0.0
  %1919 = vmatprep.subr.mxu0 0.0
  %1920 = vmatpush1.msra.mxu0 0.0
  %1921 = vmatprep.subr.mxu0 0.0
  %1922 = vmatpush1.msra.mxu0 0.0
  %1923 = vmatprep.subr.mxu0 0.0
  %1924 = vmatpush1.msra.mxu0 0.0
  %1925 = vmatprep.subr.mxu0 0.0
  %1926 = vmatpush1.msra.mxu0 0.0
  %1927 = vmatprep.subr.mxu0 0.0
  %1928 = vmatpush1.msra.mxu0 0.0
  %1929 = vmatprep.subr.mxu0 0.0
  %1930 = vmatpush1.msra.mxu0 0.0
  %1931 = vmatprep.subr.mxu0 0.0
  %1932 = vmatpush1.msra.mxu0 0.0
  %1933 = vmatprep.subr.mxu0 0.0
  %1934 = vmatpush1.msra.mxu0 0.0
  %1935 = vmatprep.subr.mxu0 0.0
  %1936 = vmatpush1.msra.mxu0 0.0
  %1937 = vmatprep.subr.mxu0 0.0
  %1938 = vmatpush1.msra.mxu0 0.0
  %1939 = vmatprep.subr.mxu0 0.0
  %1940 = vmatpush1.msra.mxu0 0.0
  %1941 = vmatprep.subr.mxu0 0.0
  %1942 = vmatpush1.msra.mxu0 0.0
  %1943 = vmatprep.subr.mxu0 0.0
  %1944 = vmatpush1.msra.mxu0 0.0
  %1945 = vmatprep.subr.mxu0 0.0
  %1946 = vmatpush1.msra.mxu0 0.0
  %1947 = vmatprep.subr.mxu0 0.0
  %1948 = vmatpush1.msra.mxu0 0.0
  %1949 = vmatprep.subr.mxu0 0.0
  %1950 = vmatpush1.msra.mxu0 0.0
  %1951 = vmatprep.subr.mxu0 0.0
  %1952 = vmatpush1.msra.mxu0 0.0
  %1953 = vmatprep.subr.mxu0 0.0
  %1954 = vmatpush1.msra.mxu0 0.0
  %1955 = vmatprep.subr.mxu0 0.0
  %1956 = vmatpush1.msra.mxu0 0.0
  %1957 = vmatprep.subr.mxu0 0.0
  %1958 = vmatpush1.msra.mxu0 0.0
  %1959 = vmatprep.mubr.f32.mxu0 0.0
  %1960 = vmatmul.mubr.f32.gmra.mrb[0].mxu0 %v1893
  %v1961 = vpop.f32.mrb[0].mxu0
  %v1962 = vadd.f32 %v1890, %v1961
  %v1963 = vpop.f32.mrb[0].mxu0
  %1964 = vdwg.mxu0
  %v1965 = vadd.f32 %v1962, %v187
  %v1966 = vand.u32 2147483647, %v1965
  %vm1967 = vcmp.le.f32.partialorder %v1966, 0.7853982
  %vm1968 = vcmp.lt.s32.totalorder %v1965, 0
  %v1969 = vand.u32 %v1965, 2139095040
  %v1970 = vshrl.u32 %v1969, 23
  %v1971 = vsub.s32 %v1970, 127
  %v1972 = vand.u32 2147483647, %v1965
  %v1973 = vand.u32 %v1972, 8388607
  %v1974 = vor.u32 %v1973, 8388608
  %v1975 = vsub.s32 0, %v1974
  %v1976 = vadd.s32 %v1971, 1
  %vm1977 = vcmp.gt.s32.totalorder %v1976, 0
  %v1978 = vsel %vm1977, %v1976, 0
  %v1979 = vshrl.u32 %v1978, 5
  %v1980 = vand.u32 %v1978, 31
  %v1981 = vsub.s32 32, %v1980
  %v1982 = vshrl.u32 683565275, %v1981
  %v1983 = vshll.u32 683565275, %v1980
  %v1984 = vshrl.u32 2475754826, %v1981
  %v1985 = vor.u32 %v1983, %v1984
  %v1986 = vshll.u32 2475754826, %v1980
  %v1987 = vshrl.u32 2131351028, %v1981
  %v1988 = vor.u32 %v1986, %v1987
  %v1989 = vshll.u32 2131351028, %v1980
  %v1990 = vshrl.u32 2102212464, %v1981
  %v1991 = vor.u32 %v1989, %v1990
  %v1992 = vshll.u32 2102212464, %v1980
  %v1993 = vshrl.u32 920167782, %v1981
  %v1994 = vor.u32 %v1992, %v1993
  %v1995 = vshll.u32 920167782, %v1980
  %v1996 = vshrl.u32 1326507024, %v1981
  %v1997 = vor.u32 %v1995, %v1996
  %vm1998 = vcmp.lt.s32.totalorder %v1979, 1
  %vm1999 = vcmp.lt.s32.totalorder %v1979, 2
  %vm2000 = vcmp.lt.s32.totalorder %v1979, 3
  %vm2001 = vcmp.lt.s32.totalorder %v1979, 4
  %v2002 = vsel %vm1998, %v1982, %v1985
  %v2003 = vsel %vm2001, %v1991, 2102212464
  %v2004 = vsel %vm2000, %v1988, %v2003
  %v2005 = vsel %vm1999, %v2002, %v2004
  %v2006 = vsel %vm1998, %v1985, %v1988
  %v2007 = vsel %vm2001, %v1994, 920167782
  %v2008 = vsel %vm2000, %v1991, %v2007
  %v2009 = vsel %vm1999, %v2006, %v2008
  %v2010 = vsel %vm1998, %v1988, %v1991
  %v2011 = vsel %vm2001, %v1997, 1326507024
  %v2012 = vsel %vm2000, %v1994, %v2011
  %v2013 = vsel %vm1999, %v2010, %v2012
  %v2014 = vshll.u32 %v1974, 8
  %v2015 = vmul.u32.u64.compose %v2014, %v2013
  %v2016 = vextract.low.u32 %v2015
  %v2017 = vextract.high.u32 %v2015
  %v2018 = vmul.u32.u64.compose %v2014, %v2009
  %v2019 = vextract.low.u32 %v2018
  %v2020 = vextract.high.u32 %v2018
  %v2021 = vmul.u32 %v2014, %v2005
  %v2022 = vadd.s32 %v2017, %v2019
  %vm2023 = vc.u32 %v2017, %v2019
  %v2024 = vadd.s32 %v2020, 1
  %v2025 = vsel %vm2023, %v2024, %v2020
  %v2026 = vadd.s32 %v2021, %v2025
  %v2027 = vadd.s32 %v2026, 536870912
  %v2028 = vshrl.u32 %v2027, 30
  %v2029 = vshll.u32 %v2028, 30
  %v2030 = vsub.s32 %v2026, %v2029
  %vm2031 = vcmp.lt.s32.totalorder %v2030, 0
  %v2032 = vsub.s32 0, %v2030
  %v2033 = vsel %vm2031, %v2032, %v2030
  %v2034 = vclz %v2033
  %v2035 = vsub.s32 %v2034, 2
  %vm2036 = vcmp.gt.s32.totalorder 0, %v2035
  %v2037 = vsel %vm2036, 0, %v2035
  %v2038 = vsub.s32 32, %v2037
  %v2039 = vshll.u32 %v2030, %v2037
  %v2040 = vshrl.u32 %v2022, %v2038
  %v2041 = vor.u32 %v2039, %v2040
  %v2042 = vsub.s32 4294967266, %v2037
  %v2043 = vadd.s32 %v2042, 127
  %v2044 = vshll.u32 %v2043, 23
  %v2045 = vor.u32 4788187, %v2044
  %v2046 = vand.u32 2147483647, %v2045
  %v2048 = vcvt.s32.f32 %v2041
  %v2049 = vmul.f32 %v2048, %v2046
  %v2050 = vxor.u32 %v2049, 2147483648
  %v2051 = vsel %vm1968, %v2050, %v2049
  %v2052 = vsub.s32 4, %v2028
  %v2053 = vsel %vm1968, %v2052, %v2028
  %v2054 = vsel %vm1967, %v1965, %v2051
  %v2055 = vsel %vm1967, 0, %v2053
  %v2056 = vcosq.f32.pop %v2054
  %v2057 = vsinq.f32.pop %v2054
  %vm2058 = vweird.f32 %v1965
  %v2059 = vand.u32 %v2055, 3
  %vm2060 = vcmp.lt.s32.totalorder %v2059, 2
  %vm2061 = vcmp.eq.s32.totalorder %v2059, 0
  %v2062 = vxor.u32 %v2057, 2147483648
  %v2063 = vsel %vm2061, %v2056, %v2062
  %vm2064 = vcmp.eq.s32.totalorder %v2059, 2
  %v2065 = vxor.u32 %v2056, 2147483648
  %v2066 = vsel %vm2064, %v2065, %v2057
  %v2067 = vsel %vm2060, %v2063, %v2066
  %v2068 = vsel %vm2058, nan, %v2067
  %v2070 = vsel %vm299, %v2068, 0
  %2072 = vmatprep.subr.mxu0 0.0
  %2073 = vmatpush1.msra.mxu0 %v31
  %2074 = vmatprep.subr.mxu0 0.0
  %2075 = vmatpush1.msra.mxu0 %v32
  %2076 = vmatprep.subr.mxu0 0.0
  %2077 = vmatpush1.msra.mxu0 0.0
  %2078 = vmatprep.subr.mxu0 0.0
  %2079 = vmatpush1.msra.mxu0 0.0
  %2080 = vmatprep.subr.mxu0 0.0
  %2081 = vmatpush1.msra.mxu0 0.0
  %2082 = vmatprep.subr.mxu0 0.0
  %2083 = vmatpush1.msra.mxu0 0.0
  %2084 = vmatprep.subr.mxu0 0.0
  %2085 = vmatpush1.msra.mxu0 0.0
  %2086 = vmatprep.subr.mxu0 0.0
  %2087 = vmatpush1.msra.mxu0 0.0
  %2088 = vmatprep.subr.mxu0 0.0
  %2089 = vmatpush1.msra.mxu0 0.0
  %2090 = vmatprep.subr.mxu0 0.0
  %2091 = vmatpush1.msra.mxu0 0.0
  %2092 = vmatprep.subr.mxu0 0.0
  %2093 = vmatpush1.msra.mxu0 0.0
  %2094 = vmatprep.subr.mxu0 0.0
  %2095 = vmatpush1.msra.mxu0 0.0
  %2096 = vmatprep.subr.mxu0 0.0
  %2097 = vmatpush1.msra.mxu0 0.0
  %2098 = vmatprep.subr.mxu0 0.0
  %2099 = vmatpush1.msra.mxu0 0.0
  %2100 = vmatprep.subr.mxu0 0.0
  %2101 = vmatpush1.msra.mxu0 0.0
  %2102 = vmatprep.subr.mxu0 0.0
  %2103 = vmatpush1.msra.mxu0 0.0
  %2104 = vmatprep.subr.mxu0 0.0
  %2105 = vmatpush1.msra.mxu0 0.0
  %2106 = vmatprep.subr.mxu0 0.0
  %2107 = vmatpush1.msra.mxu0 0.0
  %2108 = vmatprep.subr.mxu0 0.0
  %2109 = vmatpush1.msra.mxu0 0.0
  %2110 = vmatprep.subr.mxu0 0.0
  %2111 = vmatpush1.msra.mxu0 0.0
  %2112 = vmatprep.subr.mxu0 0.0
  %2113 = vmatpush1.msra.mxu0 0.0
  %2114 = vmatprep.subr.mxu0 0.0
  %2115 = vmatpush1.msra.mxu0 0.0
  %2116 = vmatprep.subr.mxu0 0.0
  %2117 = vmatpush1.msra.mxu0 0.0
  %2118 = vmatprep.subr.mxu0 0.0
  %2119 = vmatpush1.msra.mxu0 0.0
  %2120 = vmatprep.subr.mxu0 0.0
  %2121 = vmatpush1.msra.mxu0 0.0
  %2122 = vmatprep.subr.mxu0 0.0
  %2123 = vmatpush1.msra.mxu0 0.0
  %2124 = vmatprep.subr.mxu0 0.0
  %2125 = vmatpush1.msra.mxu0 0.0
  %2126 = vmatprep.subr.mxu0 0.0
  %2127 = vmatpush1.msra.mxu0 0.0
  %2128 = vmatprep.subr.mxu0 0.0
  %2129 = vmatpush1.msra.mxu0 0.0
  %2130 = vmatprep.subr.mxu0 0.0
  %2131 = vmatpush1.msra.mxu0 0.0
  %2132 = vmatprep.subr.mxu0 0.0
  %2133 = vmatpush1.msra.mxu0 0.0
  %2134 = vmatprep.subr.mxu0 0.0
  %2135 = vmatpush1.msra.mxu0 0.0
  %2136 = vmatprep.mubr.f32.mxu0 0.0
  %2137 = vmatmul.mubr.f32.gmra.mrb[0].mxu0 %v2070
  %v2138 = vpop.f32.mrb[0].mxu0
  %v2139 = vadd.f32 %v297, %v2138
  %v2140 = vpop.f32.mrb[0].mxu0
  %2141 = vdwg.mxu0
  %v2142 = vxor.u32 %v2139, 2147483648
  %v2143 = vmul.f32 %v2142, 1.442695
  %v2144 = vpow.pop %v2143
  %v2145 = vadd.f32 %v2144, 1.0
  %v2146 = vrcp.pop %v2145
  %v2147 = vmul.f32 1.0, %v2146
  %v2148 = vtanh.pop %v2139
  %v2149 = vmul.f32 %v2147, %v1805
  %2151 = vrot.lane.b32.xlu0 %v2148, 96
  %v2152 = vpop.permute.xlu0 %2151
  %v2154 = vmul.f32 %v2147, %v2152
  %2156 = vrot.lane.b32.xlu0 %v2154, 96
  %v2157 = vpop.permute.xlu0 %2156
  %v2159 = vadd.f32 %v2149, %v2157
  %v2160 = vtanh.pop %v2159
  %2162 = vrot.lane.b32.xlu0 %v2160, 96
  %v2163 = vpop.permute.xlu0 %2162
  %v2165 = vmul.f32 %v2147, %v2163
  %2167 = vrot.lane.b32.xlu0 %v2165, 32
  %v2168 = vpop.permute.xlu0 %2167
  %s2170 = scalar_lea.vmem %s6, 40
  %2171 = vst.msk [vmem:[%s2170] sm:$0xff] %vm109, %v2168
  %s2172 = scalar_lea.vmem %s0, 48
  %v2173 = vld [vmem:[%s2172] sm:$0xff]
  %v2175 = vsel %vm35, %v2173, 0
  %2177 = vmatprep.subr.mxu0 0.0
  %2178 = vmatpush1.msra.mxu0 %v29
  %2179 = vmatprep.subr.mxu0 0.0
  %2180 = vmatpush1.msra.mxu0 0.0
  %2181 = vmatprep.subr.mxu0 0.0
  %2182 = vmatpush1.msra.mxu0 0.0
  %2183 = vmatprep.subr.mxu0 0.0
  %2184 = vmatpush1.msra.mxu0 0.0
  %2185 = vmatprep.subr.mxu0 0.0
  %2186 = vmatpush1.msra.mxu0 0.0
  %2187 = vmatprep.subr.mxu0 0.0
  %2188 = vmatpush1.msra.mxu0 0.0
  %2189 = vmatprep.subr.mxu0 0.0
  %2190 = vmatpush1.msra.mxu0 0.0
  %2191 = vmatprep.subr.mxu0 0.0
  %2192 = vmatpush1.msra.mxu0 0.0
  %2193 = vmatprep.subr.mxu0 0.0
  %2194 = vmatpush1.msra.mxu0 0.0
  %2195 = vmatprep.subr.mxu0 0.0
  %2196 = vmatpush1.msra.mxu0 0.0
  %2197 = vmatprep.subr.mxu0 0.0
  %2198 = vmatpush1.msra.mxu0 0.0
  %2199 = vmatprep.subr.mxu0 0.0
  %2200 = vmatpush1.msra.mxu0 0.0
  %2201 = vmatprep.subr.mxu0 0.0
  %2202 = vmatpush1.msra.mxu0 0.0
  %2203 = vmatprep.subr.mxu0 0.0
  %2204 = vmatpush1.msra.mxu0 0.0
  %2205 = vmatprep.subr.mxu0 0.0
  %2206 = vmatpush1.msra.mxu0 0.0
  %2207 = vmatprep.subr.mxu0 0.0
  %2208 = vmatpush1.msra.mxu0 0.0
  %2209 = vmatprep.subr.mxu0 0.0
  %2210 = vmatpush1.msra.mxu0 0.0
  %2211 = vmatprep.subr.mxu0 0.0
  %2212 = vmatpush1.msra.mxu0 0.0
  %2213 = vmatprep.subr.mxu0 0.0
  %2214 = vmatpush1.msra.mxu0 0.0
  %2215 = vmatprep.subr.mxu0 0.0
  %2216 = vmatpush1.msra.mxu0 0.0
  %2217 = vmatprep.subr.mxu0 0.0
  %2218 = vmatpush1.msra.mxu0 0.0
  %2219 = vmatprep.subr.mxu0 0.0
  %2220 = vmatpush1.msra.mxu0 0.0
  %2221 = vmatprep.subr.mxu0 0.0
  %2222 = vmatpush1.msra.mxu0 0.0
  %2223 = vmatprep.subr.mxu0 0.0
  %2224 = vmatpush1.msra.mxu0 0.0
  %2225 = vmatprep.subr.mxu0 0.0
  %2226 = vmatpush1.msra.mxu0 0.0
  %2227 = vmatprep.subr.mxu0 0.0
  %2228 = vmatpush1.msra.mxu0 0.0
  %2229 = vmatprep.subr.mxu0 0.0
  %2230 = vmatpush1.msra.mxu0 0.0
  %2231 = vmatprep.subr.mxu0 0.0
  %2232 = vmatpush1.msra.mxu0 0.0
  %2233 = vmatprep.subr.mxu0 0.0
  %2234 = vmatpush1.msra.mxu0 0.0
  %2235 = vmatprep.subr.mxu0 0.0
  %2236 = vmatpush1.msra.mxu0 0.0
  %2237 = vmatprep.subr.mxu0 0.0
  %2238 = vmatpush1.msra.mxu0 0.0
  %2239 = vmatprep.subr.mxu0 0.0
  %2240 = vmatpush1.msra.mxu0 0.0
  %2241 = vmatprep.mubr.f32.mxu0 0.0
  %2242 = vmatmul.mubr.f32.gmra.mrb[0].mxu0 %v2175
  %v2243 = vpop.f32.mrb[0].mxu0
  %v2244 = vadd.f32 0.0, %v2243
  %v2245 = vpop.f32.mrb[0].mxu0
  %2246 = vdwg.mxu0
  %v2247 = vsel %vm109, %v2168, 0
  %2249 = vmatprep.subr.mxu0 0.0
  %2250 = vmatpush1.msra.mxu0 %v25
  %2251 = vmatprep.subr.mxu0 0.0
  %2252 = vmatpush1.msra.mxu0 %v26
  %2253 = vmatprep.subr.mxu0 0.0
  %2254 = vmatpush1.msra.mxu0 %v27
  %2255 = vmatprep.subr.mxu0 0.0
  %2256 = vmatpush1.msra.mxu0 %v28
  %2257 = vmatprep.subr.mxu0 0.0
  %2258 = vmatpush1.msra.mxu0 0.0
  %2259 = vmatprep.subr.mxu0 0.0
  %2260 = vmatpush1.msra.mxu0 0.0
  %2261 = vmatprep.subr.mxu0 0.0
  %2262 = vmatpush1.msra.mxu0 0.0
  %2263 = vmatprep.subr.mxu0 0.0
  %2264 = vmatpush1.msra.mxu0 0.0
  %2265 = vmatprep.subr.mxu0 0.0
  %2266 = vmatpush1.msra.mxu0 0.0
  %2267 = vmatprep.subr.mxu0 0.0
  %2268 = vmatpush1.msra.mxu0 0.0
  %2269 = vmatprep.subr.mxu0 0.0
  %2270 = vmatpush1.msra.mxu0 0.0
  %2271 = vmatprep.subr.mxu0 0.0
  %2272 = vmatpush1.msra.mxu0 0.0
  %2273 = vmatprep.subr.mxu0 0.0
  %2274 = vmatpush1.msra.mxu0 0.0
  %2275 = vmatprep.subr.mxu0 0.0
  %2276 = vmatpush1.msra.mxu0 0.0
  %2277 = vmatprep.subr.mxu0 0.0
  %2278 = vmatpush1.msra.mxu0 0.0
  %2279 = vmatprep.subr.mxu0 0.0
  %2280 = vmatpush1.msra.mxu0 0.0
  %2281 = vmatprep.subr.mxu0 0.0
  %2282 = vmatpush1.msra.mxu0 0.0
  %2283 = vmatprep.subr.mxu0 0.0
  %2284 = vmatpush1.msra.mxu0 0.0
  %2285 = vmatprep.subr.mxu0 0.0
  %2286 = vmatpush1.msra.mxu0 0.0
  %2287 = vmatprep.subr.mxu0 0.0
  %2288 = vmatpush1.msra.mxu0 0.0
  %2289 = vmatprep.subr.mxu0 0.0
  %2290 = vmatpush1.msra.mxu0 0.0
  %2291 = vmatprep.subr.mxu0 0.0
  %2292 = vmatpush1.msra.mxu0 0.0
  %2293 = vmatprep.subr.mxu0 0.0
  %2294 = vmatpush1.msra.mxu0 0.0
  %2295 = vmatprep.subr.mxu0 0.0
  %2296 = vmatpush1.msra.mxu0 0.0
  %2297 = vmatprep.subr.mxu0 0.0
  %2298 = vmatpush1.msra.mxu0 0.0
  %2299 = vmatprep.subr.mxu0 0.0
  %2300 = vmatpush1.msra.mxu0 0.0
  %2301 = vmatprep.subr.mxu0 0.0
  %2302 = vmatpush1.msra.mxu0 0.0
  %2303 = vmatprep.subr.mxu0 0.0
  %2304 = vmatpush1.msra.mxu0 0.0
  %2305 = vmatprep.subr.mxu0 0.0
  %2306 = vmatpush1.msra.mxu0 0.0
  %2307 = vmatprep.subr.mxu0 0.0
  %2308 = vmatpush1.msra.mxu0 0.0
  %2309 = vmatprep.subr.mxu0 0.0
  %2310 = vmatpush1.msra.mxu0 0.0
  %2311 = vmatprep.subr.mxu0 0.0
  %2312 = vmatpush1.msra.mxu0 0.0
  %2313 = vmatprep.mubr.f32.mxu0 0.0
  %2314 = vmatmul.mubr.f32.gmra.mrb[0].mxu0 %v2247
  %v2315 = vpop.f32.mrb[0].mxu0
  %v2316 = vadd.f32 %v2244, %v2315
  %v2317 = vpop.f32.mrb[0].mxu0
  %2318 = vdwg.mxu0
  %v2319 = vadd.f32 %v2316, %v187
  %v2320 = vand.u32 2147483647, %v2319
  %vm2321 = vcmp.le.f32.partialorder %v2320, 0.7853982
  %vm2322 = vcmp.lt.s32.totalorder %v2319, 0
  %v2323 = vand.u32 %v2319, 2139095040
  %v2324 = vshrl.u32 %v2323, 23
  %v2325 = vsub.s32 %v2324, 127
  %v2326 = vand.u32 2147483647, %v2319
  %v2327 = vand.u32 %v2326, 8388607
  %v2328 = vor.u32 %v2327, 8388608
  %v2329 = vsub.s32 0, %v2328
  %v2330 = vadd.s32 %v2325, 1
  %vm2331 = vcmp.gt.s32.totalorder %v2330, 0
  %v2332 = vsel %vm2331, %v2330, 0
  %v2333 = vshrl.u32 %v2332, 5
  %v2334 = vand.u32 %v2332, 31
  %v2335 = vsub.s32 32, %v2334
  %v2336 = vshrl.u32 683565275, %v2335
  %v2337 = vshll.u32 683565275, %v2334
  %v2338 = vshrl.u32 2475754826, %v2335
  %v2339 = vor.u32 %v2337, %v2338
  %v2340 = vshll.u32 2475754826, %v2334
  %v2341 = vshrl.u32 2131351028, %v2335
  %v2342 = vor.u32 %v2340, %v2341
  %v2343 = vshll.u32 2131351028, %v2334
  %v2344 = vshrl.u32 2102212464, %v2335
  %v2345 = vor.u32 %v2343, %v2344
  %v2346 = vshll.u32 2102212464, %v2334
  %v2347 = vshrl.u32 920167782, %v2335
  %v2348 = vor.u32 %v2346, %v2347
  %v2349 = vshll.u32 920167782, %v2334
  %v2350 = vshrl.u32 1326507024, %v2335
  %v2351 = vor.u32 %v2349, %v2350
  %vm2352 = vcmp.lt.s32.totalorder %v2333, 1
  %vm2353 = vcmp.lt.s32.totalorder %v2333, 2
  %vm2354 = vcmp.lt.s32.totalorder %v2333, 3
  %vm2355 = vcmp.lt.s32.totalorder %v2333, 4
  %v2356 = vsel %vm2352, %v2336, %v2339
  %v2357 = vsel %vm2355, %v2345, 2102212464
  %v2358 = vsel %vm2354, %v2342, %v2357
  %v2359 = vsel %vm2353, %v2356, %v2358
  %v2360 = vsel %vm2352, %v2339, %v2342
  %v2361 = vsel %vm2355, %v2348, 920167782
  %v2362 = vsel %vm2354, %v2345, %v2361
  %v2363 = vsel %vm2353, %v2360, %v2362
  %v2364 = vsel %vm2352, %v2342, %v2345
  %v2365 = vsel %vm2355, %v2351, 1326507024
  %v2366 = vsel %vm2354, %v2348, %v2365
  %v2367 = vsel %vm2353, %v2364, %v2366
  %v2368 = vshll.u32 %v2328, 8
  %v2369 = vmul.u32.u64.compose %v2368, %v2367
  %v2370 = vextract.low.u32 %v2369
  %v2371 = vextract.high.u32 %v2369
  %v2372 = vmul.u32.u64.compose %v2368, %v2363
  %v2373 = vextract.low.u32 %v2372
  %v2374 = vextract.high.u32 %v2372
  %v2375 = vmul.u32 %v2368, %v2359
  %v2376 = vadd.s32 %v2371, %v2373
  %vm2377 = vc.u32 %v2371, %v2373
  %v2378 = vadd.s32 %v2374, 1
  %v2379 = vsel %vm2377, %v2378, %v2374
  %v2380 = vadd.s32 %v2375, %v2379
  %v2381 = vadd.s32 %v2380, 536870912
  %v2382 = vshrl.u32 %v2381, 30
  %v2383 = vshll.u32 %v2382, 30
  %v2384 = vsub.s32 %v2380, %v2383
  %vm2385 = vcmp.lt.s32.totalorder %v2384, 0
  %v2386 = vsub.s32 0, %v2384
  %v2387 = vsel %vm2385, %v2386, %v2384
  %v2388 = vclz %v2387
  %v2389 = vsub.s32 %v2388, 2
  %vm2390 = vcmp.gt.s32.totalorder 0, %v2389
  %v2391 = vsel %vm2390, 0, %v2389
  %v2392 = vsub.s32 32, %v2391
  %v2393 = vshll.u32 %v2384, %v2391
  %v2394 = vshrl.u32 %v2376, %v2392
  %v2395 = vor.u32 %v2393, %v2394
  %v2396 = vsub.s32 4294967266, %v2391
  %v2397 = vadd.s32 %v2396, 127
  %v2398 = vshll.u32 %v2397, 23
  %v2399 = vor.u32 4788187, %v2398
  %v2400 = vand.u32 2147483647, %v2399
  %v2402 = vcvt.s32.f32 %v2395
  %v2403 = vmul.f32 %v2402, %v2400
  %v2404 = vxor.u32 %v2403, 2147483648
  %v2405 = vsel %vm2322, %v2404, %v2403
  %v2406 = vsub.s32 4, %v2382
  %v2407 = vsel %vm2322, %v2406, %v2382
  %v2408 = vsel %vm2321, %v2319, %v2405
  %v2409 = vsel %vm2321, 0, %v2407
  %v2410 = vcosq.f32.pop %v2408
  %v2411 = vsinq.f32.pop %v2408
  %vm2412 = vweird.f32 %v2319
  %v2413 = vand.u32 %v2409, 3
  %vm2414 = vcmp.lt.s32.totalorder %v2413, 2
  %vm2415 = vcmp.eq.s32.totalorder %v2413, 0
  %v2416 = vxor.u32 %v2411, 2147483648
  %v2417 = vsel %vm2415, %v2410, %v2416
  %vm2418 = vcmp.eq.s32.totalorder %v2413, 2
  %v2419 = vxor.u32 %v2410, 2147483648
  %v2420 = vsel %vm2418, %v2419, %v2411
  %v2421 = vsel %vm2414, %v2417, %v2420
  %v2422 = vsel %vm2412, nan, %v2421
  %v2424 = vsel %vm299, %v2422, 0
  %2426 = vmatprep.subr.mxu0 0.0
  %2427 = vmatpush1.msra.mxu0 %v31
  %2428 = vmatprep.subr.mxu0 0.0
  %2429 = vmatpush1.msra.mxu0 %v32
  %2430 = vmatprep.subr.mxu0 0.0
  %2431 = vmatpush1.msra.mxu0 0.0
  %2432 = vmatprep.subr.mxu0 0.0
  %2433 = vmatpush1.msra.mxu0 0.0
  %2434 = vmatprep.subr.mxu0 0.0
  %2435 = vmatpush1.msra.mxu0 0.0
  %2436 = vmatprep.subr.mxu0 0.0
  %2437 = vmatpush1.msra.mxu0 0.0
  %2438 = vmatprep.subr.mxu0 0.0
  %2439 = vmatpush1.msra.mxu0 0.0
  %2440 = vmatprep.subr.mxu0 0.0
  %2441 = vmatpush1.msra.mxu0 0.0
  %2442 = vmatprep.subr.mxu0 0.0
  %2443 = vmatpush1.msra.mxu0 0.0
  %2444 = vmatprep.subr.mxu0 0.0
  %2445 = vmatpush1.msra.mxu0 0.0
  %2446 = vmatprep.subr.mxu0 0.0
  %2447 = vmatpush1.msra.mxu0 0.0
  %2448 = vmatprep.subr.mxu0 0.0
  %2449 = vmatpush1.msra.mxu0 0.0
  %2450 = vmatprep.subr.mxu0 0.0
  %2451 = vmatpush1.msra.mxu0 0.0
  %2452 = vmatprep.subr.mxu0 0.0
  %2453 = vmatpush1.msra.mxu0 0.0
  %2454 = vmatprep.subr.mxu0 0.0
  %2455 = vmatpush1.msra.mxu0 0.0
  %2456 = vmatprep.subr.mxu0 0.0
  %2457 = vmatpush1.msra.mxu0 0.0
  %2458 = vmatprep.subr.mxu0 0.0
  %2459 = vmatpush1.msra.mxu0 0.0
  %2460 = vmatprep.subr.mxu0 0.0
  %2461 = vmatpush1.msra.mxu0 0.0
  %2462 = vmatprep.subr.mxu0 0.0
  %2463 = vmatpush1.msra.mxu0 0.0
  %2464 = vmatprep.subr.mxu0 0.0
  %2465 = vmatpush1.msra.mxu0 0.0
  %2466 = vmatprep.subr.mxu0 0.0
  %2467 = vmatpush1.msra.mxu0 0.0
  %2468 = vmatprep.subr.mxu0 0.0
  %2469 = vmatpush1.msra.mxu0 0.0
  %2470 = vmatprep.subr.mxu0 0.0
  %2471 = vmatpush1.msra.mxu0 0.0
  %2472 = vmatprep.subr.mxu0 0.0
  %2473 = vmatpush1.msra.mxu0 0.0
  %2474 = vmatprep.subr.mxu0 0.0
  %2475 = vmatpush1.msra.mxu0 0.0
  %2476 = vmatprep.subr.mxu0 0.0
  %2477 = vmatpush1.msra.mxu0 0.0
  %2478 = vmatprep.subr.mxu0 0.0
  %2479 = vmatpush1.msra.mxu0 0.0
  %2480 = vmatprep.subr.mxu0 0.0
  %2481 = vmatpush1.msra.mxu0 0.0
  %2482 = vmatprep.subr.mxu0 0.0
  %2483 = vmatpush1.msra.mxu0 0.0
  %2484 = vmatprep.subr.mxu0 0.0
  %2485 = vmatpush1.msra.mxu0 0.0
  %2486 = vmatprep.subr.mxu0 0.0
  %2487 = vmatpush1.msra.mxu0 0.0
  %2488 = vmatprep.subr.mxu0 0.0
  %2489 = vmatpush1.msra.mxu0 0.0
  %2490 = vmatprep.mubr.f32.mxu0 0.0
  %2491 = vmatmul.mubr.f32.gmra.mrb[0].mxu0 %v2424
  %v2492 = vpop.f32.mrb[0].mxu0
  %v2493 = vadd.f32 %v297, %v2492
  %v2494 = vpop.f32.mrb[0].mxu0
  %2495 = vdwg.mxu0
  %v2496 = vxor.u32 %v2493, 2147483648
  %v2497 = vmul.f32 %v2496, 1.442695
  %v2498 = vpow.pop %v2497
  %v2499 = vadd.f32 %v2498, 1.0
  %v2500 = vrcp.pop %v2499
  %v2501 = vmul.f32 1.0, %v2500
  %v2502 = vtanh.pop %v2493
  %v2503 = vmul.f32 %v2501, %v2159
  %2505 = vrot.lane.b32.xlu0 %v2502, 96
  %v2506 = vpop.permute.xlu0 %2505
  %v2508 = vmul.f32 %v2501, %v2506
  %2510 = vrot.lane.b32.xlu0 %v2508, 96
  %v2511 = vpop.permute.xlu0 %2510
  %v2513 = vadd.f32 %v2503, %v2511
  %v2514 = vtanh.pop %v2513
  %2516 = vrot.lane.b32.xlu0 %v2514, 96
  %v2517 = vpop.permute.xlu0 %2516
  %v2519 = vmul.f32 %v2501, %v2517
  %2521 = vrot.lane.b32.xlu0 %v2519, 32
  %v2522 = vpop.permute.xlu0 %2521
  %s2524 = scalar_lea.vmem %s6, 48
  %2525 = vst.msk [vmem:[%s2524] sm:$0xff] %vm109, %v2522
  %s2526 = scalar_lea.vmem %s0, 56
  %v2527 = vld [vmem:[%s2526] sm:$0xff]
  %v2529 = vsel %vm35, %v2527, 0
  %2531 = vmatprep.subr.mxu0 0.0
  %2532 = vmatpush1.msra.mxu0 %v29
  %2533 = vmatprep.subr.mxu0 0.0
  %2534 = vmatpush1.msra.mxu0 0.0
  %2535 = vmatprep.subr.mxu0 0.0
  %2536 = vmatpush1.msra.mxu0 0.0
  %2537 = vmatprep.subr.mxu0 0.0
  %2538 = vmatpush1.msra.mxu0 0.0
  %2539 = vmatprep.subr.mxu0 0.0
  %2540 = vmatpush1.msra.mxu0 0.0
  %2541 = vmatprep.subr.mxu0 0.0
  %2542 = vmatpush1.msra.mxu0 0.0
  %2543 = vmatprep.subr.mxu0 0.0
  %2544 = vmatpush1.msra.mxu0 0.0
  %2545 = vmatprep.subr.mxu0 0.0
  %2546 = vmatpush1.msra.mxu0 0.0
  %2547 = vmatprep.subr.mxu0 0.0
  %2548 = vmatpush1.msra.mxu0 0.0
  %2549 = vmatprep.subr.mxu0 0.0
  %2550 = vmatpush1.msra.mxu0 0.0
  %2551 = vmatprep.subr.mxu0 0.0
  %2552 = vmatpush1.msra.mxu0 0.0
  %2553 = vmatprep.subr.mxu0 0.0
  %2554 = vmatpush1.msra.mxu0 0.0
  %2555 = vmatprep.subr.mxu0 0.0
  %2556 = vmatpush1.msra.mxu0 0.0
  %2557 = vmatprep.subr.mxu0 0.0
  %2558 = vmatpush1.msra.mxu0 0.0
  %2559 = vmatprep.subr.mxu0 0.0
  %2560 = vmatpush1.msra.mxu0 0.0
  %2561 = vmatprep.subr.mxu0 0.0
  %2562 = vmatpush1.msra.mxu0 0.0
  %2563 = vmatprep.subr.mxu0 0.0
  %2564 = vmatpush1.msra.mxu0 0.0
  %2565 = vmatprep.subr.mxu0 0.0
  %2566 = vmatpush1.msra.mxu0 0.0
  %2567 = vmatprep.subr.mxu0 0.0
  %2568 = vmatpush1.msra.mxu0 0.0
  %2569 = vmatprep.subr.mxu0 0.0
  %2570 = vmatpush1.msra.mxu0 0.0
  %2571 = vmatprep.subr.mxu0 0.0
  %2572 = vmatpush1.msra.mxu0 0.0
  %2573 = vmatprep.subr.mxu0 0.0
  %2574 = vmatpush1.msra.mxu0 0.0
  %2575 = vmatprep.subr.mxu0 0.0
  %2576 = vmatpush1.msra.mxu0 0.0
  %2577 = vmatprep.subr.mxu0 0.0
  %2578 = vmatpush1.msra.mxu0 0.0
  %2579 = vmatprep.subr.mxu0 0.0
  %2580 = vmatpush1.msra.mxu0 0.0
  %2581 = vmatprep.subr.mxu0 0.0
  %2582 = vmatpush1.msra.mxu0 0.0
  %2583 = vmatprep.subr.mxu0 0.0
  %2584 = vmatpush1.msra.mxu0 0.0
  %2585 = vmatprep.subr.mxu0 0.0
  %2586 = vmatpush1.msra.mxu0 0.0
  %2587 = vmatprep.subr.mxu0 0.0
  %2588 = vmatpush1.msra.mxu0 0.0
  %2589 = vmatprep.subr.mxu0 0.0
  %2590 = vmatpush1.msra.mxu0 0.0
  %2591 = vmatprep.subr.mxu0 0.0
  %2592 = vmatpush1.msra.mxu0 0.0
  %2593 = vmatprep.subr.mxu0 0.0
  %2594 = vmatpush1.msra.mxu0 0.0
  %2595 = vmatprep.mubr.f32.mxu0 0.0
  %2596 = vmatmul.mubr.f32.gmra.mrb[0].mxu0 %v2529
  %v2597 = vpop.f32.mrb[0].mxu0
  %v2598 = vadd.f32 0.0, %v2597
  %v2599 = vpop.f32.mrb[0].mxu0
  %2600 = vdwg.mxu0
  %v2601 = vsel %vm109, %v2522, 0
  %2603 = vmatprep.subr.mxu0 0.0
  %2604 = vmatpush1.msra.mxu0 %v25
  %2605 = vmatprep.subr.mxu0 0.0
  %2606 = vmatpush1.msra.mxu0 %v26
  %2607 = vmatprep.subr.mxu0 0.0
  %2608 = vmatpush1.msra.mxu0 %v27
  %2609 = vmatprep.subr.mxu0 0.0
  %2610 = vmatpush1.msra.mxu0 %v28
  %2611 = vmatprep.subr.mxu0 0.0
  %2612 = vmatpush1.msra.mxu0 0.0
  %2613 = vmatprep.subr.mxu0 0.0
  %2614 = vmatpush1.msra.mxu0 0.0
  %2615 = vmatprep.subr.mxu0 0.0
  %2616 = vmatpush1.msra.mxu0 0.0
  %2617 = vmatprep.subr.mxu0 0.0
  %2618 = vmatpush1.msra.mxu0 0.0
  %2619 = vmatprep.subr.mxu0 0.0
  %2620 = vmatpush1.msra.mxu0 0.0
  %2621 = vmatprep.subr.mxu0 0.0
  %2622 = vmatpush1.msra.mxu0 0.0
  %2623 = vmatprep.subr.mxu0 0.0
  %2624 = vmatpush1.msra.mxu0 0.0
  %2625 = vmatprep.subr.mxu0 0.0
  %2626 = vmatpush1.msra.mxu0 0.0
  %2627 = vmatprep.subr.mxu0 0.0
  %2628 = vmatpush1.msra.mxu0 0.0
  %2629 = vmatprep.subr.mxu0 0.0
  %2630 = vmatpush1.msra.mxu0 0.0
  %2631 = vmatprep.subr.mxu0 0.0
  %2632 = vmatpush1.msra.mxu0 0.0
  %2633 = vmatprep.subr.mxu0 0.0
  %2634 = vmatpush1.msra.mxu0 0.0
  %2635 = vmatprep.subr.mxu0 0.0
  %2636 = vmatpush1.msra.mxu0 0.0
  %2637 = vmatprep.subr.mxu0 0.0
  %2638 = vmatpush1.msra.mxu0 0.0
  %2639 = vmatprep.subr.mxu0 0.0
  %2640 = vmatpush1.msra.mxu0 0.0
  %2641 = vmatprep.subr.mxu0 0.0
  %2642 = vmatpush1.msra.mxu0 0.0
  %2643 = vmatprep.subr.mxu0 0.0
  %2644 = vmatpush1.msra.mxu0 0.0
  %2645 = vmatprep.subr.mxu0 0.0
  %2646 = vmatpush1.msra.mxu0 0.0
  %2647 = vmatprep.subr.mxu0 0.0
  %2648 = vmatpush1.msra.mxu0 0.0
  %2649 = vmatprep.subr.mxu0 0.0
  %2650 = vmatpush1.msra.mxu0 0.0
  %2651 = vmatprep.subr.mxu0 0.0
  %2652 = vmatpush1.msra.mxu0 0.0
  %2653 = vmatprep.subr.mxu0 0.0
  %2654 = vmatpush1.msra.mxu0 0.0
  %2655 = vmatprep.subr.mxu0 0.0
  %2656 = vmatpush1.msra.mxu0 0.0
  %2657 = vmatprep.subr.mxu0 0.0
  %2658 = vmatpush1.msra.mxu0 0.0
  %2659 = vmatprep.subr.mxu0 0.0
  %2660 = vmatpush1.msra.mxu0 0.0
  %2661 = vmatprep.subr.mxu0 0.0
  %2662 = vmatpush1.msra.mxu0 0.0
  %2663 = vmatprep.subr.mxu0 0.0
  %2664 = vmatpush1.msra.mxu0 0.0
  %2665 = vmatprep.subr.mxu0 0.0
  %2666 = vmatpush1.msra.mxu0 0.0
  %2667 = vmatprep.mubr.f32.mxu0 0.0
  %2668 = vmatmul.mubr.f32.gmra.mrb[0].mxu0 %v2601
  %v2669 = vpop.f32.mrb[0].mxu0
  %v2670 = vadd.f32 %v2598, %v2669
  %v2671 = vpop.f32.mrb[0].mxu0
  %2672 = vdwg.mxu0
  %v2673 = vadd.f32 %v2670, %v187
  %v2674 = vand.u32 2147483647, %v2673
  %vm2675 = vcmp.le.f32.partialorder %v2674, 0.7853982
  %vm2676 = vcmp.lt.s32.totalorder %v2673, 0
  %v2677 = vand.u32 %v2673, 2139095040
  %v2678 = vshrl.u32 %v2677, 23
  %v2679 = vsub.s32 %v2678, 127
  %v2680 = vand.u32 2147483647, %v2673
  %v2681 = vand.u32 %v2680, 8388607
  %v2682 = vor.u32 %v2681, 8388608
  %v2683 = vsub.s32 0, %v2682
  %v2684 = vadd.s32 %v2679, 1
  %vm2685 = vcmp.gt.s32.totalorder %v2684, 0
  %v2686 = vsel %vm2685, %v2684, 0
  %v2687 = vshrl.u32 %v2686, 5
  %v2688 = vand.u32 %v2686, 31
  %v2689 = vsub.s32 32, %v2688
  %v2690 = vshrl.u32 683565275, %v2689
  %v2691 = vshll.u32 683565275, %v2688
  %v2692 = vshrl.u32 2475754826, %v2689
  %v2693 = vor.u32 %v2691, %v2692
  %v2694 = vshll.u32 2475754826, %v2688
  %v2695 = vshrl.u32 2131351028, %v2689
  %v2696 = vor.u32 %v2694, %v2695
  %v2697 = vshll.u32 2131351028, %v2688
  %v2698 = vshrl.u32 2102212464, %v2689
  %v2699 = vor.u32 %v2697, %v2698
  %v2700 = vshll.u32 2102212464, %v2688
  %v2701 = vshrl.u32 920167782, %v2689
  %v2702 = vor.u32 %v2700, %v2701
  %v2703 = vshll.u32 920167782, %v2688
  %v2704 = vshrl.u32 1326507024, %v2689
  %v2705 = vor.u32 %v2703, %v2704
  %vm2706 = vcmp.lt.s32.totalorder %v2687, 1
  %vm2707 = vcmp.lt.s32.totalorder %v2687, 2
  %vm2708 = vcmp.lt.s32.totalorder %v2687, 3
  %vm2709 = vcmp.lt.s32.totalorder %v2687, 4
  %v2710 = vsel %vm2706, %v2690, %v2693
  %v2711 = vsel %vm2709, %v2699, 2102212464
  %v2712 = vsel %vm2708, %v2696, %v2711
  %v2713 = vsel %vm2707, %v2710, %v2712
  %v2714 = vsel %vm2706, %v2693, %v2696
  %v2715 = vsel %vm2709, %v2702, 920167782
  %v2716 = vsel %vm2708, %v2699, %v2715
  %v2717 = vsel %vm2707, %v2714, %v2716
  %v2718 = vsel %vm2706, %v2696, %v2699
  %v2719 = vsel %vm2709, %v2705, 1326507024
  %v2720 = vsel %vm2708, %v2702, %v2719
  %v2721 = vsel %vm2707, %v2718, %v2720
  %v2722 = vshll.u32 %v2682, 8
  %v2723 = vmul.u32.u64.compose %v2722, %v2721
  %v2724 = vextract.low.u32 %v2723
  %v2725 = vextract.high.u32 %v2723
  %v2726 = vmul.u32.u64.compose %v2722, %v2717
  %v2727 = vextract.low.u32 %v2726
  %v2728 = vextract.high.u32 %v2726
  %v2729 = vmul.u32 %v2722, %v2713
  %v2730 = vadd.s32 %v2725, %v2727
  %vm2731 = vc.u32 %v2725, %v2727
  %v2732 = vadd.s32 %v2728, 1
  %v2733 = vsel %vm2731, %v2732, %v2728
  %v2734 = vadd.s32 %v2729, %v2733
  %v2735 = vadd.s32 %v2734, 536870912
  %v2736 = vshrl.u32 %v2735, 30
  %v2737 = vshll.u32 %v2736, 30
  %v2738 = vsub.s32 %v2734, %v2737
  %vm2739 = vcmp.lt.s32.totalorder %v2738, 0
  %v2740 = vsub.s32 0, %v2738
  %v2741 = vsel %vm2739, %v2740, %v2738
  %v2742 = vclz %v2741
  %v2743 = vsub.s32 %v2742, 2
  %vm2744 = vcmp.gt.s32.totalorder 0, %v2743
  %v2745 = vsel %vm2744, 0, %v2743
  %v2746 = vsub.s32 32, %v2745
  %v2747 = vshll.u32 %v2738, %v2745
  %v2748 = vshrl.u32 %v2730, %v2746
  %v2749 = vor.u32 %v2747, %v2748
  %v2750 = vsub.s32 4294967266, %v2745
  %v2751 = vadd.s32 %v2750, 127
  %v2752 = vshll.u32 %v2751, 23
  %v2753 = vor.u32 4788187, %v2752
  %v2754 = vand.u32 2147483647, %v2753
  %v2756 = vcvt.s32.f32 %v2749
  %v2757 = vmul.f32 %v2756, %v2754
  %v2758 = vxor.u32 %v2757, 2147483648
  %v2759 = vsel %vm2676, %v2758, %v2757
  %v2760 = vsub.s32 4, %v2736
  %v2761 = vsel %vm2676, %v2760, %v2736
  %v2762 = vsel %vm2675, %v2673, %v2759
  %v2763 = vsel %vm2675, 0, %v2761
  %v2764 = vcosq.f32.pop %v2762
  %v2765 = vsinq.f32.pop %v2762
  %vm2766 = vweird.f32 %v2673
  %v2767 = vand.u32 %v2763, 3
  %vm2768 = vcmp.lt.s32.totalorder %v2767, 2
  %vm2769 = vcmp.eq.s32.totalorder %v2767, 0
  %v2770 = vxor.u32 %v2765, 2147483648
  %v2771 = vsel %vm2769, %v2764, %v2770
  %vm2772 = vcmp.eq.s32.totalorder %v2767, 2
  %v2773 = vxor.u32 %v2764, 2147483648
  %v2774 = vsel %vm2772, %v2773, %v2765
  %v2775 = vsel %vm2768, %v2771, %v2774
  %v2776 = vsel %vm2766, nan, %v2775
  %v2778 = vsel %vm299, %v2776, 0
  %2780 = vmatprep.subr.mxu0 0.0
  %2781 = vmatpush1.msra.mxu0 %v31
  %2782 = vmatprep.subr.mxu0 0.0
  %2783 = vmatpush1.msra.mxu0 %v32
  %2784 = vmatprep.subr.mxu0 0.0
  %2785 = vmatpush1.msra.mxu0 0.0
  %2786 = vmatprep.subr.mxu0 0.0
  %2787 = vmatpush1.msra.mxu0 0.0
  %2788 = vmatprep.subr.mxu0 0.0
  %2789 = vmatpush1.msra.mxu0 0.0
  %2790 = vmatprep.subr.mxu0 0.0
  %2791 = vmatpush1.msra.mxu0 0.0
  %2792 = vmatprep.subr.mxu0 0.0
  %2793 = vmatpush1.msra.mxu0 0.0
  %2794 = vmatprep.subr.mxu0 0.0
  %2795 = vmatpush1.msra.mxu0 0.0
  %2796 = vmatprep.subr.mxu0 0.0
  %2797 = vmatpush1.msra.mxu0 0.0
  %2798 = vmatprep.subr.mxu0 0.0
  %2799 = vmatpush1.msra.mxu0 0.0
  %2800 = vmatprep.subr.mxu0 0.0
  %2801 = vmatpush1.msra.mxu0 0.0
  %2802 = vmatprep.subr.mxu0 0.0
  %2803 = vmatpush1.msra.mxu0 0.0
  %2804 = vmatprep.subr.mxu0 0.0
  %2805 = vmatpush1.msra.mxu0 0.0
  %2806 = vmatprep.subr.mxu0 0.0
  %2807 = vmatpush1.msra.mxu0 0.0
  %2808 = vmatprep.subr.mxu0 0.0
  %2809 = vmatpush1.msra.mxu0 0.0
  %2810 = vmatprep.subr.mxu0 0.0
  %2811 = vmatpush1.msra.mxu0 0.0
  %2812 = vmatprep.subr.mxu0 0.0
  %2813 = vmatpush1.msra.mxu0 0.0
  %2814 = vmatprep.subr.mxu0 0.0
  %2815 = vmatpush1.msra.mxu0 0.0
  %2816 = vmatprep.subr.mxu0 0.0
  %2817 = vmatpush1.msra.mxu0 0.0
  %2818 = vmatprep.subr.mxu0 0.0
  %2819 = vmatpush1.msra.mxu0 0.0
  %2820 = vmatprep.subr.mxu0 0.0
  %2821 = vmatpush1.msra.mxu0 0.0
  %2822 = vmatprep.subr.mxu0 0.0
  %2823 = vmatpush1.msra.mxu0 0.0
  %2824 = vmatprep.subr.mxu0 0.0
  %2825 = vmatpush1.msra.mxu0 0.0
  %2826 = vmatprep.subr.mxu0 0.0
  %2827 = vmatpush1.msra.mxu0 0.0
  %2828 = vmatprep.subr.mxu0 0.0
  %2829 = vmatpush1.msra.mxu0 0.0
  %2830 = vmatprep.subr.mxu0 0.0
  %2831 = vmatpush1.msra.mxu0 0.0
  %2832 = vmatprep.subr.mxu0 0.0
  %2833 = vmatpush1.msra.mxu0 0.0
  %2834 = vmatprep.subr.mxu0 0.0
  %2835 = vmatpush1.msra.mxu0 0.0
  %2836 = vmatprep.subr.mxu0 0.0
  %2837 = vmatpush1.msra.mxu0 0.0
  %2838 = vmatprep.subr.mxu0 0.0
  %2839 = vmatpush1.msra.mxu0 0.0
  %2840 = vmatprep.subr.mxu0 0.0
  %2841 = vmatpush1.msra.mxu0 0.0
  %2842 = vmatprep.subr.mxu0 0.0
  %2843 = vmatpush1.msra.mxu0 0.0
  %2844 = vmatprep.mubr.f32.mxu0 0.0
  %2845 = vmatmul.mubr.f32.gmra.mrb[0].mxu0 %v2778
  %v2846 = vpop.f32.mrb[0].mxu0
  %v2847 = vadd.f32 %v297, %v2846
  %v2848 = vpop.f32.mrb[0].mxu0
  %2849 = vdwg.mxu0
  %v2850 = vxor.u32 %v2847, 2147483648
  %v2851 = vmul.f32 %v2850, 1.442695
  %v2852 = vpow.pop %v2851
  %v2853 = vadd.f32 %v2852, 1.0
  %v2854 = vrcp.pop %v2853
  %v2855 = vmul.f32 1.0, %v2854
  %v2856 = vtanh.pop %v2847
  %v2857 = vmul.f32 %v2855, %v2513
  %2859 = vrot.lane.b32.xlu0 %v2856, 96
  %v2860 = vpop.permute.xlu0 %2859
  %v2862 = vmul.f32 %v2855, %v2860
  %2864 = vrot.lane.b32.xlu0 %v2862, 96
  %v2865 = vpop.permute.xlu0 %2864
  %v2867 = vadd.f32 %v2857, %v2865
  %v2868 = vtanh.pop %v2867
  %2870 = vrot.lane.b32.xlu0 %v2868, 96
  %v2871 = vpop.permute.xlu0 %2870
  %v2873 = vmul.f32 %v2855, %v2871
  %2875 = vrot.lane.b32.xlu0 %v2873, 32
  %v2876 = vpop.permute.xlu0 %2875
  %s2878 = scalar_lea.vmem %s6, 56
  %2879 = vst.msk [vmem:[%s2878] sm:$0xff] %vm109, %v2876
  %2880 = vst.msk [vmem:[%s7] sm:$0xff] %vm109, %v2867
  // Predicated region
  $region26: #{qlstm_forward.1} parent=0 // pred_check
    _
  $region27: #{qlstm_forward.1} parent=0 // pred_check_branch
    %2882 = sbr.rel (0) target = $region29
  $region28: #{qlstm_forward.1} parent=0 // pred_region
    _
  $region29: #{qlstm_forward.1} parent=0 // pred_fallthru
    _
  // Predicated region
  $region30: #{qlstm_forward.1} parent=0 // pred_check
    _
  $region31: #{qlstm_forward.1} parent=0 // pred_check_branch
    %2884 = sbr.rel (0) target = $region33
  $region32: #{qlstm_forward.1} parent=0 // pred_region
    _
  $region33: #{qlstm_forward.1} parent=0 // pred_fallthru
    _
  // Predicated region
  $region34: #{qlstm_forward.1} parent=0 // pred_check
    _
  $region35: #{qlstm_forward.1} parent=0 // pred_check_branch
    %2886 = sbr.rel (0) target = $region37
  $region36: #{qlstm_forward.1} parent=0 // pred_region
    _
  $region37: #{qlstm_forward.1} parent=0 // pred_fallthru
    _
  // Predicated region
  $region38: #{qlstm_forward.1} parent=0 // pred_check
    _
  $region39: #{qlstm_forward.1} parent=0 // pred_check_branch
    %2888 = sbr.rel (0) target = $region41
  $region40: #{qlstm_forward.1} parent=0 // pred_region
    _
  $region41: #{qlstm_forward.1} parent=0 // pred_fallthru
    _

</llo_original>
